<compile_context>
chip_gen: v6e
topology: v6e:2x2x1
jax: 0.10.0
libtpu: 0.0.40
codegen_flags: <defaults>
</compile_context>

<pallas_src>
import functools

import jax
import jax.numpy as jnp
from jax import lax
from jax.experimental import pallas as pl
from jax.experimental.pallas import tpu as pltpu


def _convlstm_cell_kernel(H, W, cin, chid,
                          x_ref, state_ref, w_ref, b_ref,
                          state_out_ref, slab_ref):
    """Fused ConvLSTM cell step for one batch sample.

    x_ref        : (1, H*Wp, Cin)     input, padded-width layout, junk cols zero
    state_ref    : (1, H*Wp, 2*Chid)  packed [h | c] prev state, junk cols zero
    w_ref        : (9, Ctot, 4*Chid)  bf16 gate conv weights, tap-major (k=kh*3+kw)
    b_ref        : (1, 4*Chid)        gate conv bias (f32)
    state_out_ref: (1, H*Wp, 2*Chid)  packed [h | c] new state (aliased onto input)
    slab_ref     : VMEM (R, Ctot) f32 flat zero-padded concat(input, h) slab
    """
    wp = W + 2
    rows = H * wp                      # gate rows incl. 2 junk columns per image row
    ctot = cin + chid
    cg = 4 * chid
    r_slab = slab_ref.shape[0]
    lo = wp + 1                        # first interior slab row

    # --- keep the padded halo at zero.  Interior rows [lo, lo+rows) are fully
    #     rewritten below; only the small border row ranges need zeroing.  Done
    #     every step (not pid==0) so each TensorCore's private scratch is valid
    #     when the batch grid shards across cores (v7x).
    slab_ref[0:lo, :] = jnp.zeros((lo, ctot), slab_ref.dtype)
    if r_slab > lo + rows:
        slab_ref[lo + rows:r_slab, :] = jnp.zeros((r_slab - lo - rows, ctot),
                                                  slab_ref.dtype)

    # --- in-VMEM concat(input, h_prev): channel-offset stores into the flat slab.
    #     The zero junk columns of x/h land exactly on the left/right padding
    #     positions of the slab, so the halo stays zero.
    slab_ref[lo:lo + rows, 0:cin] = x_ref[0]
    slab_ref[lo:lo + rows, cin:ctot] = state_ref[0, :, 0:chid]

    # --- gate conv: 9 static row-offset tap slices of the flat slab, bf16 MXU
    #     matmuls with f32 accumulation.  No reshapes inside the loop.
    acc = jnp.zeros((rows, cg), jnp.float32)
    for k in range(9):
        kh, kw = divmod(k, 3)
        start = kh * wp + kw                           # static offset
        patch = slab_ref[start:start + rows, :].astype(jnp.bfloat16)
        acc = acc + jnp.dot(patch, w_ref[k], preferred_element_type=jnp.float32)
    gates = acc + b_ref[...].astype(jnp.float32)

    # --- gate nonlinearities at full 128-lane width
    #     (PyTorch chunk order: in, remember, out -> sigmoid; cell -> tanh)
    sig = pl.reciprocal(1.0 + jnp.exp(-gates), approx=True)
    lane = lax.broadcasted_iota(jnp.int32, (rows, cg), 1)
    act = jnp.where(lane < 3 * chid, sig, jnp.tanh(gates))

    in_g = act[:, 0:chid]
    rem_g = act[:, chid:2 * chid]
    out_g = act[:, 2 * chid:3 * chid]
    cell_g = act[:, 3 * chid:4 * chid]

    # --- LSTM state update (f32 elementwise; v5e-friendly)
    c_prev = state_ref[0, :, chid:2 * chid]
    c_new = rem_g * c_prev + in_g * cell_g
    h_new = out_g * jnp.tanh(c_new)

    # Zero the 2 junk columns per image row: next step they become the slab's
    # zero padding, so they must stay exactly 0.
    keep = (lax.broadcasted_iota(jnp.int32, (rows, chid), 0) % wp) < W
    h_new = jnp.where(keep, h_new, 0.0)
    c_new = jnp.where(keep, c_new, 0.0)

    state_out_ref[0, :, 0:chid] = h_new
    state_out_ref[0, :, chid:2 * chid] = c_new


def init_params(key, in_channels, hidden_channels, kernel_size=3):
    """Matches ConvLSTMCell.__init__ + init_weights: xavier_uniform_ weights,
    PyTorch-default uniform bias.  Weight layout is (kh*3+kw, Cin_total, 4*Chid);
    to load real PyTorch weights (4*Chid, Cin_total, kh, kw), transpose with
    (2, 3, 1, 0) and reshape to (9, Cin_total, 4*Chid)."""
    assert kernel_size == 3, "kernel implemented for kernel_size=3 (padding=1)"
    ctot = in_channels + hidden_channels
    cg = 4 * hidden_channels
    wkey, bkey = jax.random.split(key)
    fan_in = ctot * kernel_size * kernel_size
    fan_out = cg * kernel_size * kernel_size
    wbound = (6.0 / (fan_in + fan_out)) ** 0.5
    w = jax.random.uniform(wkey, (kernel_size * kernel_size, ctot, cg),
                           jnp.float32, -wbound, wbound)
    bbound = 1.0 / (fan_in ** 0.5)
    b = jax.random.uniform(bkey, (1, cg), jnp.float32, -bbound, bbound)
    return {"w": w, "b": b}


def init_state(batch, hidden_channels, height, width):
    """prev_state is None -> zeros.  Packed kernel-native layout:
    (N, H*(W+2), 2*Chid) with lanes [0:Chid)=h, [Chid:2*Chid)=c; the two junk
    columns per image row stay at zero (they double as conv zero padding)."""
    rows = height * (width + 2)
    return jnp.zeros((batch, rows, 2 * hidden_channels), jnp.float32)


def state_to_nchw(state, height, width):
    """Unpack the flat packed state into (h, c) NCHW arrays."""
    n, _, c2 = state.shape
    chid = c2 // 2
    s = state.reshape(n, height, width + 2, c2)[:, :, :width, :]
    s = jnp.transpose(s, (0, 3, 1, 2))
    return s[:, :chid], s[:, chid:]


@jax.jit
def convlstm_cell_step(x_nchw, params, state):
    """One ConvLSTMCell.forward step.

    x_nchw : (N, Cin, H, W)        input frame (NCHW, like the PyTorch module)
    state  : (N, H*(W+2), 2*Chid)  packed flat [h | c] state (see init_state)
    returns (hidden in NCHW, new packed state)
    """
    w, b = params["w"], params["b"]
    ctot, cg = w.shape[1], w.shape[2]
    chid = cg // 4
    n, cin, h, wdt = x_nchw.shape
    wp = wdt + 2
    rows = h * wp
    assert cin + chid == ctot
    assert state.shape == (n, rows, 2 * chid)

    # Wrapper glue on x only (state stays in the kernel-native flat layout):
    # NCHW -> NHWC, pad W with 2 zero junk columns, flatten (H, W+2) -> rows.
    x = jnp.transpose(x_nchw, (0, 2, 3, 1)).astype(jnp.float32)
    x = jnp.pad(x, ((0, 0), (0, 0), (0, wp - wdt), (0, 0))).reshape(n, rows, cin)
    w_bf = w.astype(jnp.bfloat16)                     # bf16 MXU operands

    # Slab rows: cover the furthest tap slice, rounded up to a sublane multiple.
    r_slab = -(-(2 * wp + 2 + rows) // 8) * 8

    kernel = functools.partial(_convlstm_cell_kernel, h, wdt, cin, chid)

    grid_spec = pltpu.PrefetchScalarGridSpec(
        num_scalar_prefetch=0,
        grid=(n,),
        in_specs=[
            pl.BlockSpec((1, rows, cin), lambda i: (i, 0, 0)),
            pl.BlockSpec((1, rows, 2 * chid), lambda i: (i, 0, 0)),
            pl.BlockSpec((9, ctot, cg), lambda i: (0, 0, 0)),
            pl.BlockSpec((1, cg), lambda i: (0, 0)),
        ],
        out_specs=pl.BlockSpec((1, rows, 2 * chid), lambda i: (i, 0, 0)),
        scratch_shapes=[pltpu.VMEM((r_slab, ctot), jnp.float32)],
    )

    new_state = pl.pallas_call(
        kernel,
        grid_spec=grid_spec,
        out_shape=jax.ShapeDtypeStruct((n, rows, 2 * chid), jnp.float32),
        input_output_aliases={1: 0},                  # state updated in place (P8)
        compiler_params=pltpu.CompilerParams(
            dimension_semantics=("parallel",)),       # batch shards over v7x's 2 TCs
    )(x, state, w_bf, b)

    hidden, _ = state_to_nchw(new_state, h, wdt)      # NCHW only at the API boundary
    return hidden, new_state


def _reference_step(x_nchw, params, state_nchw):
    """Pure-JAX/XLA mirror of the PyTorch forward (f32, HIGHEST), for validation."""
    w, b = params["w"], params["b"]
    ctot, cg = w.shape[1], w.shape[2]
    h_prev, c_prev = state_nchw
    stacked = jnp.concatenate([x_nchw, h_prev], axis=1)
    w_oihw = jnp.transpose(w.reshape(3, 3, ctot, cg), (3, 2, 0, 1))
    gates = lax.conv_general_dilated(
        stacked, w_oihw, window_strides=(1, 1), padding=((1, 1), (1, 1)),
        dimension_numbers=("NCHW", "OIHW", "NCHW"),
        precision=lax.Precision.HIGHEST) + b.reshape(1, cg, 1, 1)
    in_g, rem_g, out_g, cell_g = jnp.split(gates, 4, axis=1)
    in_g, rem_g, out_g = map(jax.nn.sigmoid, (in_g, rem_g, out_g))
    cell_g = jnp.tanh(cell_g)
    c_new = rem_g * c_prev + in_g * cell_g
    h_new = out_g * jnp.tanh(c_new)
    return h_new, (h_new, c_new)


if __name__ == "__main__":
    key = jax.random.PRNGKey(0)
    pkey, xkey = jax.random.split(key)

    N, Cin, H, W = 2, 4, 16, 16
    Chid = 32                                   # 4*Chid = 128 -> lane-dense gate slab

    params = init_params(pkey, Cin, Chid, kernel_size=3)
    x = jax.random.normal(xkey, (N, Cin, H, W), jnp.float32)

    # two recurrent steps (first step starts from zero state == prev_state None)
    state = init_state(N, Chid, H, W)
    h1, state = convlstm_cell_step(x, params, state)
    h2, state = convlstm_cell_step(x, params, state)
    jax.block_until_ready((h1, h2, state))

    # validate against a pure-XLA f32 reference of the same math
    ref_state = (jnp.zeros((N, Chid, H, W), jnp.float32),
                 jnp.zeros((N, Chid, H, W), jnp.float32))
    r1, ref_state = _reference_step(x, params, ref_state)
    r2, ref_state = _reference_step(x, params, ref_state)

    assert h1.shape == (N, Chid, H, W), h1.shape
    assert h2.shape == (N, Chid, H, W), h2.shape
    assert bool(jnp.all(jnp.isfinite(h1))) and bool(jnp.all(jnp.isfinite(h2)))
    assert bool(jnp.allclose(h1, r1, atol=2e-2, rtol=2e-2)), \
        float(jnp.max(jnp.abs(h1 - r1)))
    assert bool(jnp.allclose(h2, r2, atol=2e-2, rtol=2e-2)), \
        float(jnp.max(jnp.abs(h2 - r2)))
    c_kernel = state_to_nchw(state, H, W)[1]
    assert bool(jnp.allclose(c_kernel, ref_state[1], atol=2e-2, rtol=2e-2)), \
        float(jnp.max(jnp.abs(c_kernel - ref_state[1])))
    print("KERNEL_OK")
</pallas_src>

<mosaic_0001>
module attributes {stable_mosaic.version = 11 : i64} {
  func.func @_convlstm_cell_kernel(%arg0: i32, %arg1: memref<1x288x4xf32, #tpu.memory_space<vmem>>, %arg2: memref<1x288x64xf32, #tpu.memory_space<vmem>>, %arg3: memref<9x36x128xbf16, #tpu.memory_space<vmem>>, %arg4: memref<1x128xf32, #tpu.memory_space<vmem>>, %arg5: memref<1x288x64xf32, #tpu.memory_space<vmem>>, %arg6: memref<328x36xf32, #tpu.memory_space<vmem>>) attributes {dimension_semantics = [#tpu.dimension_semantics<parallel>], iteration_bounds = array<i64: 2>, scalar_prefetch = 0 : i64, scratch_operands = 1 : i64, tpu.core_type = #tpu.core_type<tc>, window_params = [{transform_indices = @transform_0, window_bounds = array<i64: 1, 288, 4>}, {transform_indices = @transform_1, window_bounds = array<i64: 1, 288, 64>}, {pipeline_mode = #tpu.pipeline_mode<synchronous>, transform_indices = @transform_2, window_bounds = array<i64: 9, 36, 128>}, {pipeline_mode = #tpu.pipeline_mode<synchronous>, transform_indices = @transform_3, window_bounds = array<i64: 1, 128>}, {transform_indices = @transform_4, window_bounds = array<i64: 1, 288, 64>}]} {
    %cst = arith.constant 0.000000e+00 : f32
    %0 = vector.broadcast %cst : f32 to vector<19x36xf32>
    %c0 = arith.constant 0 : index
    %c0_0 = arith.constant 0 : index
    %1 = vector.load %arg6[%c0, %c0_0] : memref<328x36xf32, #tpu.memory_space<vmem>>, vector<19x36xf32>
    tpu.vector_store %arg6[%c0, %c0_0], %0 {strides = array<i32>} : memref<328x36xf32, #tpu.memory_space<vmem>>, vector<19x36xf32>,
    %cst_1 = arith.constant 0.000000e+00 : f32
    %2 = vector.broadcast %cst_1 : f32 to vector<21x36xf32>
    %c307 = arith.constant 307 : index
    %c0_2 = arith.constant 0 : index
    %3 = vector.load %arg6[%c307, %c0_2] : memref<328x36xf32, #tpu.memory_space<vmem>>, vector<21x36xf32>
    tpu.vector_store %arg6[%c307, %c0_2], %2 {strides = array<i32>} : memref<328x36xf32, #tpu.memory_space<vmem>>, vector<21x36xf32>,
    %c0_3 = arith.constant 0 : index
    %c0_4 = arith.constant 0 : index
    %c0_5 = arith.constant 0 : index
    %4 = vector.load %arg1[%c0_3, %c0_4, %c0_5] : memref<1x288x4xf32, #tpu.memory_space<vmem>>, vector<1x288x4xf32>
    %5 = vector.shape_cast %4 : vector<1x288x4xf32> to vector<288x4xf32>
    %c19 = arith.constant 19 : index
    %c0_6 = arith.constant 0 : index
    %6 = vector.load %arg6[%c19, %c0_6] : memref<328x36xf32, #tpu.memory_space<vmem>>, vector<288x4xf32>
    tpu.vector_store %arg6[%c19, %c0_6], %5 {strides = array<i32>} : memref<328x36xf32, #tpu.memory_space<vmem>>, vector<288x4xf32>,
    %c0_7 = arith.constant 0 : index
    %c0_8 = arith.constant 0 : index
    %c0_9 = arith.constant 0 : index
    %7 = vector.load %arg2[%c0_7, %c0_8, %c0_9] : memref<1x288x64xf32, #tpu.memory_space<vmem>>, vector<1x288x32xf32>
    %8 = vector.shape_cast %7 : vector<1x288x32xf32> to vector<288x32xf32>
    %c19_10 = arith.constant 19 : index
    %c4 = arith.constant 4 : index
    %9 = vector.load %arg6[%c19_10, %c4] : memref<328x36xf32, #tpu.memory_space<vmem>>, vector<288x32xf32>
    tpu.vector_store %arg6[%c19_10, %c4], %8 {strides = array<i32>} : memref<328x36xf32, #tpu.memory_space<vmem>>, vector<288x32xf32>,
    %cst_11 = arith.constant 0.000000e+00 : f32
    %10 = vector.broadcast %cst_11 : f32 to vector<288x128xf32>
    %c0_12 = arith.constant 0 : index
    %c0_13 = arith.constant 0 : index
    %11 = vector.load %arg6[%c0_12, %c0_13] : memref<328x36xf32, #tpu.memory_space<vmem>>, vector<288x36xf32>
    %12 = arith.truncf %11 : vector<288x36xf32> to vector<288x36xbf16>
    %c0_14 = arith.constant 0 : index
    %c0_15 = arith.constant 0 : index
    %c0_16 = arith.constant 0 : index
    %13 = vector.load %arg3[%c0_14, %c0_15, %c0_16] : memref<9x36x128xbf16, #tpu.memory_space<vmem>>, vector<1x36x128xbf16>
    %14 = vector.shape_cast %13 : vector<1x36x128xbf16> to vector<36x128xbf16>
    %cst_17 = arith.constant dense<0.000000e+00> : vector<288x128xf32>
    %15 = tpu.matmul %12, %14, %cst_17 {dimension_numbers = #tpu.dot_dimension_numbers<[1], [0], [0], [1], [0, 0, 1, 1], [], []>} : vector<288x36xbf16>, vector<36x128xbf16>, vector<288x128xf32> -> vector<288x128xf32>
    %16 = arith.addf %10, %15 : vector<288x128xf32>
    %c1 = arith.constant 1 : index
    %c0_18 = arith.constant 0 : index
    %17 = vector.load %arg6[%c1, %c0_18] : memref<328x36xf32, #tpu.memory_space<vmem>>, vector<288x36xf32>
    %18 = arith.truncf %17 : vector<288x36xf32> to vector<288x36xbf16>
    %c1_19 = arith.constant 1 : index
    %c0_20 = arith.constant 0 : index
    %c0_21 = arith.constant 0 : index
    %19 = vector.load %arg3[%c1_19, %c0_20, %c0_21] : memref<9x36x128xbf16, #tpu.memory_space<vmem>>, vector<1x36x128xbf16>
    %20 = vector.shape_cast %19 : vector<1x36x128xbf16> to vector<36x128xbf16>
    %cst_22 = arith.constant dense<0.000000e+00> : vector<288x128xf32>
    %21 = tpu.matmul %18, %20, %cst_22 {dimension_numbers = #tpu.dot_dimension_numbers<[1], [0], [0], [1], [0, 0, 1, 1], [], []>} : vector<288x36xbf16>, vector<36x128xbf16>, vector<288x128xf32> -> vector<288x128xf32>
    %22 = arith.addf %16, %21 : vector<288x128xf32>
    %c2 = arith.constant 2 : index
    %c0_23 = arith.constant 0 : index
    %23 = vector.load %arg6[%c2, %c0_23] : memref<328x36xf32, #tpu.memory_space<vmem>>, vector<288x36xf32>
    %24 = arith.truncf %23 : vector<288x36xf32> to vector<288x36xbf16>
    %c2_24 = arith.constant 2 : index
    %c0_25 = arith.constant 0 : index
    %c0_26 = arith.constant 0 : index
    %25 = vector.load %arg3[%c2_24, %c0_25, %c0_26] : memref<9x36x128xbf16, #tpu.memory_space<vmem>>, vector<1x36x128xbf16>
    %26 = vector.shape_cast %25 : vector<1x36x128xbf16> to vector<36x128xbf16>
    %cst_27 = arith.constant dense<0.000000e+00> : vector<288x128xf32>
    %27 = tpu.matmul %24, %26, %cst_27 {dimension_numbers = #tpu.dot_dimension_numbers<[1], [0], [0], [1], [0, 0, 1, 1], [], []>} : vector<288x36xbf16>, vector<36x128xbf16>, vector<288x128xf32> -> vector<288x128xf32>
    %28 = arith.addf %22, %27 : vector<288x128xf32>
    %c18 = arith.constant 18 : index
    %c0_28 = arith.constant 0 : index
    %29 = vector.load %arg6[%c18, %c0_28] : memref<328x36xf32, #tpu.memory_space<vmem>>, vector<288x36xf32>
    %30 = arith.truncf %29 : vector<288x36xf32> to vector<288x36xbf16>
    %c3 = arith.constant 3 : index
    %c0_29 = arith.constant 0 : index
    %c0_30 = arith.constant 0 : index
    %31 = vector.load %arg3[%c3, %c0_29, %c0_30] : memref<9x36x128xbf16, #tpu.memory_space<vmem>>, vector<1x36x128xbf16>
    %32 = vector.shape_cast %31 : vector<1x36x128xbf16> to vector<36x128xbf16>
    %cst_31 = arith.constant dense<0.000000e+00> : vector<288x128xf32>
    %33 = tpu.matmul %30, %32, %cst_31 {dimension_numbers = #tpu.dot_dimension_numbers<[1], [0], [0], [1], [0, 0, 1, 1], [], []>} : vector<288x36xbf16>, vector<36x128xbf16>, vector<288x128xf32> -> vector<288x128xf32>
    %34 = arith.addf %28, %33 : vector<288x128xf32>
    %c19_32 = arith.constant 19 : index
    %c0_33 = arith.constant 0 : index
    %35 = vector.load %arg6[%c19_32, %c0_33] : memref<328x36xf32, #tpu.memory_space<vmem>>, vector<288x36xf32>
    %36 = arith.truncf %35 : vector<288x36xf32> to vector<288x36xbf16>
    %c4_34 = arith.constant 4 : index
    %c0_35 = arith.constant 0 : index
    %c0_36 = arith.constant 0 : index
    %37 = vector.load %arg3[%c4_34, %c0_35, %c0_36] : memref<9x36x128xbf16, #tpu.memory_space<vmem>>, vector<1x36x128xbf16>
    %38 = vector.shape_cast %37 : vector<1x36x128xbf16> to vector<36x128xbf16>
    %cst_37 = arith.constant dense<0.000000e+00> : vector<288x128xf32>
    %39 = tpu.matmul %36, %38, %cst_37 {dimension_numbers = #tpu.dot_dimension_numbers<[1], [0], [0], [1], [0, 0, 1, 1], [], []>} : vector<288x36xbf16>, vector<36x128xbf16>, vector<288x128xf32> -> vector<288x128xf32>
    %40 = arith.addf %34, %39 : vector<288x128xf32>
    %c20 = arith.constant 20 : index
    %c0_38 = arith.constant 0 : index
    %41 = vector.load %arg6[%c20, %c0_38] : memref<328x36xf32, #tpu.memory_space<vmem>>, vector<288x36xf32>
    %42 = arith.truncf %41 : vector<288x36xf32> to vector<288x36xbf16>
    %c5 = arith.constant 5 : index
    %c0_39 = arith.constant 0 : index
    %c0_40 = arith.constant 0 : index
    %43 = vector.load %arg3[%c5, %c0_39, %c0_40] : memref<9x36x128xbf16, #tpu.memory_space<vmem>>, vector<1x36x128xbf16>
    %44 = vector.shape_cast %43 : vector<1x36x128xbf16> to vector<36x128xbf16>
    %cst_41 = arith.constant dense<0.000000e+00> : vector<288x128xf32>
    %45 = tpu.matmul %42, %44, %cst_41 {dimension_numbers = #tpu.dot_dimension_numbers<[1], [0], [0], [1], [0, 0, 1, 1], [], []>} : vector<288x36xbf16>, vector<36x128xbf16>, vector<288x128xf32> -> vector<288x128xf32>
    %46 = arith.addf %40, %45 : vector<288x128xf32>
    %c36 = arith.constant 36 : index
    %c0_42 = arith.constant 0 : index
    %47 = vector.load %arg6[%c36, %c0_42] : memref<328x36xf32, #tpu.memory_space<vmem>>, vector<288x36xf32>
    %48 = arith.truncf %47 : vector<288x36xf32> to vector<288x36xbf16>
    %c6 = arith.constant 6 : index
    %c0_43 = arith.constant 0 : index
    %c0_44 = arith.constant 0 : index
    %49 = vector.load %arg3[%c6, %c0_43, %c0_44] : memref<9x36x128xbf16, #tpu.memory_space<vmem>>, vector<1x36x128xbf16>
    %50 = vector.shape_cast %49 : vector<1x36x128xbf16> to vector<36x128xbf16>
    %cst_45 = arith.constant dense<0.000000e+00> : vector<288x128xf32>
    %51 = tpu.matmul %48, %50, %cst_45 {dimension_numbers = #tpu.dot_dimension_numbers<[1], [0], [0], [1], [0, 0, 1, 1], [], []>} : vector<288x36xbf16>, vector<36x128xbf16>, vector<288x128xf32> -> vector<288x128xf32>
    %52 = arith.addf %46, %51 : vector<288x128xf32>
    %c37 = arith.constant 37 : index
    %c0_46 = arith.constant 0 : index
    %53 = vector.load %arg6[%c37, %c0_46] : memref<328x36xf32, #tpu.memory_space<vmem>>, vector<288x36xf32>
    %54 = arith.truncf %53 : vector<288x36xf32> to vector<288x36xbf16>
    %c7 = arith.constant 7 : index
    %c0_47 = arith.constant 0 : index
    %c0_48 = arith.constant 0 : index
    %55 = vector.load %arg3[%c7, %c0_47, %c0_48] : memref<9x36x128xbf16, #tpu.memory_space<vmem>>, vector<1x36x128xbf16>
    %56 = vector.shape_cast %55 : vector<1x36x128xbf16> to vector<36x128xbf16>
    %cst_49 = arith.constant dense<0.000000e+00> : vector<288x128xf32>
    %57 = tpu.matmul %54, %56, %cst_49 {dimension_numbers = #tpu.dot_dimension_numbers<[1], [0], [0], [1], [0, 0, 1, 1], [], []>} : vector<288x36xbf16>, vector<36x128xbf16>, vector<288x128xf32> -> vector<288x128xf32>
    %58 = arith.addf %52, %57 : vector<288x128xf32>
    %c38 = arith.constant 38 : index
    %c0_50 = arith.constant 0 : index
    %59 = vector.load %arg6[%c38, %c0_50] : memref<328x36xf32, #tpu.memory_space<vmem>>, vector<288x36xf32>
    %60 = arith.truncf %59 : vector<288x36xf32> to vector<288x36xbf16>
    %c8 = arith.constant 8 : index
    %c0_51 = arith.constant 0 : index
    %c0_52 = arith.constant 0 : index
    %61 = vector.load %arg3[%c8, %c0_51, %c0_52] : memref<9x36x128xbf16, #tpu.memory_space<vmem>>, vector<1x36x128xbf16>
    %62 = vector.shape_cast %61 : vector<1x36x128xbf16> to vector<36x128xbf16>
    %cst_53 = arith.constant dense<0.000000e+00> : vector<288x128xf32>
    %63 = tpu.matmul %60, %62, %cst_53 {dimension_numbers = #tpu.dot_dimension_numbers<[1], [0], [0], [1], [0, 0, 1, 1], [], []>} : vector<288x36xbf16>, vector<36x128xbf16>, vector<288x128xf32> -> vector<288x128xf32>
    %64 = arith.addf %58, %63 : vector<288x128xf32>
    %c0_54 = arith.constant 0 : index
    %c0_55 = arith.constant 0 : index
    %65 = vector.load %arg4[%c0_54, %c0_55] : memref<1x128xf32, #tpu.memory_space<vmem>>, vector<1x128xf32>
    %66 = vector.broadcast %65 : vector<1x128xf32> to vector<288x128xf32>
    %67 = arith.addf %64, %66 : vector<288x128xf32>
    %cst_56 = arith.constant 0.000000e+00 : f32
    %68 = vector.broadcast %cst_56 : f32 to vector<288x128xf32>
    %69 = arith.subf %68, %67 : vector<288x128xf32>
    %70 = math.exp %69 : vector<288x128xf32>
    %cst_57 = arith.constant 1.000000e+00 : f32
    %71 = vector.broadcast %cst_57 : f32 to vector<288x128xf32>
    %72 = arith.addf %71, %70 : vector<288x128xf32>
    %73 = tpu.reciprocal %72 {approx = true} : vector<288x128xf32> -> vector<288x128xf32>
    %74 = tpu.iota {dimensions = array<i32: 1>} : vector<288x128xi32>
    %c96_i32 = arith.constant 96 : i32
    %75 = vector.broadcast %c96_i32 : i32 to vector<288x128xi32>
    %76 = arith.cmpi slt, %74, %75 : vector<288x128xi32>
    %77 = math.tanh %67 : vector<288x128xf32>
    %78 = arith.select %76, %73, %77 : vector<288x128xi1>, vector<288x128xf32>
    %79 = vector.extract_strided_slice %78 {offsets = [0, 0], sizes = [288, 32], strides = [1, 1]} : vector<288x128xf32> to vector<288x32xf32>
    %80 = vector.extract_strided_slice %78 {offsets = [0, 32], sizes = [288, 32], strides = [1, 1]} : vector<288x128xf32> to vector<288x32xf32>
    %81 = vector.extract_strided_slice %78 {offsets = [0, 64], sizes = [288, 32], strides = [1, 1]} : vector<288x128xf32> to vector<288x32xf32>
    %82 = vector.extract_strided_slice %78 {offsets = [0, 96], sizes = [288, 32], strides = [1, 1]} : vector<288x128xf32> to vector<288x32xf32>
    %c0_58 = arith.constant 0 : index
    %c0_59 = arith.constant 0 : index
    %c32 = arith.constant 32 : index
    %83 = vector.load %arg2[%c0_58, %c0_59, %c32] : memref<1x288x64xf32, #tpu.memory_space<vmem>>, vector<1x288x32xf32>
    %84 = vector.shape_cast %83 : vector<1x288x32xf32> to vector<288x32xf32>
    %85 = arith.mulf %80, %84 : vector<288x32xf32>
    %86 = arith.mulf %79, %82 : vector<288x32xf32>
    %87 = arith.addf %85, %86 : vector<288x32xf32>
    %88 = math.tanh %87 : vector<288x32xf32>
    %89 = arith.mulf %81, %88 : vector<288x32xf32>
    %90 = tpu.iota {dimensions = array<i32: 0>} : vector<288x32xi32>
    %c18_i32 = arith.constant 18 : i32
    %c0_i32 = arith.constant 0 : i32
    %91 = arith.cmpi eq, %c18_i32, %c0_i32 : i32
    %c1_i32 = arith.constant 1 : i32
    %92 = arith.select %91, %c1_i32, %c18_i32 : i32
    %93 = vector.broadcast %92 : i32 to vector<288x32xi32>
    %94 = arith.remsi %90, %93 : vector<288x32xi32>
    %c0_i32_60 = arith.constant 0 : i32
    %95 = vector.broadcast %c0_i32_60 : i32 to vector<288x32xi32>
    %96 = arith.cmpi ne, %94, %95 : vector<288x32xi32>
    %c0_i32_61 = arith.constant 0 : i32
    %97 = vector.broadcast %c0_i32_61 : i32 to vector<288x32xi32>
    %98 = arith.cmpi slt, %94, %97 : vector<288x32xi32>
    %c0_i32_62 = arith.constant 0 : i32
    %99 = arith.cmpi slt, %92, %c0_i32_62 : i32
    %100 = vector.broadcast %99 : i1 to vector<288x32xi1>
    %101 = vector.broadcast %100 : vector<288x32xi1> to vector<288x32xi1>
    %102 = arith.xori %98, %101 : vector<288x32xi1>
    %103 = arith.andi %102, %96 : vector<288x32xi1>
    %104 = vector.broadcast %92 : i32 to vector<288x32xi32>
    %105 = arith.addi %94, %104 : vector<288x32xi32>
    %106 = arith.select %103, %105, %94 : vector<288x32xi1>, vector<288x32xi32>
    %c16_i32 = arith.constant 16 : i32
    %107 = vector.broadcast %c16_i32 : i32 to vector<288x32xi32>
    %108 = arith.cmpi slt, %106, %107 : vector<288x32xi32>
    %cst_63 = arith.constant 0.000000e+00 : f32
    %109 = vector.broadcast %cst_63 : f32 to vector<288x32xf32>
    %110 = arith.select %108, %89, %109 : vector<288x32xi1>, vector<288x32xf32>
    %cst_64 = arith.constant 0.000000e+00 : f32
    %111 = vector.broadcast %cst_64 : f32 to vector<288x32xf32>
    %112 = arith.select %108, %87, %111 : vector<288x32xi1>, vector<288x32xf32>
    %c0_65 = arith.constant 0 : index
    %c0_66 = arith.constant 0 : index
    %c0_67 = arith.constant 0 : index
    %113 = vector.load %arg5[%c0_65, %c0_66, %c0_67] : memref<1x288x64xf32, #tpu.memory_space<vmem>>, vector<1x288x32xf32>
    %114 = vector.shape_cast %113 : vector<1x288x32xf32> to vector<288x32xf32>
    %115 = vector.shape_cast %110 : vector<288x32xf32> to vector<1x288x32xf32>
    tpu.vector_store %arg5[%c0_65, %c0_66, %c0_67], %115 {strides = array<i32>} : memref<1x288x64xf32, #tpu.memory_space<vmem>>, vector<1x288x32xf32>,
    %c0_68 = arith.constant 0 : index
    %c0_69 = arith.constant 0 : index
    %c32_70 = arith.constant 32 : index
    %116 = vector.load %arg5[%c0_68, %c0_69, %c32_70] : memref<1x288x64xf32, #tpu.memory_space<vmem>>, vector<1x288x32xf32>
    %117 = vector.shape_cast %116 : vector<1x288x32xf32> to vector<288x32xf32>
    %118 = vector.shape_cast %112 : vector<288x32xf32> to vector<1x288x32xf32>
    tpu.vector_store %arg5[%c0_68, %c0_69, %c32_70], %118 {strides = array<i32>} : memref<1x288x64xf32, #tpu.memory_space<vmem>>, vector<1x288x32xf32>,
    return
  }
  func.func @transform_0(%arg0: i32) -> (i32, i32, i32) {
    %c0_i32 = arith.constant 0 : i32
    %c0_i32_0 = arith.constant 0 : i32
    %c0_i32_1 = arith.constant 0 : i32
    return %arg0, %c0_i32, %c0_i32_0 : i32, i32, i32
  }
  func.func @transform_1(%arg0: i32) -> (i32, i32, i32) {
    %c0_i32 = arith.constant 0 : i32
    %c0_i32_0 = arith.constant 0 : i32
    %c0_i32_1 = arith.constant 0 : i32
    return %arg0, %c0_i32, %c0_i32_0 : i32, i32, i32
  }
  func.func @transform_2(%arg0: i32) -> (i32, i32, i32) {
    %c0_i32 = arith.constant 0 : i32
    %c0_i32_0 = arith.constant 0 : i32
    %c0_i32_1 = arith.constant 0 : i32
    %c0_i32_2 = arith.constant 0 : i32
    return %c0_i32, %c0_i32_0, %c0_i32_1 : i32, i32, i32
  }
  func.func @transform_3(%arg0: i32) -> (i32, i32) {
    %c0_i32 = arith.constant 0 : i32
    %c0_i32_0 = arith.constant 0 : i32
    %c0_i32_1 = arith.constant 0 : i32
    return %c0_i32, %c0_i32_0 : i32, i32
  }
  func.func @transform_4(%arg0: i32) -> (i32, i32, i32) {
    %c0_i32 = arith.constant 0 : i32
    %c0_i32_0 = arith.constant 0 : i32
    %c0_i32_1 = arith.constant 0 : i32
    return %arg0, %c0_i32, %c0_i32_0 : i32, i32, i32
  }
}

</mosaic_0001>

<llo_original>
// kernel: convlstm_cell_step.1
$region0: #{convlstm_cell_step.1}
  #allocation0 [shape = 'u32[]', space=smem, size = 0x4, offset = 0x4, fixed_abs, tag = 'smem constant byte address 0x4 - core index']
  #allocation1 [shape = 'u32[144,128]{1,0:T(1,128)}', space=vmem, size = 0x12000, scoped, tag = 'internal scratch']
  #allocation2 [shape = 'f32[328,36]{1,0:T(8,128)}', space=vmem, size = 0x29000, scoped, tag = 'scratch operand']
  %s0 = inlined_call_operand.vmem [shape: f32[2,288,4], index: 0, kind: input, shape index: {}]
  %s1 = inlined_call_operand.vmem [shape: f32[2,288,64], index: 1, kind: input, shape index: {}, may-alias: {1,4}]
  %s2 = inlined_call_operand.vmem [shape: bf16[9,36,128], index: 2, kind: input, shape index: {}]
  %s3 = inlined_call_operand.vmem [shape: f32[1,128], index: 3, kind: input, shape index: {}]
  %s4 = inlined_call_operand.vmem [shape: f32[2,288,64], index: 4, kind: output, shape index: {}, may-alias: {1,4}]
  %s5 = sld [smem:[#allocation0]]
  $region49: #{convlstm_cell_step.1} parent=0
    _
  %s7 = ssub.s32 1, %s5
  %s8 = scalar_select 0, %s7, %s5
  loop: start=0, step=1, limit=4
  $region2: #{convlstm_cell_step.1} parent=0 // loop_pre_header
    _
  $region3: #{convlstm_cell_step.1} parent=0 // loop_header
    %s10 = sphi 0, %s14
    %p11 = scmp.ge.s32.totalorder %s10, 4
    %s20 = sphi 0, %s22
    %s23 = sphi 0, %s20
    %s24 = sphi 0, %s23
    %s40 = sphi 0, %s24
    %s46 = sphi 0, %s48
    %s49 = sphi 0, %s46
    %s50 = sphi 0, %s49
    %s66 = sphi 0, %s50
    %s70 = sphi 0, %s70
    %s72 = sphi 0, %s70
    %s73 = sphi 0, %s72
    %s87 = sphi 0, %s73
    %s91 = sphi 0, %s91
    %s93 = sphi 0, %s91
    %s94 = sphi 0, %s93
    %s108 = sphi 0, %s94
    %s114 = sphi 0, %s116
    %s117 = sphi 0, %s114
    %s118 = sphi 0, %s117
    %s134 = sphi 0, %s118
  $region4: #{convlstm_cell_step.1} parent=0 // loop_header_branch
    %13 = sbr.rel (%p11) target = $region8
  $region5: #{convlstm_cell_step.1} parent=0 // loop_body
    %s15 = ssub.s32 %s10, 1
    %s16 = ssub.s32 %s10, 2
    %s17 = sadd.s32 %s10, 1
    %s18 = ssub.s32 %s10, %s17
    %p19 = scmp.eq.s32.totalorder %s18, 0
    %s21 = sadd.s32 %s20, 1
    %s22 = scalar_select %p19, %s20, %s21
    %p25 = pneg %p19
    %p26 = scmp.eq.s32.totalorder %s10, 1
    %p27 = por %p25, %p26
    %p28 = scmp.ne.s32.totalorder %s20, %s23
    %p29 = scmp.eq.s32.totalorder %s10, 0
    %p30 = por %p28, %p29
    %p31 = scmp.ne.s32.totalorder %s20, %s23
    %p32 = scmp.eq.s32.totalorder %s15, 1
    %p33 = por %p31, %p32
    %p34 = scmp.ne.s32.totalorder %s23, %s24
    %p35 = scmp.eq.s32.totalorder %s15, 0
    %p36 = por %p34, %p35
    %p37 = scmp.ne.s32.totalorder %s23, %s24
    %p38 = scmp.eq.s32.totalorder %s16, 1
    %p39 = por %p37, %p38
    %p41 = scmp.ne.s32.totalorder %s24, %s40
    %p42 = scmp.eq.s32.totalorder %s16, 0
    %p43 = por %p41, %p42
    %s44 = ssub.s32 %s10, %s17
    %p45 = scmp.eq.s32.totalorder %s44, 0
    %s47 = sadd.s32 %s46, 1
    %s48 = scalar_select %p45, %s46, %s47
    %p51 = pneg %p45
    %p52 = scmp.eq.s32.totalorder %s10, 1
    %p53 = por %p51, %p52
    %p54 = scmp.ne.s32.totalorder %s46, %s49
    %p55 = scmp.eq.s32.totalorder %s10, 0
    %p56 = por %p54, %p55
    %p57 = scmp.ne.s32.totalorder %s46, %s49
    %p58 = scmp.eq.s32.totalorder %s15, 1
    %p59 = por %p57, %p58
    %p60 = scmp.ne.s32.totalorder %s49, %s50
    %p61 = scmp.eq.s32.totalorder %s15, 0
    %p62 = por %p60, %p61
    %p63 = scmp.ne.s32.totalorder %s49, %s50
    %p64 = scmp.eq.s32.totalorder %s16, 1
    %p65 = por %p63, %p64
    %p67 = scmp.ne.s32.totalorder %s50, %s66
    %p68 = scmp.eq.s32.totalorder %s16, 0
    %p69 = por %p67, %p68
    %s71 = sadd.s32 %s70, 1
    %p74 = scmp.eq.s32.totalorder %s10, 1
    %p75 = scmp.ne.s32.totalorder %s70, %s72
    %p76 = scmp.eq.s32.totalorder %s10, 0
    %p77 = por %p75, %p76
    %p78 = scmp.ne.s32.totalorder %s70, %s72
    %p79 = scmp.eq.s32.totalorder %s15, 1
    %p80 = por %p78, %p79
    %p81 = scmp.ne.s32.totalorder %s72, %s73
    %p82 = scmp.eq.s32.totalorder %s15, 0
    %p83 = por %p81, %p82
    %p84 = scmp.ne.s32.totalorder %s72, %s73
    %p85 = scmp.eq.s32.totalorder %s16, 1
    %p86 = por %p84, %p85
    %p88 = scmp.ne.s32.totalorder %s73, %s87
    %p89 = scmp.eq.s32.totalorder %s16, 0
    %p90 = por %p88, %p89
    %s92 = sadd.s32 %s91, 1
    %p95 = scmp.eq.s32.totalorder %s10, 1
    %p96 = scmp.ne.s32.totalorder %s91, %s93
    %p97 = scmp.eq.s32.totalorder %s10, 0
    %p98 = por %p96, %p97
    %p99 = scmp.ne.s32.totalorder %s91, %s93
    %p100 = scmp.eq.s32.totalorder %s15, 1
    %p101 = por %p99, %p100
    %p102 = scmp.ne.s32.totalorder %s93, %s94
    %p103 = scmp.eq.s32.totalorder %s15, 0
    %p104 = por %p102, %p103
    %p105 = scmp.ne.s32.totalorder %s93, %s94
    %p106 = scmp.eq.s32.totalorder %s16, 1
    %p107 = por %p105, %p106
    %p109 = scmp.ne.s32.totalorder %s94, %s108
    %p110 = scmp.eq.s32.totalorder %s16, 0
    %p111 = por %p109, %p110
    %s112 = ssub.s32 %s10, %s17
    %p113 = scmp.eq.s32.totalorder %s112, 0
    %s115 = sadd.s32 %s114, 1
    %s116 = scalar_select %p113, %s114, %s115
    %p119 = pneg %p113
    %p120 = scmp.eq.s32.totalorder %s10, 1
    %p121 = por %p119, %p120
    %p122 = scmp.ne.s32.totalorder %s114, %s117
    %p123 = scmp.eq.s32.totalorder %s10, 0
    %p124 = por %p122, %p123
    %p125 = scmp.ne.s32.totalorder %s114, %s117
    %p126 = scmp.eq.s32.totalorder %s15, 1
    %p127 = por %p125, %p126
    %p128 = scmp.ne.s32.totalorder %s117, %s118
    %p129 = scmp.eq.s32.totalorder %s15, 0
    %p130 = por %p128, %p129
    %p131 = scmp.ne.s32.totalorder %s117, %s118
    %p132 = scmp.eq.s32.totalorder %s16, 1
    %p133 = por %p131, %p132
    %p135 = scmp.ne.s32.totalorder %s118, %s134
    %p136 = scmp.eq.s32.totalorder %s16, 0
    %p137 = por %p135, %p136
    %p138 = scmp.le.s32.totalorder 1, %s10
    %p139 = scmp.lt.s32.totalorder %s10, 3
    %p140 = pnand %p138, %p139
    %p141 = pneg %p140
    // Predicated region
    $region9: #{convlstm_cell_step.1} parent=5 // pred_check
      _
    $region10: #{convlstm_cell_step.1} parent=5 // pred_check_branch
      %143 = sbr.rel (%p140) target = $region12
    $region11: #{convlstm_cell_step.1} parent=5 // pred_region
      %s144 = ssub.s32 %s10, 1
      // Predicated region
      $region13: #{convlstm_cell_step.1} parent=11 // pred_check
        %p145 = pneg %p83
      $region14: #{convlstm_cell_step.1} parent=11 // pred_check_branch
        %147 = sbr.rel (%p145) target = $region16
      $region15: #{convlstm_cell_step.1} parent=11 // pred_region
        _
      $region16: #{convlstm_cell_step.1} parent=11 // pred_fallthru
        _
      // Predicated region
      $region17: #{convlstm_cell_step.1} parent=11 // pred_check
        %p148 = pneg %p104
      $region18: #{convlstm_cell_step.1} parent=11 // pred_check_branch
        %150 = sbr.rel (%p148) target = $region20
      $region19: #{convlstm_cell_step.1} parent=11 // pred_region
        _
      $region20: #{convlstm_cell_step.1} parent=11 // pred_fallthru
        _
    $region12: #{convlstm_cell_step.1} parent=5 // pred_fallthru
      _
    %p151 = scmp.lt.s32.totalorder %s10, 2
    // Predicated region
    $region21: #{convlstm_cell_step.1} parent=5 // pred_check
      %p152 = pneg %p151
    $region22: #{convlstm_cell_step.1} parent=5 // pred_check_branch
      %154 = sbr.rel (%p152) target = $region24
    $region23: #{convlstm_cell_step.1} parent=5 // pred_region
      // Predicated region
      $region25: #{convlstm_cell_step.1} parent=23 // pred_check
        %p155 = pneg %p30
      $region26: #{convlstm_cell_step.1} parent=23 // pred_check_branch
        %157 = sbr.rel (%p155) target = $region28
      $region27: #{convlstm_cell_step.1} parent=23 // pred_region
        %p158 = scmp.lt.s32.totalorder %s10, 1
        %s159 = scalar_select %p158, %s10, 1
        %s160 = smul.addr %s159, 36
        %s161 = smul.addr %s160, 8
        %s162 = scalar_lea.vmem %s0, %s161
      $region28: #{convlstm_cell_step.1} parent=23 // pred_fallthru
        _
      // Predicated region
      $region29: #{convlstm_cell_step.1} parent=23 // pred_check
        %p163 = pneg %p56
      $region30: #{convlstm_cell_step.1} parent=23 // pred_check_branch
        %165 = sbr.rel (%p163) target = $region32
      $region31: #{convlstm_cell_step.1} parent=23 // pred_region
        %p166 = scmp.lt.s32.totalorder %s10, 1
        %s167 = scalar_select %p166, %s10, 1
        %s168 = smul.addr %s167, 36
        %s169 = smul.addr %s168, 8
        %s170 = scalar_lea.vmem %s1, %s169
      $region32: #{convlstm_cell_step.1} parent=23 // pred_fallthru
        _
    $region24: #{convlstm_cell_step.1} parent=5 // pred_fallthru
      _
    %p171 = scmp.le.s32.totalorder 1, %s10
    %p172 = scmp.lt.s32.totalorder %s10, 3
    %p173 = pnand %p171, %p172
    %p174 = pneg %p173
    // Predicated region
    $region33: #{convlstm_cell_step.1} parent=5 // pred_check
      _
    $region34: #{convlstm_cell_step.1} parent=5 // pred_check_branch
      %176 = sbr.rel (%p173) target = $region36
    $region35: #{convlstm_cell_step.1} parent=5 // pred_region
      %s177 = ssub.s32 %s10, 1
      %p178 = scmp.lt.s32.totalorder %s15, 1
      %s179 = scalar_select %p178, %s15, 1
      %s180 = smul.addr %s179, 36
      %s181 = smul.addr %s180, 8
      %s182 = scalar_lea.vmem %s0, %s181
      %p183 = pneg %p36
      %p184 = pneg %p33
      %p185 = scmp.lt.s32.totalorder %s15, 1
      %s186 = scalar_select %p185, %s15, 1
      %s187 = smul.addr %s186, 36
      %s188 = smul.addr %s187, 8
      %s189 = scalar_lea.vmem %s1, %s188
      %p190 = pneg %p62
      %p191 = pneg %p59
      %p192 = pneg %p83
      %p193 = pneg %p80
      %p194 = pneg %p104
      %p195 = pneg %p101
      %p196 = pneg %p130
      %p197 = pneg %p127
      %p198 = scmp.lt.s32.totalorder %s15, 1
      %s199 = scalar_select %p198, %s15, 1
      %s200 = smul.addr %s199, 36
      %s201 = smul.addr %s200, 8
      %s202 = scalar_lea.vmem %s4, %s201
      %p203 = scmp.lt.s32.totalorder %s15, 1
      %s204 = scalar_select %p203, %s15, 1
      %s205 = smul.addr %s204, 36
      %s206 = smul.addr %s205, 8
      %s207 = scalar_lea.vmem %s0, %s206
      %p208 = scmp.lt.s32.totalorder %s15, 1
      %s209 = scalar_select %p208, %s15, 1
      %s210 = smul.addr %s209, 36
      %s211 = smul.addr %s210, 8
      %s212 = scalar_lea.vmem %s1, %s211
      %p213 = scmp.lt.s32.totalorder %s15, 1
      %s214 = scalar_select %p213, %s15, 1
      %s215 = smul.addr %s214, 36
      %s216 = smul.addr %s215, 8
      %s217 = scalar_lea.vmem %s4, %s216
      %vm219 = vcmask 293888
      %220 = vst.msk [vmem:[#allocation2] sm:$0xff] %vm219, 0.0
      %221 = vst.msk [vmem:[#allocation2 + $0x8] sm:$0xff] %vm219, 0.0
      %vm222 = vcmask 288768
      %223 = vst.msk [vmem:[#allocation2 + $0x10] sm:$0x7] %vm222, 0.0
      %224 = vst.msk [vmem:[#allocation2 + $0x133] sm:$0xff] %vm219, 0.0
      %225 = vst.msk [vmem:[#allocation2 + $0x13b] sm:$0xff] %vm219, 0.0
      %vm226 = vcmask 290816
      %227 = vst.msk [vmem:[#allocation2 + $0x143] sm:$0x1f] %vm226, 0.0
      %v228 = vld [vmem:[%s207] sm:$0xff]
      %v229 = vld [vmem:[%s207 + $0x8] sm:$0xff]
      %v230 = vld [vmem:[%s207 + $0x10] sm:$0xff]
      %v231 = vld [vmem:[%s207 + $0x18] sm:$0xff]
      %v232 = vld [vmem:[%s207 + $0x20] sm:$0xff]
      %v233 = vld [vmem:[%s207 + $0x28] sm:$0xff]
      %v234 = vld [vmem:[%s207 + $0x30] sm:$0xff]
      %v235 = vld [vmem:[%s207 + $0x38] sm:$0xff]
      %v236 = vld [vmem:[%s207 + $0x40] sm:$0xff]
      %v237 = vld [vmem:[%s207 + $0x48] sm:$0xff]
      %v238 = vld [vmem:[%s207 + $0x50] sm:$0xff]
      %v239 = vld [vmem:[%s207 + $0x58] sm:$0xff]
      %v240 = vld [vmem:[%s207 + $0x60] sm:$0xff]
      %v241 = vld [vmem:[%s207 + $0x68] sm:$0xff]
      %v242 = vld [vmem:[%s207 + $0x70] sm:$0xff]
      %v243 = vld [vmem:[%s207 + $0x78] sm:$0xff]
      %v244 = vld [vmem:[%s207 + $0x80] sm:$0xff]
      %v245 = vld [vmem:[%s207 + $0x88] sm:$0xff]
      %v246 = vld [vmem:[%s207 + $0x90] sm:$0xff]
      %v247 = vld [vmem:[%s207 + $0x98] sm:$0xff]
      %v248 = vld [vmem:[%s207 + $0xa0] sm:$0xff]
      %v249 = vld [vmem:[%s207 + $0xa8] sm:$0xff]
      %v250 = vld [vmem:[%s207 + $0xb0] sm:$0xff]
      %v251 = vld [vmem:[%s207 + $0xb8] sm:$0xff]
      %v252 = vld [vmem:[%s207 + $0xc0] sm:$0xff]
      %v253 = vld [vmem:[%s207 + $0xc8] sm:$0xff]
      %v254 = vld [vmem:[%s207 + $0xd0] sm:$0xff]
      %v255 = vld [vmem:[%s207 + $0xd8] sm:$0xff]
      %v256 = vld [vmem:[%s207 + $0xe0] sm:$0xff]
      %v257 = vld [vmem:[%s207 + $0xe8] sm:$0xff]
      %v258 = vld [vmem:[%s207 + $0xf0] sm:$0xff]
      %v259 = vld [vmem:[%s207 + $0xf8] sm:$0xff]
      %v260 = vld [vmem:[%s207 + $0x100] sm:$0xff]
      %v261 = vld [vmem:[%s207 + $0x108] sm:$0xff]
      %v262 = vld [vmem:[%s207 + $0x110] sm:$0xff]
      %v263 = vld [vmem:[%s207 + $0x118] sm:$0xff]
      %vm264 = vcmask 31744
      %265 = vst.msk [vmem:[#allocation2 + $0x13] sm:$0xff] %vm264, %v228
      %266 = vst.msk [vmem:[#allocation2 + $0x1b] sm:$0xff] %vm264, %v229
      %267 = vst.msk [vmem:[#allocation2 + $0x23] sm:$0xff] %vm264, %v230
      %268 = vst.msk [vmem:[#allocation2 + $0x2b] sm:$0xff] %vm264, %v231
      %269 = vst.msk [vmem:[#allocation2 + $0x33] sm:$0xff] %vm264, %v232
      %270 = vst.msk [vmem:[#allocation2 + $0x3b] sm:$0xff] %vm264, %v233
      %271 = vst.msk [vmem:[#allocation2 + $0x43] sm:$0xff] %vm264, %v234
      %272 = vst.msk [vmem:[#allocation2 + $0x4b] sm:$0xff] %vm264, %v235
      %273 = vst.msk [vmem:[#allocation2 + $0x53] sm:$0xff] %vm264, %v236
      %274 = vst.msk [vmem:[#allocation2 + $0x5b] sm:$0xff] %vm264, %v237
      %275 = vst.msk [vmem:[#allocation2 + $0x63] sm:$0xff] %vm264, %v238
      %276 = vst.msk [vmem:[#allocation2 + $0x6b] sm:$0xff] %vm264, %v239
      %277 = vst.msk [vmem:[#allocation2 + $0x73] sm:$0xff] %vm264, %v240
      %278 = vst.msk [vmem:[#allocation2 + $0x7b] sm:$0xff] %vm264, %v241
      %279 = vst.msk [vmem:[#allocation2 + $0x83] sm:$0xff] %vm264, %v242
      %280 = vst.msk [vmem:[#allocation2 + $0x8b] sm:$0xff] %vm264, %v243
      %281 = vst.msk [vmem:[#allocation2 + $0x93] sm:$0xff] %vm264, %v244
      %282 = vst.msk [vmem:[#allocation2 + $0x9b] sm:$0xff] %vm264, %v245
      %283 = vst.msk [vmem:[#allocation2 + $0xa3] sm:$0xff] %vm264, %v246
      %284 = vst.msk [vmem:[#allocation2 + $0xab] sm:$0xff] %vm264, %v247
      %285 = vst.msk [vmem:[#allocation2 + $0xb3] sm:$0xff] %vm264, %v248
      %286 = vst.msk [vmem:[#allocation2 + $0xbb] sm:$0xff] %vm264, %v249
      %287 = vst.msk [vmem:[#allocation2 + $0xc3] sm:$0xff] %vm264, %v250
      %288 = vst.msk [vmem:[#allocation2 + $0xcb] sm:$0xff] %vm264, %v251
      %289 = vst.msk [vmem:[#allocation2 + $0xd3] sm:$0xff] %vm264, %v252
      %290 = vst.msk [vmem:[#allocation2 + $0xdb] sm:$0xff] %vm264, %v253
      %291 = vst.msk [vmem:[#allocation2 + $0xe3] sm:$0xff] %vm264, %v254
      %292 = vst.msk [vmem:[#allocation2 + $0xeb] sm:$0xff] %vm264, %v255
      %293 = vst.msk [vmem:[#allocation2 + $0xf3] sm:$0xff] %vm264, %v256
      %294 = vst.msk [vmem:[#allocation2 + $0xfb] sm:$0xff] %vm264, %v257
      %295 = vst.msk [vmem:[#allocation2 + $0x103] sm:$0xff] %vm264, %v258
      %296 = vst.msk [vmem:[#allocation2 + $0x10b] sm:$0xff] %vm264, %v259
      %297 = vst.msk [vmem:[#allocation2 + $0x113] sm:$0xff] %vm264, %v260
      %298 = vst.msk [vmem:[#allocation2 + $0x11b] sm:$0xff] %vm264, %v261
      %299 = vst.msk [vmem:[#allocation2 + $0x123] sm:$0xff] %vm264, %v262
      %300 = vst.msk [vmem:[#allocation2 + $0x12b] sm:$0xff] %vm264, %v263
      %v301 = vld [vmem:[%s212] sm:$0xff]
      %v302 = vld [vmem:[%s212 + $0x8] sm:$0xff]
      %v303 = vld [vmem:[%s212 + $0x10] sm:$0xff]
      %v304 = vld [vmem:[%s212 + $0x18] sm:$0xff]
      %v305 = vld [vmem:[%s212 + $0x20] sm:$0xff]
      %v306 = vld [vmem:[%s212 + $0x28] sm:$0xff]
      %v307 = vld [vmem:[%s212 + $0x30] sm:$0xff]
      %v308 = vld [vmem:[%s212 + $0x38] sm:$0xff]
      %v309 = vld [vmem:[%s212 + $0x40] sm:$0xff]
      %v310 = vld [vmem:[%s212 + $0x48] sm:$0xff]
      %v311 = vld [vmem:[%s212 + $0x50] sm:$0xff]
      %v312 = vld [vmem:[%s212 + $0x58] sm:$0xff]
      %v313 = vld [vmem:[%s212 + $0x60] sm:$0xff]
      %v314 = vld [vmem:[%s212 + $0x68] sm:$0xff]
      %v315 = vld [vmem:[%s212 + $0x70] sm:$0xff]
      %v316 = vld [vmem:[%s212 + $0x78] sm:$0xff]
      %v317 = vld [vmem:[%s212 + $0x80] sm:$0xff]
      %v318 = vld [vmem:[%s212 + $0x88] sm:$0xff]
      %v319 = vld [vmem:[%s212 + $0x90] sm:$0xff]
      %v320 = vld [vmem:[%s212 + $0x98] sm:$0xff]
      %v321 = vld [vmem:[%s212 + $0xa0] sm:$0xff]
      %v322 = vld [vmem:[%s212 + $0xa8] sm:$0xff]
      %v323 = vld [vmem:[%s212 + $0xb0] sm:$0xff]
      %v324 = vld [vmem:[%s212 + $0xb8] sm:$0xff]
      %v325 = vld [vmem:[%s212 + $0xc0] sm:$0xff]
      %v326 = vld [vmem:[%s212 + $0xc8] sm:$0xff]
      %v327 = vld [vmem:[%s212 + $0xd0] sm:$0xff]
      %v328 = vld [vmem:[%s212 + $0xd8] sm:$0xff]
      %v329 = vld [vmem:[%s212 + $0xe0] sm:$0xff]
      %v330 = vld [vmem:[%s212 + $0xe8] sm:$0xff]
      %v331 = vld [vmem:[%s212 + $0xf0] sm:$0xff]
      %v332 = vld [vmem:[%s212 + $0xf8] sm:$0xff]
      %v333 = vld [vmem:[%s212 + $0x100] sm:$0xff]
      %v334 = vld [vmem:[%s212 + $0x108] sm:$0xff]
      %v335 = vld [vmem:[%s212 + $0x110] sm:$0xff]
      %v336 = vld [vmem:[%s212 + $0x118] sm:$0xff]
      %373 = vrot.lane.b32.xlu0 %v301, 4
      %v374 = vpop.permute.xlu0 %373
      %375 = vrot.lane.b32.xlu0 %v302, 4
      %v376 = vpop.permute.xlu0 %375
      %377 = vrot.lane.b32.xlu0 %v303, 4
      %v378 = vpop.permute.xlu0 %377
      %379 = vrot.lane.b32.xlu0 %v304, 4
      %v380 = vpop.permute.xlu0 %379
      %381 = vrot.lane.b32.xlu0 %v305, 4
      %v382 = vpop.permute.xlu0 %381
      %383 = vrot.lane.b32.xlu0 %v306, 4
      %v384 = vpop.permute.xlu0 %383
      %385 = vrot.lane.b32.xlu0 %v307, 4
      %v386 = vpop.permute.xlu0 %385
      %387 = vrot.lane.b32.xlu0 %v308, 4
      %v388 = vpop.permute.xlu0 %387
      %389 = vrot.lane.b32.xlu0 %v309, 4
      %v390 = vpop.permute.xlu0 %389
      %391 = vrot.lane.b32.xlu0 %v310, 4
      %v392 = vpop.permute.xlu0 %391
      %393 = vrot.lane.b32.xlu0 %v311, 4
      %v394 = vpop.permute.xlu0 %393
      %395 = vrot.lane.b32.xlu0 %v312, 4
      %v396 = vpop.permute.xlu0 %395
      %397 = vrot.lane.b32.xlu0 %v313, 4
      %v398 = vpop.permute.xlu0 %397
      %399 = vrot.lane.b32.xlu0 %v314, 4
      %v400 = vpop.permute.xlu0 %399
      %401 = vrot.lane.b32.xlu0 %v315, 4
      %v402 = vpop.permute.xlu0 %401
      %403 = vrot.lane.b32.xlu0 %v316, 4
      %v404 = vpop.permute.xlu0 %403
      %405 = vrot.lane.b32.xlu0 %v317, 4
      %v406 = vpop.permute.xlu0 %405
      %407 = vrot.lane.b32.xlu0 %v318, 4
      %v408 = vpop.permute.xlu0 %407
      %409 = vrot.lane.b32.xlu0 %v319, 4
      %v410 = vpop.permute.xlu0 %409
      %411 = vrot.lane.b32.xlu0 %v320, 4
      %v412 = vpop.permute.xlu0 %411
      %413 = vrot.lane.b32.xlu0 %v321, 4
      %v414 = vpop.permute.xlu0 %413
      %415 = vrot.lane.b32.xlu0 %v322, 4
      %v416 = vpop.permute.xlu0 %415
      %417 = vrot.lane.b32.xlu0 %v323, 4
      %v418 = vpop.permute.xlu0 %417
      %419 = vrot.lane.b32.xlu0 %v324, 4
      %v420 = vpop.permute.xlu0 %419
      %421 = vrot.lane.b32.xlu0 %v325, 4
      %v422 = vpop.permute.xlu0 %421
      %423 = vrot.lane.b32.xlu0 %v326, 4
      %v424 = vpop.permute.xlu0 %423
      %425 = vrot.lane.b32.xlu0 %v327, 4
      %v426 = vpop.permute.xlu0 %425
      %427 = vrot.lane.b32.xlu0 %v328, 4
      %v428 = vpop.permute.xlu0 %427
      %429 = vrot.lane.b32.xlu0 %v329, 4
      %v430 = vpop.permute.xlu0 %429
      %431 = vrot.lane.b32.xlu0 %v330, 4
      %v432 = vpop.permute.xlu0 %431
      %433 = vrot.lane.b32.xlu0 %v331, 4
      %v434 = vpop.permute.xlu0 %433
      %435 = vrot.lane.b32.xlu0 %v332, 4
      %v436 = vpop.permute.xlu0 %435
      %437 = vrot.lane.b32.xlu0 %v333, 4
      %v438 = vpop.permute.xlu0 %437
      %439 = vrot.lane.b32.xlu0 %v334, 4
      %v440 = vpop.permute.xlu0 %439
      %441 = vrot.lane.b32.xlu0 %v335, 4
      %v442 = vpop.permute.xlu0 %441
      %443 = vrot.lane.b32.xlu0 %v336, 4
      %v444 = vpop.permute.xlu0 %443
      %vm481 = vcmask 293920
      %482 = vst.msk [vmem:[#allocation2 + $0x13] sm:$0xff] %vm481, %v374
      %483 = vst.msk [vmem:[#allocation2 + $0x1b] sm:$0xff] %vm481, %v376
      %484 = vst.msk [vmem:[#allocation2 + $0x23] sm:$0xff] %vm481, %v378
      %485 = vst.msk [vmem:[#allocation2 + $0x2b] sm:$0xff] %vm481, %v380
      %486 = vst.msk [vmem:[#allocation2 + $0x33] sm:$0xff] %vm481, %v382
      %487 = vst.msk [vmem:[#allocation2 + $0x3b] sm:$0xff] %vm481, %v384
      %488 = vst.msk [vmem:[#allocation2 + $0x43] sm:$0xff] %vm481, %v386
      %489 = vst.msk [vmem:[#allocation2 + $0x4b] sm:$0xff] %vm481, %v388
      %490 = vst.msk [vmem:[#allocation2 + $0x53] sm:$0xff] %vm481, %v390
      %491 = vst.msk [vmem:[#allocation2 + $0x5b] sm:$0xff] %vm481, %v392
      %492 = vst.msk [vmem:[#allocation2 + $0x63] sm:$0xff] %vm481, %v394
      %493 = vst.msk [vmem:[#allocation2 + $0x6b] sm:$0xff] %vm481, %v396
      %494 = vst.msk [vmem:[#allocation2 + $0x73] sm:$0xff] %vm481, %v398
      %495 = vst.msk [vmem:[#allocation2 + $0x7b] sm:$0xff] %vm481, %v400
      %496 = vst.msk [vmem:[#allocation2 + $0x83] sm:$0xff] %vm481, %v402
      %497 = vst.msk [vmem:[#allocation2 + $0x8b] sm:$0xff] %vm481, %v404
      %498 = vst.msk [vmem:[#allocation2 + $0x93] sm:$0xff] %vm481, %v406
      %499 = vst.msk [vmem:[#allocation2 + $0x9b] sm:$0xff] %vm481, %v408
      %500 = vst.msk [vmem:[#allocation2 + $0xa3] sm:$0xff] %vm481, %v410
      %501 = vst.msk [vmem:[#allocation2 + $0xab] sm:$0xff] %vm481, %v412
      %502 = vst.msk [vmem:[#allocation2 + $0xb3] sm:$0xff] %vm481, %v414
      %503 = vst.msk [vmem:[#allocation2 + $0xbb] sm:$0xff] %vm481, %v416
      %504 = vst.msk [vmem:[#allocation2 + $0xc3] sm:$0xff] %vm481, %v418
      %505 = vst.msk [vmem:[#allocation2 + $0xcb] sm:$0xff] %vm481, %v420
      %506 = vst.msk [vmem:[#allocation2 + $0xd3] sm:$0xff] %vm481, %v422
      %507 = vst.msk [vmem:[#allocation2 + $0xdb] sm:$0xff] %vm481, %v424
      %508 = vst.msk [vmem:[#allocation2 + $0xe3] sm:$0xff] %vm481, %v426
      %509 = vst.msk [vmem:[#allocation2 + $0xeb] sm:$0xff] %vm481, %v428
      %510 = vst.msk [vmem:[#allocation2 + $0xf3] sm:$0xff] %vm481, %v430
      %511 = vst.msk [vmem:[#allocation2 + $0xfb] sm:$0xff] %vm481, %v432
      %512 = vst.msk [vmem:[#allocation2 + $0x103] sm:$0xff] %vm481, %v434
      %513 = vst.msk [vmem:[#allocation2 + $0x10b] sm:$0xff] %vm481, %v436
      %514 = vst.msk [vmem:[#allocation2 + $0x113] sm:$0xff] %vm481, %v438
      %515 = vst.msk [vmem:[#allocation2 + $0x11b] sm:$0xff] %vm481, %v440
      %516 = vst.msk [vmem:[#allocation2 + $0x123] sm:$0xff] %vm481, %v442
      %517 = vst.msk [vmem:[#allocation2 + $0x12b] sm:$0xff] %vm481, %v444
      %v518 = vld [vmem:[#allocation2] sm:$0xff]
      %v519 = vld [vmem:[#allocation2 + $0x8] sm:$0xff]
      %v520 = vld [vmem:[#allocation2 + $0x10] sm:$0xff]
      %v521 = vld [vmem:[#allocation2 + $0x18] sm:$0xff]
      %v522 = vld [vmem:[#allocation2 + $0x20] sm:$0xff]
      %v523 = vld [vmem:[#allocation2 + $0x28] sm:$0xff]
      %v524 = vld [vmem:[#allocation2 + $0x30] sm:$0xff]
      %v525 = vld [vmem:[#allocation2 + $0x38] sm:$0xff]
      %v526 = vld [vmem:[#allocation2 + $0x40] sm:$0xff]
      %v527 = vld [vmem:[#allocation2 + $0x48] sm:$0xff]
      %v528 = vld [vmem:[#allocation2 + $0x50] sm:$0xff]
      %v529 = vld [vmem:[#allocation2 + $0x58] sm:$0xff]
      %v530 = vld [vmem:[#allocation2 + $0x60] sm:$0xff]
      %v531 = vld [vmem:[#allocation2 + $0x68] sm:$0xff]
      %v532 = vld [vmem:[#allocation2 + $0x70] sm:$0xff]
      %v533 = vld [vmem:[#allocation2 + $0x78] sm:$0xff]
      %v534 = vld [vmem:[#allocation2 + $0x80] sm:$0xff]
      %v535 = vld [vmem:[#allocation2 + $0x88] sm:$0xff]
      %v536 = vld [vmem:[#allocation2 + $0x90] sm:$0xff]
      %v537 = vld [vmem:[#allocation2 + $0x98] sm:$0xff]
      %v538 = vld [vmem:[#allocation2 + $0xa0] sm:$0xff]
      %v539 = vld [vmem:[#allocation2 + $0xa8] sm:$0xff]
      %v540 = vld [vmem:[#allocation2 + $0xb0] sm:$0xff]
      %v541 = vld [vmem:[#allocation2 + $0xb8] sm:$0xff]
      %v542 = vld [vmem:[#allocation2 + $0xc0] sm:$0xff]
      %v543 = vld [vmem:[#allocation2 + $0xc8] sm:$0xff]
      %v544 = vld [vmem:[#allocation2 + $0xd0] sm:$0xff]
      %v545 = vld [vmem:[#allocation2 + $0xd8] sm:$0xff]
      %v546 = vld [vmem:[#allocation2 + $0xe0] sm:$0xff]
      %v547 = vld [vmem:[#allocation2 + $0xe8] sm:$0xff]
      %v548 = vld [vmem:[#allocation2 + $0xf0] sm:$0xff]
      %v549 = vld [vmem:[#allocation2 + $0xf8] sm:$0xff]
      %v550 = vld [vmem:[#allocation2 + $0x100] sm:$0xff]
      %v551 = vld [vmem:[#allocation2 + $0x108] sm:$0xff]
      %v552 = vld [vmem:[#allocation2 + $0x110] sm:$0xff]
      %v553 = vld [vmem:[#allocation2 + $0x118] sm:$0xff]
      %v554 = vpack.c.bf16 %v519, %v518
      %v555 = vpack.c.bf16 %v521, %v520
      %v556 = vpack.c.bf16 %v523, %v522
      %v557 = vpack.c.bf16 %v525, %v524
      %v558 = vpack.c.bf16 %v527, %v526
      %v559 = vpack.c.bf16 %v529, %v528
      %v560 = vpack.c.bf16 %v531, %v530
      %v561 = vpack.c.bf16 %v533, %v532
      %v562 = vpack.c.bf16 %v535, %v534
      %v563 = vpack.c.bf16 %v537, %v536
      %v564 = vpack.c.bf16 %v539, %v538
      %v565 = vpack.c.bf16 %v541, %v540
      %v566 = vpack.c.bf16 %v543, %v542
      %v567 = vpack.c.bf16 %v545, %v544
      %v568 = vpack.c.bf16 %v547, %v546
      %v569 = vpack.c.bf16 %v549, %v548
      %v570 = vpack.c.bf16 %v551, %v550
      %v571 = vpack.c.bf16 %v553, %v552
      %v572 = vld [vmem:[%s2] sm:$0xf]
      %v573 = vld [vmem:[%s2 + $0x4] sm:$0xf]
      %v574 = vld [vmem:[%s2 + $0x8] sm:$0xf]
      %v575 = vld [vmem:[%s2 + $0xc] sm:$0xf]
      %v576 = vld [vmem:[%s2 + $0x10] sm:$0x3]
      %v577 = vld [vmem:[#allocation2 + $0x1] sm:$0xff]
      %v578 = vld [vmem:[#allocation2 + $0x9] sm:$0xff]
      %v579 = vld [vmem:[#allocation2 + $0x11] sm:$0xff]
      %v580 = vld [vmem:[#allocation2 + $0x19] sm:$0xff]
      %v581 = vld [vmem:[#allocation2 + $0x21] sm:$0xff]
      %v582 = vld [vmem:[#allocation2 + $0x29] sm:$0xff]
      %v583 = vld [vmem:[#allocation2 + $0x31] sm:$0xff]
      %v584 = vld [vmem:[#allocation2 + $0x39] sm:$0xff]
      %v585 = vld [vmem:[#allocation2 + $0x41] sm:$0xff]
      %v586 = vld [vmem:[#allocation2 + $0x49] sm:$0xff]
      %v587 = vld [vmem:[#allocation2 + $0x51] sm:$0xff]
      %v588 = vld [vmem:[#allocation2 + $0x59] sm:$0xff]
      %v589 = vld [vmem:[#allocation2 + $0x61] sm:$0xff]
      %v590 = vld [vmem:[#allocation2 + $0x69] sm:$0xff]
      %v591 = vld [vmem:[#allocation2 + $0x71] sm:$0xff]
      %v592 = vld [vmem:[#allocation2 + $0x79] sm:$0xff]
      %v593 = vld [vmem:[#allocation2 + $0x81] sm:$0xff]
      %v594 = vld [vmem:[#allocation2 + $0x89] sm:$0xff]
      %v595 = vld [vmem:[#allocation2 + $0x91] sm:$0xff]
      %v596 = vld [vmem:[#allocation2 + $0x99] sm:$0xff]
      %v597 = vld [vmem:[#allocation2 + $0xa1] sm:$0xff]
      %v598 = vld [vmem:[#allocation2 + $0xa9] sm:$0xff]
      %v599 = vld [vmem:[#allocation2 + $0xb1] sm:$0xff]
      %v600 = vld [vmem:[#allocation2 + $0xb9] sm:$0xff]
      %v601 = vld [vmem:[#allocation2 + $0xc1] sm:$0xff]
      %v602 = vld [vmem:[#allocation2 + $0xc9] sm:$0xff]
      %v603 = vld [vmem:[#allocation2 + $0xd1] sm:$0xff]
      %v604 = vld [vmem:[#allocation2 + $0xd9] sm:$0xff]
      %v605 = vld [vmem:[#allocation2 + $0xe1] sm:$0xff]
      %v606 = vld [vmem:[#allocation2 + $0xe9] sm:$0xff]
      %v607 = vld [vmem:[#allocation2 + $0xf1] sm:$0xff]
      %v608 = vld [vmem:[#allocation2 + $0xf9] sm:$0xff]
      %v609 = vld [vmem:[#allocation2 + $0x101] sm:$0xff]
      %v610 = vld [vmem:[#allocation2 + $0x109] sm:$0xff]
      %v611 = vld [vmem:[#allocation2 + $0x111] sm:$0xff]
      %v612 = vld [vmem:[#allocation2 + $0x119] sm:$0xff]
      %v613 = vpack.c.bf16 %v578, %v577
      %v614 = vpack.c.bf16 %v580, %v579
      %v615 = vpack.c.bf16 %v582, %v581
      %v616 = vpack.c.bf16 %v584, %v583
      %v617 = vpack.c.bf16 %v586, %v585
      %v618 = vpack.c.bf16 %v588, %v587
      %v619 = vpack.c.bf16 %v590, %v589
      %v620 = vpack.c.bf16 %v592, %v591
      %v621 = vpack.c.bf16 %v594, %v593
      %v622 = vpack.c.bf16 %v596, %v595
      %v623 = vpack.c.bf16 %v598, %v597
      %v624 = vpack.c.bf16 %v600, %v599
      %v625 = vpack.c.bf16 %v602, %v601
      %v626 = vpack.c.bf16 %v604, %v603
      %v627 = vpack.c.bf16 %v606, %v605
      %v628 = vpack.c.bf16 %v608, %v607
      %v629 = vpack.c.bf16 %v610, %v609
      %v630 = vpack.c.bf16 %v612, %v611
      %s631 = scalar_lea.vmem %s2, 20
      %v632 = vld [vmem:[%s631] sm:$0xf]
      %v633 = vld [vmem:[%s631 + $0x4] sm:$0xf]
      %v634 = vld [vmem:[%s631 + $0x8] sm:$0xf]
      %v635 = vld [vmem:[%s631 + $0xc] sm:$0xf]
      %v636 = vld [vmem:[%s631 + $0x10] sm:$0x3]
      %v642 = vunpack.c.l.b16 %v632
      %v643 = vunpack.c.l.b16 %v633
      %v644 = vunpack.c.l.b16 %v634
      %v645 = vunpack.c.l.b16 %v635
      %v646 = vunpack.c.l.b16 %v636
      %v647 = vpack.c.b16 %v643, %v642
      %v648 = vpack.c.b16 %v645, %v644
      %v649 = vpack.c.b16 %v646, %v646
      %v653 = vsel %vm219, %v613, 0
      %v656 = vsel %vm219, %v614, 0
      %v659 = vsel %vm219, %v615, 0
      %v662 = vsel %vm219, %v616, 0
      %v665 = vsel %vm219, %v617, 0
      %v668 = vsel %vm219, %v618, 0
      %v671 = vsel %vm219, %v619, 0
      %v674 = vsel %vm219, %v620, 0
      %v677 = vsel %vm219, %v621, 0
      %v680 = vsel %vm219, %v622, 0
      %v683 = vsel %vm219, %v623, 0
      %v686 = vsel %vm219, %v624, 0
      %v689 = vsel %vm219, %v625, 0
      %v692 = vsel %vm219, %v626, 0
      %v695 = vsel %vm219, %v627, 0
      %v698 = vsel %vm219, %v628, 0
      %v701 = vsel %vm219, %v629, 0
      %v704 = vsel %vm219, %v630, 0
      %vm706 = vcmask 1041408
      %v708 = vsel %vm706, %v649, 0
      %710 = vmatprep.subr.bf16.mxu0 0
      %711 = vmatpush1.bf16.msra.mxu0 0
      %712 = vmatprep.subr.bf16.mxu0 0
      %713 = vmatpush1.bf16.msra.mxu0 0
      %714 = vmatprep.subr.bf16.mxu0 0
      %715 = vmatpush1.bf16.msra.mxu0 0
      %716 = vmatprep.subr.bf16.mxu0 0
      %717 = vmatpush1.bf16.msra.mxu0 0
      %718 = vmatprep.subr.bf16.mxu0 0
      %719 = vmatpush1.bf16.msra.mxu0 0
      %720 = vmatprep.subr.bf16.mxu0 0
      %721 = vmatpush1.bf16.msra.mxu0 %v708
      %722 = vmatprep.subr.bf16.mxu0 0
      %723 = vmatpush1.bf16.msra.mxu0 %v648
      %724 = vmatprep.subr.bf16.mxu0 0
      %725 = vmatpush1.bf16.msra.mxu0 %v647
      %726 = vmatprep.subr.bf16.mxu0 0
      %727 = vmatpush2.bf16.msra.mxu0 0
      %728 = vmatprep.subr.bf16.mxu0 0
      %729 = vmatpush2.bf16.msra.mxu0 0
      %730 = vmatprep.subr.bf16.mxu0 0
      %731 = vmatpush2.bf16.msra.mxu0 0
      %732 = vmatprep.subr.bf16.mxu0 0
      %733 = vmatpush2.bf16.msra.mxu0 0
      %734 = vmatprep.subr.bf16.mxu0 0
      %735 = vmatpush2.bf16.msra.mxu0 0
      %736 = vmatprep.subr.bf16.mxu0 0
      %737 = vmatpush2.bf16.msra.mxu0 0
      %738 = vmatprep.subr.bf16.mxu0 0
      %739 = vmatpush2.bf16.msra.mxu0 0
      %740 = vmatprep.subr.bf16.mxu0 0
      %741 = vmatpush2.bf16.msra.mxu0 0
      %742 = vmatprep.mubr.bf16.mxu0 0
      %743 = vmatmul.mubr.bf16.gmra.mxu0 %v653
      %v744 = vpop.f32.mrf.mxu0
      %v745 = vadd.f32 0.0, %v744
      %v746 = vpop.f32.mrf.mxu0
      %v747 = vpop.f32.mrf.mxu0
      %v748 = vadd.f32 0.0, %v747
      %v749 = vpop.f32.mrf.mxu0
      %750 = vmatprep.mubr.bf16.mxu0 0
      %751 = vmatmul.mubr.bf16.gmra.mxu0 %v656
      %v752 = vpop.f32.mrf.mxu0
      %v753 = vadd.f32 0.0, %v752
      %v754 = vpop.f32.mrf.mxu0
      %v755 = vpop.f32.mrf.mxu0
      %v756 = vadd.f32 0.0, %v755
      %v757 = vpop.f32.mrf.mxu0
      %758 = vmatprep.mubr.bf16.mxu0 0
      %759 = vmatmul.mubr.bf16.gmra.mxu0 %v659
      %v760 = vpop.f32.mrf.mxu0
      %v761 = vadd.f32 0.0, %v760
      %v762 = vpop.f32.mrf.mxu0
      %v763 = vpop.f32.mrf.mxu0
      %v764 = vadd.f32 0.0, %v763
      %v765 = vpop.f32.mrf.mxu0
      %766 = vmatprep.mubr.bf16.mxu0 0
      %767 = vmatmul.mubr.bf16.gmra.mxu0 %v662
      %v768 = vpop.f32.mrf.mxu0
      %v769 = vadd.f32 0.0, %v768
      %v770 = vpop.f32.mrf.mxu0
      %v771 = vpop.f32.mrf.mxu0
      %v772 = vadd.f32 0.0, %v771
      %v773 = vpop.f32.mrf.mxu0
      %774 = vmatprep.mubr.bf16.mxu0 0
      %775 = vmatmul.mubr.bf16.gmra.mxu0 %v665
      %v776 = vpop.f32.mrf.mxu0
      %v777 = vadd.f32 0.0, %v776
      %v778 = vpop.f32.mrf.mxu0
      %v779 = vpop.f32.mrf.mxu0
      %v780 = vadd.f32 0.0, %v779
      %v781 = vpop.f32.mrf.mxu0
      %782 = vmatprep.mubr.bf16.mxu0 0
      %783 = vmatmul.mubr.bf16.gmra.mxu0 %v668
      %v784 = vpop.f32.mrf.mxu0
      %v785 = vadd.f32 0.0, %v784
      %v786 = vpop.f32.mrf.mxu0
      %v787 = vpop.f32.mrf.mxu0
      %v788 = vadd.f32 0.0, %v787
      %v789 = vpop.f32.mrf.mxu0
      %790 = vmatprep.mubr.bf16.mxu0 0
      %791 = vmatmul.mubr.bf16.gmra.mxu0 %v671
      %v792 = vpop.f32.mrf.mxu0
      %v793 = vadd.f32 0.0, %v792
      %v794 = vpop.f32.mrf.mxu0
      %v795 = vpop.f32.mrf.mxu0
      %v796 = vadd.f32 0.0, %v795
      %v797 = vpop.f32.mrf.mxu0
      %798 = vmatprep.mubr.bf16.mxu0 0
      %799 = vmatmul.mubr.bf16.gmra.mxu0 %v674
      %v800 = vpop.f32.mrf.mxu0
      %v801 = vadd.f32 0.0, %v800
      %v802 = vpop.f32.mrf.mxu0
      %v803 = vpop.f32.mrf.mxu0
      %v804 = vadd.f32 0.0, %v803
      %v805 = vpop.f32.mrf.mxu0
      %806 = vmatprep.mubr.bf16.mxu0 0
      %807 = vmatmul.mubr.bf16.gmra.mxu0 %v677
      %v808 = vpop.f32.mrf.mxu0
      %v809 = vadd.f32 0.0, %v808
      %v810 = vpop.f32.mrf.mxu0
      %v811 = vpop.f32.mrf.mxu0
      %v812 = vadd.f32 0.0, %v811
      %v813 = vpop.f32.mrf.mxu0
      %814 = vmatprep.mubr.bf16.mxu0 0
      %815 = vmatmul.mubr.bf16.gmra.mxu0 %v680
      %v816 = vpop.f32.mrf.mxu0
      %v817 = vadd.f32 0.0, %v816
      %v818 = vpop.f32.mrf.mxu0
      %v819 = vpop.f32.mrf.mxu0
      %v820 = vadd.f32 0.0, %v819
      %v821 = vpop.f32.mrf.mxu0
      %822 = vmatprep.mubr.bf16.mxu0 0
      %823 = vmatmul.mubr.bf16.gmra.mxu0 %v683
      %v824 = vpop.f32.mrf.mxu0
      %v825 = vadd.f32 0.0, %v824
      %v826 = vpop.f32.mrf.mxu0
      %v827 = vpop.f32.mrf.mxu0
      %v828 = vadd.f32 0.0, %v827
      %v829 = vpop.f32.mrf.mxu0
      %830 = vmatprep.mubr.bf16.mxu0 0
      %831 = vmatmul.mubr.bf16.gmra.mxu0 %v686
      %v832 = vpop.f32.mrf.mxu0
      %v833 = vadd.f32 0.0, %v832
      %v834 = vpop.f32.mrf.mxu0
      %v835 = vpop.f32.mrf.mxu0
      %v836 = vadd.f32 0.0, %v835
      %v837 = vpop.f32.mrf.mxu0
      %838 = vmatprep.mubr.bf16.mxu0 0
      %839 = vmatmul.mubr.bf16.gmra.mxu0 %v689
      %v840 = vpop.f32.mrf.mxu0
      %v841 = vadd.f32 0.0, %v840
      %v842 = vpop.f32.mrf.mxu0
      %v843 = vpop.f32.mrf.mxu0
      %v844 = vadd.f32 0.0, %v843
      %v845 = vpop.f32.mrf.mxu0
      %846 = vmatprep.mubr.bf16.mxu0 0
      %847 = vmatmul.mubr.bf16.gmra.mxu0 %v692
      %v848 = vpop.f32.mrf.mxu0
      %v849 = vadd.f32 0.0, %v848
      %v850 = vpop.f32.mrf.mxu0
      %v851 = vpop.f32.mrf.mxu0
      %v852 = vadd.f32 0.0, %v851
      %v853 = vpop.f32.mrf.mxu0
      %854 = vmatprep.mubr.bf16.mxu0 0
      %855 = vmatmul.mubr.bf16.gmra.mxu0 %v695
      %v856 = vpop.f32.mrf.mxu0
      %v857 = vadd.f32 0.0, %v856
      %v858 = vpop.f32.mrf.mxu0
      %v859 = vpop.f32.mrf.mxu0
      %v860 = vadd.f32 0.0, %v859
      %v861 = vpop.f32.mrf.mxu0
      %862 = vmatprep.mubr.bf16.mxu0 0
      %863 = vmatmul.mubr.bf16.gmra.mxu0 %v698
      %v864 = vpop.f32.mrf.mxu0
      %v865 = vadd.f32 0.0, %v864
      %v866 = vpop.f32.mrf.mxu0
      %v867 = vpop.f32.mrf.mxu0
      %v868 = vadd.f32 0.0, %v867
      %v869 = vpop.f32.mrf.mxu0
      %870 = vmatprep.mubr.bf16.mxu0 0
      %871 = vmatmul.mubr.bf16.gmra.mxu0 %v701
      %v872 = vpop.f32.mrf.mxu0
      %v873 = vadd.f32 0.0, %v872
      %v874 = vpop.f32.mrf.mxu0
      %v875 = vpop.f32.mrf.mxu0
      %v876 = vadd.f32 0.0, %v875
      %v877 = vpop.f32.mrf.mxu0
      %878 = vmatprep.mubr.bf16.mxu0 0
      %879 = vmatmul.mubr.bf16.gmra.mxu0 %v704
      %v880 = vpop.f32.mrf.mxu0
      %v881 = vadd.f32 0.0, %v880
      %v882 = vpop.f32.mrf.mxu0
      %v883 = vpop.f32.mrf.mxu0
      %v884 = vadd.f32 0.0, %v883
      %v885 = vpop.f32.mrf.mxu0
      %886 = vdwg.mxu0
      %v892 = vunpack.c.l.b16 %v572
      %v893 = vunpack.c.l.b16 %v573
      %v894 = vunpack.c.l.b16 %v574
      %v895 = vunpack.c.l.b16 %v575
      %v896 = vunpack.c.l.b16 %v576
      %v897 = vpack.c.b16 %v893, %v892
      %v898 = vpack.c.b16 %v895, %v894
      %v899 = vpack.c.b16 %v896, %v896
      %v903 = vsel %vm219, %v554, 0
      %v906 = vsel %vm219, %v555, 0
      %v909 = vsel %vm219, %v556, 0
      %v912 = vsel %vm219, %v557, 0
      %v915 = vsel %vm219, %v558, 0
      %v918 = vsel %vm219, %v559, 0
      %v921 = vsel %vm219, %v560, 0
      %v924 = vsel %vm219, %v561, 0
      %v927 = vsel %vm219, %v562, 0
      %v930 = vsel %vm219, %v563, 0
      %v933 = vsel %vm219, %v564, 0
      %v936 = vsel %vm219, %v565, 0
      %v939 = vsel %vm219, %v566, 0
      %v942 = vsel %vm219, %v567, 0
      %v945 = vsel %vm219, %v568, 0
      %v948 = vsel %vm219, %v569, 0
      %v951 = vsel %vm219, %v570, 0
      %v954 = vsel %vm219, %v571, 0
      %v957 = vsel %vm706, %v899, 0
      %959 = vmatprep.subr.bf16.mxu0 0
      %960 = vmatpush1.bf16.msra.mxu0 0
      %961 = vmatprep.subr.bf16.mxu0 0
      %962 = vmatpush1.bf16.msra.mxu0 0
      %963 = vmatprep.subr.bf16.mxu0 0
      %964 = vmatpush1.bf16.msra.mxu0 0
      %965 = vmatprep.subr.bf16.mxu0 0
      %966 = vmatpush1.bf16.msra.mxu0 0
      %967 = vmatprep.subr.bf16.mxu0 0
      %968 = vmatpush1.bf16.msra.mxu0 0
      %969 = vmatprep.subr.bf16.mxu0 0
      %970 = vmatpush1.bf16.msra.mxu0 %v957
      %971 = vmatprep.subr.bf16.mxu0 0
      %972 = vmatpush1.bf16.msra.mxu0 %v898
      %973 = vmatprep.subr.bf16.mxu0 0
      %974 = vmatpush1.bf16.msra.mxu0 %v897
      %975 = vmatprep.subr.bf16.mxu0 0
      %976 = vmatpush2.bf16.msra.mxu0 0
      %977 = vmatprep.subr.bf16.mxu0 0
      %978 = vmatpush2.bf16.msra.mxu0 0
      %979 = vmatprep.subr.bf16.mxu0 0
      %980 = vmatpush2.bf16.msra.mxu0 0
      %981 = vmatprep.subr.bf16.mxu0 0
      %982 = vmatpush2.bf16.msra.mxu0 0
      %983 = vmatprep.subr.bf16.mxu0 0
      %984 = vmatpush2.bf16.msra.mxu0 0
      %985 = vmatprep.subr.bf16.mxu0 0
      %986 = vmatpush2.bf16.msra.mxu0 0
      %987 = vmatprep.subr.bf16.mxu0 0
      %988 = vmatpush2.bf16.msra.mxu0 0
      %989 = vmatprep.subr.bf16.mxu0 0
      %990 = vmatpush2.bf16.msra.mxu0 0
      %991 = vmatprep.mubr.bf16.mxu0 0
      %992 = vmatmul.mubr.bf16.gmra.mxu0 %v903
      %v993 = vpop.f32.mrf.mxu0
      %v994 = vadd.f32 %v745, %v993
      %v995 = vpop.f32.mrf.mxu0
      %v996 = vpop.f32.mrf.mxu0
      %v997 = vadd.f32 %v748, %v996
      %v998 = vpop.f32.mrf.mxu0
      %999 = vmatprep.mubr.bf16.mxu0 0
      %1000 = vmatmul.mubr.bf16.gmra.mxu0 %v906
      %v1001 = vpop.f32.mrf.mxu0
      %v1002 = vadd.f32 %v753, %v1001
      %v1003 = vpop.f32.mrf.mxu0
      %v1004 = vpop.f32.mrf.mxu0
      %v1005 = vadd.f32 %v756, %v1004
      %v1006 = vpop.f32.mrf.mxu0
      %1007 = vmatprep.mubr.bf16.mxu0 0
      %1008 = vmatmul.mubr.bf16.gmra.mxu0 %v909
      %v1009 = vpop.f32.mrf.mxu0
      %v1010 = vadd.f32 %v761, %v1009
      %v1011 = vpop.f32.mrf.mxu0
      %v1012 = vpop.f32.mrf.mxu0
      %v1013 = vadd.f32 %v764, %v1012
      %v1014 = vpop.f32.mrf.mxu0
      %1015 = vmatprep.mubr.bf16.mxu0 0
      %1016 = vmatmul.mubr.bf16.gmra.mxu0 %v912
      %v1017 = vpop.f32.mrf.mxu0
      %v1018 = vadd.f32 %v769, %v1017
      %v1019 = vpop.f32.mrf.mxu0
      %v1020 = vpop.f32.mrf.mxu0
      %v1021 = vadd.f32 %v772, %v1020
      %v1022 = vpop.f32.mrf.mxu0
      %1023 = vmatprep.mubr.bf16.mxu0 0
      %1024 = vmatmul.mubr.bf16.gmra.mxu0 %v915
      %v1025 = vpop.f32.mrf.mxu0
      %v1026 = vadd.f32 %v777, %v1025
      %v1027 = vpop.f32.mrf.mxu0
      %v1028 = vpop.f32.mrf.mxu0
      %v1029 = vadd.f32 %v780, %v1028
      %v1030 = vpop.f32.mrf.mxu0
      %1031 = vmatprep.mubr.bf16.mxu0 0
      %1032 = vmatmul.mubr.bf16.gmra.mxu0 %v918
      %v1033 = vpop.f32.mrf.mxu0
      %v1034 = vadd.f32 %v785, %v1033
      %v1035 = vpop.f32.mrf.mxu0
      %v1036 = vpop.f32.mrf.mxu0
      %v1037 = vadd.f32 %v788, %v1036
      %v1038 = vpop.f32.mrf.mxu0
      %1039 = vmatprep.mubr.bf16.mxu0 0
      %1040 = vmatmul.mubr.bf16.gmra.mxu0 %v921
      %v1041 = vpop.f32.mrf.mxu0
      %v1042 = vadd.f32 %v793, %v1041
      %v1043 = vpop.f32.mrf.mxu0
      %v1044 = vpop.f32.mrf.mxu0
      %v1045 = vadd.f32 %v796, %v1044
      %v1046 = vpop.f32.mrf.mxu0
      %1047 = vmatprep.mubr.bf16.mxu0 0
      %1048 = vmatmul.mubr.bf16.gmra.mxu0 %v924
      %v1049 = vpop.f32.mrf.mxu0
      %v1050 = vadd.f32 %v801, %v1049
      %v1051 = vpop.f32.mrf.mxu0
      %v1052 = vpop.f32.mrf.mxu0
      %v1053 = vadd.f32 %v804, %v1052
      %v1054 = vpop.f32.mrf.mxu0
      %1055 = vmatprep.mubr.bf16.mxu0 0
      %1056 = vmatmul.mubr.bf16.gmra.mxu0 %v927
      %v1057 = vpop.f32.mrf.mxu0
      %v1058 = vadd.f32 %v809, %v1057
      %v1059 = vpop.f32.mrf.mxu0
      %v1060 = vpop.f32.mrf.mxu0
      %v1061 = vadd.f32 %v812, %v1060
      %v1062 = vpop.f32.mrf.mxu0
      %1063 = vmatprep.mubr.bf16.mxu0 0
      %1064 = vmatmul.mubr.bf16.gmra.mxu0 %v930
      %v1065 = vpop.f32.mrf.mxu0
      %v1066 = vadd.f32 %v817, %v1065
      %v1067 = vpop.f32.mrf.mxu0
      %v1068 = vpop.f32.mrf.mxu0
      %v1069 = vadd.f32 %v820, %v1068
      %v1070 = vpop.f32.mrf.mxu0
      %1071 = vmatprep.mubr.bf16.mxu0 0
      %1072 = vmatmul.mubr.bf16.gmra.mxu0 %v933
      %v1073 = vpop.f32.mrf.mxu0
      %v1074 = vadd.f32 %v825, %v1073
      %v1075 = vpop.f32.mrf.mxu0
      %v1076 = vpop.f32.mrf.mxu0
      %v1077 = vadd.f32 %v828, %v1076
      %v1078 = vpop.f32.mrf.mxu0
      %1079 = vmatprep.mubr.bf16.mxu0 0
      %1080 = vmatmul.mubr.bf16.gmra.mxu0 %v936
      %v1081 = vpop.f32.mrf.mxu0
      %v1082 = vadd.f32 %v833, %v1081
      %v1083 = vpop.f32.mrf.mxu0
      %v1084 = vpop.f32.mrf.mxu0
      %v1085 = vadd.f32 %v836, %v1084
      %v1086 = vpop.f32.mrf.mxu0
      %1087 = vmatprep.mubr.bf16.mxu0 0
      %1088 = vmatmul.mubr.bf16.gmra.mxu0 %v939
      %v1089 = vpop.f32.mrf.mxu0
      %v1090 = vadd.f32 %v841, %v1089
      %v1091 = vpop.f32.mrf.mxu0
      %v1092 = vpop.f32.mrf.mxu0
      %v1093 = vadd.f32 %v844, %v1092
      %v1094 = vpop.f32.mrf.mxu0
      %1095 = vmatprep.mubr.bf16.mxu0 0
      %1096 = vmatmul.mubr.bf16.gmra.mxu0 %v942
      %v1097 = vpop.f32.mrf.mxu0
      %v1098 = vadd.f32 %v849, %v1097
      %v1099 = vpop.f32.mrf.mxu0
      %v1100 = vpop.f32.mrf.mxu0
      %v1101 = vadd.f32 %v852, %v1100
      %v1102 = vpop.f32.mrf.mxu0
      %1103 = vmatprep.mubr.bf16.mxu0 0
      %1104 = vmatmul.mubr.bf16.gmra.mxu0 %v945
      %v1105 = vpop.f32.mrf.mxu0
      %v1106 = vadd.f32 %v857, %v1105
      %v1107 = vpop.f32.mrf.mxu0
      %v1108 = vpop.f32.mrf.mxu0
      %v1109 = vadd.f32 %v860, %v1108
      %v1110 = vpop.f32.mrf.mxu0
      %1111 = vmatprep.mubr.bf16.mxu0 0
      %1112 = vmatmul.mubr.bf16.gmra.mxu0 %v948
      %v1113 = vpop.f32.mrf.mxu0
      %v1114 = vadd.f32 %v865, %v1113
      %v1115 = vpop.f32.mrf.mxu0
      %v1116 = vpop.f32.mrf.mxu0
      %v1117 = vadd.f32 %v868, %v1116
      %v1118 = vpop.f32.mrf.mxu0
      %1119 = vmatprep.mubr.bf16.mxu0 0
      %1120 = vmatmul.mubr.bf16.gmra.mxu0 %v951
      %v1121 = vpop.f32.mrf.mxu0
      %v1122 = vadd.f32 %v873, %v1121
      %v1123 = vpop.f32.mrf.mxu0
      %v1124 = vpop.f32.mrf.mxu0
      %v1125 = vadd.f32 %v876, %v1124
      %v1126 = vpop.f32.mrf.mxu0
      %1127 = vmatprep.mubr.bf16.mxu0 0
      %1128 = vmatmul.mubr.bf16.gmra.mxu0 %v954
      %v1129 = vpop.f32.mrf.mxu0
      %v1130 = vadd.f32 %v881, %v1129
      %v1131 = vpop.f32.mrf.mxu0
      %v1132 = vpop.f32.mrf.mxu0
      %v1133 = vadd.f32 %v884, %v1132
      %v1134 = vpop.f32.mrf.mxu0
      %1135 = vdwg.mxu0
      %v1136 = vld [vmem:[#allocation2 + $0x2] sm:$0xff]
      %v1137 = vld [vmem:[#allocation2 + $0xa] sm:$0xff]
      %v1138 = vld [vmem:[#allocation2 + $0x12] sm:$0xff]
      %v1139 = vld [vmem:[#allocation2 + $0x1a] sm:$0xff]
      %v1140 = vld [vmem:[#allocation2 + $0x22] sm:$0xff]
      %v1141 = vld [vmem:[#allocation2 + $0x2a] sm:$0xff]
      %v1142 = vld [vmem:[#allocation2 + $0x32] sm:$0xff]
      %v1143 = vld [vmem:[#allocation2 + $0x3a] sm:$0xff]
      %v1144 = vld [vmem:[#allocation2 + $0x42] sm:$0xff]
      %v1145 = vld [vmem:[#allocation2 + $0x4a] sm:$0xff]
      %v1146 = vld [vmem:[#allocation2 + $0x52] sm:$0xff]
      %v1147 = vld [vmem:[#allocation2 + $0x5a] sm:$0xff]
      %v1148 = vld [vmem:[#allocation2 + $0x62] sm:$0xff]
      %v1149 = vld [vmem:[#allocation2 + $0x6a] sm:$0xff]
      %v1150 = vld [vmem:[#allocation2 + $0x72] sm:$0xff]
      %v1151 = vld [vmem:[#allocation2 + $0x7a] sm:$0xff]
      %v1152 = vld [vmem:[#allocation2 + $0x82] sm:$0xff]
      %v1153 = vld [vmem:[#allocation2 + $0x8a] sm:$0xff]
      %v1154 = vld [vmem:[#allocation2 + $0x92] sm:$0xff]
      %v1155 = vld [vmem:[#allocation2 + $0x9a] sm:$0xff]
      %v1156 = vld [vmem:[#allocation2 + $0xa2] sm:$0xff]
      %v1157 = vld [vmem:[#allocation2 + $0xaa] sm:$0xff]
      %v1158 = vld [vmem:[#allocation2 + $0xb2] sm:$0xff]
      %v1159 = vld [vmem:[#allocation2 + $0xba] sm:$0xff]
      %v1160 = vld [vmem:[#allocation2 + $0xc2] sm:$0xff]
      %v1161 = vld [vmem:[#allocation2 + $0xca] sm:$0xff]
      %v1162 = vld [vmem:[#allocation2 + $0xd2] sm:$0xff]
      %v1163 = vld [vmem:[#allocation2 + $0xda] sm:$0xff]
      %v1164 = vld [vmem:[#allocation2 + $0xe2] sm:$0xff]
      %v1165 = vld [vmem:[#allocation2 + $0xea] sm:$0xff]
      %v1166 = vld [vmem:[#allocation2 + $0xf2] sm:$0xff]
      %v1167 = vld [vmem:[#allocation2 + $0xfa] sm:$0xff]
      %v1168 = vld [vmem:[#allocation2 + $0x102] sm:$0xff]
      %v1169 = vld [vmem:[#allocation2 + $0x10a] sm:$0xff]
      %v1170 = vld [vmem:[#allocation2 + $0x112] sm:$0xff]
      %v1171 = vld [vmem:[#allocation2 + $0x11a] sm:$0xff]
      %v1172 = vpack.c.bf16 %v1137, %v1136
      %v1173 = vpack.c.bf16 %v1139, %v1138
      %v1174 = vpack.c.bf16 %v1141, %v1140
      %v1175 = vpack.c.bf16 %v1143, %v1142
      %v1176 = vpack.c.bf16 %v1145, %v1144
      %v1177 = vpack.c.bf16 %v1147, %v1146
      %v1178 = vpack.c.bf16 %v1149, %v1148
      %v1179 = vpack.c.bf16 %v1151, %v1150
      %v1180 = vpack.c.bf16 %v1153, %v1152
      %v1181 = vpack.c.bf16 %v1155, %v1154
      %v1182 = vpack.c.bf16 %v1157, %v1156
      %v1183 = vpack.c.bf16 %v1159, %v1158
      %v1184 = vpack.c.bf16 %v1161, %v1160
      %v1185 = vpack.c.bf16 %v1163, %v1162
      %v1186 = vpack.c.bf16 %v1165, %v1164
      %v1187 = vpack.c.bf16 %v1167, %v1166
      %v1188 = vpack.c.bf16 %v1169, %v1168
      %v1189 = vpack.c.bf16 %v1171, %v1170
      %s1190 = scalar_lea.vmem %s2, 40
      %v1191 = vld [vmem:[%s1190] sm:$0xf]
      %v1192 = vld [vmem:[%s1190 + $0x4] sm:$0xf]
      %v1193 = vld [vmem:[%s1190 + $0x8] sm:$0xf]
      %v1194 = vld [vmem:[%s1190 + $0xc] sm:$0xf]
      %v1195 = vld [vmem:[%s1190 + $0x10] sm:$0x3]
      %v1201 = vunpack.c.l.b16 %v1191
      %v1202 = vunpack.c.l.b16 %v1192
      %v1203 = vunpack.c.l.b16 %v1193
      %v1204 = vunpack.c.l.b16 %v1194
      %v1205 = vunpack.c.l.b16 %v1195
      %v1206 = vpack.c.b16 %v1202, %v1201
      %v1207 = vpack.c.b16 %v1204, %v1203
      %v1208 = vpack.c.b16 %v1205, %v1205
      %v1212 = vsel %vm219, %v1172, 0
      %v1215 = vsel %vm219, %v1173, 0
      %v1218 = vsel %vm219, %v1174, 0
      %v1221 = vsel %vm219, %v1175, 0
      %v1224 = vsel %vm219, %v1176, 0
      %v1227 = vsel %vm219, %v1177, 0
      %v1230 = vsel %vm219, %v1178, 0
      %v1233 = vsel %vm219, %v1179, 0
      %v1236 = vsel %vm219, %v1180, 0
      %v1239 = vsel %vm219, %v1181, 0
      %v1242 = vsel %vm219, %v1182, 0
      %v1245 = vsel %vm219, %v1183, 0
      %v1248 = vsel %vm219, %v1184, 0
      %v1251 = vsel %vm219, %v1185, 0
      %v1254 = vsel %vm219, %v1186, 0
      %v1257 = vsel %vm219, %v1187, 0
      %v1260 = vsel %vm219, %v1188, 0
      %v1263 = vsel %vm219, %v1189, 0
      %v1266 = vsel %vm706, %v1208, 0
      %1268 = vmatprep.subr.bf16.mxu0 0
      %1269 = vmatpush1.bf16.msra.mxu0 0
      %1270 = vmatprep.subr.bf16.mxu0 0
      %1271 = vmatpush1.bf16.msra.mxu0 0
      %1272 = vmatprep.subr.bf16.mxu0 0
      %1273 = vmatpush1.bf16.msra.mxu0 0
      %1274 = vmatprep.subr.bf16.mxu0 0
      %1275 = vmatpush1.bf16.msra.mxu0 0
      %1276 = vmatprep.subr.bf16.mxu0 0
      %1277 = vmatpush1.bf16.msra.mxu0 0
      %1278 = vmatprep.subr.bf16.mxu0 0
      %1279 = vmatpush1.bf16.msra.mxu0 %v1266
      %1280 = vmatprep.subr.bf16.mxu0 0
      %1281 = vmatpush1.bf16.msra.mxu0 %v1207
      %1282 = vmatprep.subr.bf16.mxu0 0
      %1283 = vmatpush1.bf16.msra.mxu0 %v1206
      %1284 = vmatprep.subr.bf16.mxu0 0
      %1285 = vmatpush2.bf16.msra.mxu0 0
      %1286 = vmatprep.subr.bf16.mxu0 0
      %1287 = vmatpush2.bf16.msra.mxu0 0
      %1288 = vmatprep.subr.bf16.mxu0 0
      %1289 = vmatpush2.bf16.msra.mxu0 0
      %1290 = vmatprep.subr.bf16.mxu0 0
      %1291 = vmatpush2.bf16.msra.mxu0 0
      %1292 = vmatprep.subr.bf16.mxu0 0
      %1293 = vmatpush2.bf16.msra.mxu0 0
      %1294 = vmatprep.subr.bf16.mxu0 0
      %1295 = vmatpush2.bf16.msra.mxu0 0
      %1296 = vmatprep.subr.bf16.mxu0 0
      %1297 = vmatpush2.bf16.msra.mxu0 0
      %1298 = vmatprep.subr.bf16.mxu0 0
      %1299 = vmatpush2.bf16.msra.mxu0 0
      %1300 = vmatprep.mubr.bf16.mxu0 0
      %1301 = vmatmul.mubr.bf16.gmra.mxu0 %v1212
      %v1302 = vpop.f32.mrf.mxu0
      %v1303 = vadd.f32 0.0, %v1302
      %v1304 = vpop.f32.mrf.mxu0
      %v1305 = vpop.f32.mrf.mxu0
      %v1306 = vadd.f32 0.0, %v1305
      %v1307 = vpop.f32.mrf.mxu0
      %1308 = vmatprep.mubr.bf16.mxu0 0
      %1309 = vmatmul.mubr.bf16.gmra.mxu0 %v1215
      %v1310 = vpop.f32.mrf.mxu0
      %v1311 = vadd.f32 0.0, %v1310
      %v1312 = vpop.f32.mrf.mxu0
      %v1313 = vpop.f32.mrf.mxu0
      %v1314 = vadd.f32 0.0, %v1313
      %v1315 = vpop.f32.mrf.mxu0
      %1316 = vmatprep.mubr.bf16.mxu0 0
      %1317 = vmatmul.mubr.bf16.gmra.mxu0 %v1218
      %v1318 = vpop.f32.mrf.mxu0
      %v1319 = vadd.f32 0.0, %v1318
      %v1320 = vpop.f32.mrf.mxu0
      %v1321 = vpop.f32.mrf.mxu0
      %v1322 = vadd.f32 0.0, %v1321
      %v1323 = vpop.f32.mrf.mxu0
      %1324 = vmatprep.mubr.bf16.mxu0 0
      %1325 = vmatmul.mubr.bf16.gmra.mxu0 %v1221
      %v1326 = vpop.f32.mrf.mxu0
      %v1327 = vadd.f32 0.0, %v1326
      %v1328 = vpop.f32.mrf.mxu0
      %v1329 = vpop.f32.mrf.mxu0
      %v1330 = vadd.f32 0.0, %v1329
      %v1331 = vpop.f32.mrf.mxu0
      %1332 = vmatprep.mubr.bf16.mxu0 0
      %1333 = vmatmul.mubr.bf16.gmra.mxu0 %v1224
      %v1334 = vpop.f32.mrf.mxu0
      %v1335 = vadd.f32 0.0, %v1334
      %v1336 = vpop.f32.mrf.mxu0
      %v1337 = vpop.f32.mrf.mxu0
      %v1338 = vadd.f32 0.0, %v1337
      %v1339 = vpop.f32.mrf.mxu0
      %1340 = vmatprep.mubr.bf16.mxu0 0
      %1341 = vmatmul.mubr.bf16.gmra.mxu0 %v1227
      %v1342 = vpop.f32.mrf.mxu0
      %v1343 = vadd.f32 0.0, %v1342
      %v1344 = vpop.f32.mrf.mxu0
      %v1345 = vpop.f32.mrf.mxu0
      %v1346 = vadd.f32 0.0, %v1345
      %v1347 = vpop.f32.mrf.mxu0
      %1348 = vmatprep.mubr.bf16.mxu0 0
      %1349 = vmatmul.mubr.bf16.gmra.mxu0 %v1230
      %v1350 = vpop.f32.mrf.mxu0
      %v1351 = vadd.f32 0.0, %v1350
      %v1352 = vpop.f32.mrf.mxu0
      %v1353 = vpop.f32.mrf.mxu0
      %v1354 = vadd.f32 0.0, %v1353
      %v1355 = vpop.f32.mrf.mxu0
      %1356 = vmatprep.mubr.bf16.mxu0 0
      %1357 = vmatmul.mubr.bf16.gmra.mxu0 %v1233
      %v1358 = vpop.f32.mrf.mxu0
      %v1359 = vadd.f32 0.0, %v1358
      %v1360 = vpop.f32.mrf.mxu0
      %v1361 = vpop.f32.mrf.mxu0
      %v1362 = vadd.f32 0.0, %v1361
      %v1363 = vpop.f32.mrf.mxu0
      %1364 = vmatprep.mubr.bf16.mxu0 0
      %1365 = vmatmul.mubr.bf16.gmra.mxu0 %v1236
      %v1366 = vpop.f32.mrf.mxu0
      %v1367 = vadd.f32 0.0, %v1366
      %v1368 = vpop.f32.mrf.mxu0
      %v1369 = vpop.f32.mrf.mxu0
      %v1370 = vadd.f32 0.0, %v1369
      %v1371 = vpop.f32.mrf.mxu0
      %1372 = vmatprep.mubr.bf16.mxu0 0
      %1373 = vmatmul.mubr.bf16.gmra.mxu0 %v1239
      %v1374 = vpop.f32.mrf.mxu0
      %v1375 = vadd.f32 0.0, %v1374
      %v1376 = vpop.f32.mrf.mxu0
      %v1377 = vpop.f32.mrf.mxu0
      %v1378 = vadd.f32 0.0, %v1377
      %v1379 = vpop.f32.mrf.mxu0
      %1380 = vmatprep.mubr.bf16.mxu0 0
      %1381 = vmatmul.mubr.bf16.gmra.mxu0 %v1242
      %v1382 = vpop.f32.mrf.mxu0
      %v1383 = vadd.f32 0.0, %v1382
      %v1384 = vpop.f32.mrf.mxu0
      %v1385 = vpop.f32.mrf.mxu0
      %v1386 = vadd.f32 0.0, %v1385
      %v1387 = vpop.f32.mrf.mxu0
      %1388 = vmatprep.mubr.bf16.mxu0 0
      %1389 = vmatmul.mubr.bf16.gmra.mxu0 %v1245
      %v1390 = vpop.f32.mrf.mxu0
      %v1391 = vadd.f32 0.0, %v1390
      %v1392 = vpop.f32.mrf.mxu0
      %v1393 = vpop.f32.mrf.mxu0
      %v1394 = vadd.f32 0.0, %v1393
      %v1395 = vpop.f32.mrf.mxu0
      %1396 = vmatprep.mubr.bf16.mxu0 0
      %1397 = vmatmul.mubr.bf16.gmra.mxu0 %v1248
      %v1398 = vpop.f32.mrf.mxu0
      %v1399 = vadd.f32 0.0, %v1398
      %v1400 = vpop.f32.mrf.mxu0
      %v1401 = vpop.f32.mrf.mxu0
      %v1402 = vadd.f32 0.0, %v1401
      %v1403 = vpop.f32.mrf.mxu0
      %1404 = vmatprep.mubr.bf16.mxu0 0
      %1405 = vmatmul.mubr.bf16.gmra.mxu0 %v1251
      %v1406 = vpop.f32.mrf.mxu0
      %v1407 = vadd.f32 0.0, %v1406
      %v1408 = vpop.f32.mrf.mxu0
      %v1409 = vpop.f32.mrf.mxu0
      %v1410 = vadd.f32 0.0, %v1409
      %v1411 = vpop.f32.mrf.mxu0
      %1412 = vmatprep.mubr.bf16.mxu0 0
      %1413 = vmatmul.mubr.bf16.gmra.mxu0 %v1254
      %v1414 = vpop.f32.mrf.mxu0
      %v1415 = vadd.f32 0.0, %v1414
      %v1416 = vpop.f32.mrf.mxu0
      %v1417 = vpop.f32.mrf.mxu0
      %v1418 = vadd.f32 0.0, %v1417
      %v1419 = vpop.f32.mrf.mxu0
      %1420 = vmatprep.mubr.bf16.mxu0 0
      %1421 = vmatmul.mubr.bf16.gmra.mxu0 %v1257
      %v1422 = vpop.f32.mrf.mxu0
      %v1423 = vadd.f32 0.0, %v1422
      %v1424 = vpop.f32.mrf.mxu0
      %v1425 = vpop.f32.mrf.mxu0
      %v1426 = vadd.f32 0.0, %v1425
      %v1427 = vpop.f32.mrf.mxu0
      %1428 = vmatprep.mubr.bf16.mxu0 0
      %1429 = vmatmul.mubr.bf16.gmra.mxu0 %v1260
      %v1430 = vpop.f32.mrf.mxu0
      %v1431 = vadd.f32 0.0, %v1430
      %v1432 = vpop.f32.mrf.mxu0
      %v1433 = vpop.f32.mrf.mxu0
      %v1434 = vadd.f32 0.0, %v1433
      %v1435 = vpop.f32.mrf.mxu0
      %1436 = vmatprep.mubr.bf16.mxu0 0
      %1437 = vmatmul.mubr.bf16.gmra.mxu0 %v1263
      %v1438 = vpop.f32.mrf.mxu0
      %v1439 = vadd.f32 0.0, %v1438
      %v1440 = vpop.f32.mrf.mxu0
      %v1441 = vpop.f32.mrf.mxu0
      %v1442 = vadd.f32 0.0, %v1441
      %v1443 = vpop.f32.mrf.mxu0
      %1444 = vdwg.mxu0
      %v1445 = vadd.f32 %v994, %v1303
      %v1446 = vadd.f32 %v997, %v1306
      %v1447 = vadd.f32 %v1002, %v1311
      %v1448 = vadd.f32 %v1005, %v1314
      %v1449 = vadd.f32 %v1010, %v1319
      %v1450 = vadd.f32 %v1013, %v1322
      %v1451 = vadd.f32 %v1018, %v1327
      %v1452 = vadd.f32 %v1021, %v1330
      %v1453 = vadd.f32 %v1026, %v1335
      %v1454 = vadd.f32 %v1029, %v1338
      %v1455 = vadd.f32 %v1034, %v1343
      %v1456 = vadd.f32 %v1037, %v1346
      %v1457 = vadd.f32 %v1042, %v1351
      %v1458 = vadd.f32 %v1045, %v1354
      %v1459 = vadd.f32 %v1050, %v1359
      %v1460 = vadd.f32 %v1053, %v1362
      %v1461 = vadd.f32 %v1058, %v1367
      %v1462 = vadd.f32 %v1061, %v1370
      %v1463 = vadd.f32 %v1066, %v1375
      %v1464 = vadd.f32 %v1069, %v1378
      %v1465 = vadd.f32 %v1074, %v1383
      %v1466 = vadd.f32 %v1077, %v1386
      %v1467 = vadd.f32 %v1082, %v1391
      %v1468 = vadd.f32 %v1085, %v1394
      %v1469 = vadd.f32 %v1090, %v1399
      %v1470 = vadd.f32 %v1093, %v1402
      %v1471 = vadd.f32 %v1098, %v1407
      %v1472 = vadd.f32 %v1101, %v1410
      %v1473 = vadd.f32 %v1106, %v1415
      %v1474 = vadd.f32 %v1109, %v1418
      %v1475 = vadd.f32 %v1114, %v1423
      %v1476 = vadd.f32 %v1117, %v1426
      %v1477 = vadd.f32 %v1122, %v1431
      %v1478 = vadd.f32 %v1125, %v1434
      %v1479 = vadd.f32 %v1130, %v1439
      %v1480 = vadd.f32 %v1133, %v1442
      %v1481 = vld [vmem:[#allocation2 + $0x12] sm:$0xff]
      %v1482 = vld [vmem:[#allocation2 + $0x1a] sm:$0xff]
      %v1483 = vld [vmem:[#allocation2 + $0x22] sm:$0xff]
      %v1484 = vld [vmem:[#allocation2 + $0x2a] sm:$0xff]
      %v1485 = vld [vmem:[#allocation2 + $0x32] sm:$0xff]
      %v1486 = vld [vmem:[#allocation2 + $0x3a] sm:$0xff]
      %v1487 = vld [vmem:[#allocation2 + $0x42] sm:$0xff]
      %v1488 = vld [vmem:[#allocation2 + $0x4a] sm:$0xff]
      %v1489 = vld [vmem:[#allocation2 + $0x52] sm:$0xff]
      %v1490 = vld [vmem:[#allocation2 + $0x5a] sm:$0xff]
      %v1491 = vld [vmem:[#allocation2 + $0x62] sm:$0xff]
      %v1492 = vld [vmem:[#allocation2 + $0x6a] sm:$0xff]
      %v1493 = vld [vmem:[#allocation2 + $0x72] sm:$0xff]
      %v1494 = vld [vmem:[#allocation2 + $0x7a] sm:$0xff]
      %v1495 = vld [vmem:[#allocation2 + $0x82] sm:$0xff]
      %v1496 = vld [vmem:[#allocation2 + $0x8a] sm:$0xff]
      %v1497 = vld [vmem:[#allocation2 + $0x92] sm:$0xff]
      %v1498 = vld [vmem:[#allocation2 + $0x9a] sm:$0xff]
      %v1499 = vld [vmem:[#allocation2 + $0xa2] sm:$0xff]
      %v1500 = vld [vmem:[#allocation2 + $0xaa] sm:$0xff]
      %v1501 = vld [vmem:[#allocation2 + $0xb2] sm:$0xff]
      %v1502 = vld [vmem:[#allocation2 + $0xba] sm:$0xff]
      %v1503 = vld [vmem:[#allocation2 + $0xc2] sm:$0xff]
      %v1504 = vld [vmem:[#allocation2 + $0xca] sm:$0xff]
      %v1505 = vld [vmem:[#allocation2 + $0xd2] sm:$0xff]
      %v1506 = vld [vmem:[#allocation2 + $0xda] sm:$0xff]
      %v1507 = vld [vmem:[#allocation2 + $0xe2] sm:$0xff]
      %v1508 = vld [vmem:[#allocation2 + $0xea] sm:$0xff]
      %v1509 = vld [vmem:[#allocation2 + $0xf2] sm:$0xff]
      %v1510 = vld [vmem:[#allocation2 + $0xfa] sm:$0xff]
      %v1511 = vld [vmem:[#allocation2 + $0x102] sm:$0xff]
      %v1512 = vld [vmem:[#allocation2 + $0x10a] sm:$0xff]
      %v1513 = vld [vmem:[#allocation2 + $0x112] sm:$0xff]
      %v1514 = vld [vmem:[#allocation2 + $0x11a] sm:$0xff]
      %v1515 = vld [vmem:[#allocation2 + $0x122] sm:$0xff]
      %v1516 = vld [vmem:[#allocation2 + $0x12a] sm:$0xff]
      %v1517 = vpack.c.bf16 %v1482, %v1481
      %v1518 = vpack.c.bf16 %v1484, %v1483
      %v1519 = vpack.c.bf16 %v1486, %v1485
      %v1520 = vpack.c.bf16 %v1488, %v1487
      %v1521 = vpack.c.bf16 %v1490, %v1489
      %v1522 = vpack.c.bf16 %v1492, %v1491
      %v1523 = vpack.c.bf16 %v1494, %v1493
      %v1524 = vpack.c.bf16 %v1496, %v1495
      %v1525 = vpack.c.bf16 %v1498, %v1497
      %v1526 = vpack.c.bf16 %v1500, %v1499
      %v1527 = vpack.c.bf16 %v1502, %v1501
      %v1528 = vpack.c.bf16 %v1504, %v1503
      %v1529 = vpack.c.bf16 %v1506, %v1505
      %v1530 = vpack.c.bf16 %v1508, %v1507
      %v1531 = vpack.c.bf16 %v1510, %v1509
      %v1532 = vpack.c.bf16 %v1512, %v1511
      %v1533 = vpack.c.bf16 %v1514, %v1513
      %v1534 = vpack.c.bf16 %v1516, %v1515
      %s1535 = scalar_lea.vmem %s2, 60
      %v1536 = vld [vmem:[%s1535] sm:$0xf]
      %v1537 = vld [vmem:[%s1535 + $0x4] sm:$0xf]
      %v1538 = vld [vmem:[%s1535 + $0x8] sm:$0xf]
      %v1539 = vld [vmem:[%s1535 + $0xc] sm:$0xf]
      %v1540 = vld [vmem:[%s1535 + $0x10] sm:$0x3]
      %v1546 = vunpack.c.l.b16 %v1536
      %v1547 = vunpack.c.l.b16 %v1537
      %v1548 = vunpack.c.l.b16 %v1538
      %v1549 = vunpack.c.l.b16 %v1539
      %v1550 = vunpack.c.l.b16 %v1540
      %v1551 = vpack.c.b16 %v1547, %v1546
      %v1552 = vpack.c.b16 %v1549, %v1548
      %v1553 = vpack.c.b16 %v1550, %v1550
      %v1557 = vsel %vm219, %v1517, 0
      %v1560 = vsel %vm219, %v1518, 0
      %v1563 = vsel %vm219, %v1519, 0
      %v1566 = vsel %vm219, %v1520, 0
      %v1569 = vsel %vm219, %v1521, 0
      %v1572 = vsel %vm219, %v1522, 0
      %v1575 = vsel %vm219, %v1523, 0
      %v1578 = vsel %vm219, %v1524, 0
      %v1581 = vsel %vm219, %v1525, 0
      %v1584 = vsel %vm219, %v1526, 0
      %v1587 = vsel %vm219, %v1527, 0
      %v1590 = vsel %vm219, %v1528, 0
      %v1593 = vsel %vm219, %v1529, 0
      %v1596 = vsel %vm219, %v1530, 0
      %v1599 = vsel %vm219, %v1531, 0
      %v1602 = vsel %vm219, %v1532, 0
      %v1605 = vsel %vm219, %v1533, 0
      %v1608 = vsel %vm219, %v1534, 0
      %v1611 = vsel %vm706, %v1553, 0
      %1613 = vmatprep.subr.bf16.mxu0 0
      %1614 = vmatpush1.bf16.msra.mxu0 0
      %1615 = vmatprep.subr.bf16.mxu0 0
      %1616 = vmatpush1.bf16.msra.mxu0 0
      %1617 = vmatprep.subr.bf16.mxu0 0
      %1618 = vmatpush1.bf16.msra.mxu0 0
      %1619 = vmatprep.subr.bf16.mxu0 0
      %1620 = vmatpush1.bf16.msra.mxu0 0
      %1621 = vmatprep.subr.bf16.mxu0 0
      %1622 = vmatpush1.bf16.msra.mxu0 0
      %1623 = vmatprep.subr.bf16.mxu0 0
      %1624 = vmatpush1.bf16.msra.mxu0 %v1611
      %1625 = vmatprep.subr.bf16.mxu0 0
      %1626 = vmatpush1.bf16.msra.mxu0 %v1552
      %1627 = vmatprep.subr.bf16.mxu0 0
      %1628 = vmatpush1.bf16.msra.mxu0 %v1551
      %1629 = vmatprep.subr.bf16.mxu0 0
      %1630 = vmatpush2.bf16.msra.mxu0 0
      %1631 = vmatprep.subr.bf16.mxu0 0
      %1632 = vmatpush2.bf16.msra.mxu0 0
      %1633 = vmatprep.subr.bf16.mxu0 0
      %1634 = vmatpush2.bf16.msra.mxu0 0
      %1635 = vmatprep.subr.bf16.mxu0 0
      %1636 = vmatpush2.bf16.msra.mxu0 0
      %1637 = vmatprep.subr.bf16.mxu0 0
      %1638 = vmatpush2.bf16.msra.mxu0 0
      %1639 = vmatprep.subr.bf16.mxu0 0
      %1640 = vmatpush2.bf16.msra.mxu0 0
      %1641 = vmatprep.subr.bf16.mxu0 0
      %1642 = vmatpush2.bf16.msra.mxu0 0
      %1643 = vmatprep.subr.bf16.mxu0 0
      %1644 = vmatpush2.bf16.msra.mxu0 0
      %1645 = vmatprep.mubr.bf16.mxu0 0
      %1646 = vmatmul.mubr.bf16.gmra.mxu0 %v1557
      %v1647 = vpop.f32.mrf.mxu0
      %v1648 = vadd.f32 0.0, %v1647
      %v1649 = vpop.f32.mrf.mxu0
      %v1650 = vpop.f32.mrf.mxu0
      %v1651 = vadd.f32 0.0, %v1650
      %v1652 = vpop.f32.mrf.mxu0
      %1653 = vmatprep.mubr.bf16.mxu0 0
      %1654 = vmatmul.mubr.bf16.gmra.mxu0 %v1560
      %v1655 = vpop.f32.mrf.mxu0
      %v1656 = vadd.f32 0.0, %v1655
      %v1657 = vpop.f32.mrf.mxu0
      %v1658 = vpop.f32.mrf.mxu0
      %v1659 = vadd.f32 0.0, %v1658
      %v1660 = vpop.f32.mrf.mxu0
      %1661 = vmatprep.mubr.bf16.mxu0 0
      %1662 = vmatmul.mubr.bf16.gmra.mxu0 %v1563
      %v1663 = vpop.f32.mrf.mxu0
      %v1664 = vadd.f32 0.0, %v1663
      %v1665 = vpop.f32.mrf.mxu0
      %v1666 = vpop.f32.mrf.mxu0
      %v1667 = vadd.f32 0.0, %v1666
      %v1668 = vpop.f32.mrf.mxu0
      %1669 = vmatprep.mubr.bf16.mxu0 0
      %1670 = vmatmul.mubr.bf16.gmra.mxu0 %v1566
      %v1671 = vpop.f32.mrf.mxu0
      %v1672 = vadd.f32 0.0, %v1671
      %v1673 = vpop.f32.mrf.mxu0
      %v1674 = vpop.f32.mrf.mxu0
      %v1675 = vadd.f32 0.0, %v1674
      %v1676 = vpop.f32.mrf.mxu0
      %1677 = vmatprep.mubr.bf16.mxu0 0
      %1678 = vmatmul.mubr.bf16.gmra.mxu0 %v1569
      %v1679 = vpop.f32.mrf.mxu0
      %v1680 = vadd.f32 0.0, %v1679
      %v1681 = vpop.f32.mrf.mxu0
      %v1682 = vpop.f32.mrf.mxu0
      %v1683 = vadd.f32 0.0, %v1682
      %v1684 = vpop.f32.mrf.mxu0
      %1685 = vmatprep.mubr.bf16.mxu0 0
      %1686 = vmatmul.mubr.bf16.gmra.mxu0 %v1572
      %v1687 = vpop.f32.mrf.mxu0
      %v1688 = vadd.f32 0.0, %v1687
      %v1689 = vpop.f32.mrf.mxu0
      %v1690 = vpop.f32.mrf.mxu0
      %v1691 = vadd.f32 0.0, %v1690
      %v1692 = vpop.f32.mrf.mxu0
      %1693 = vmatprep.mubr.bf16.mxu0 0
      %1694 = vmatmul.mubr.bf16.gmra.mxu0 %v1575
      %v1695 = vpop.f32.mrf.mxu0
      %v1696 = vadd.f32 0.0, %v1695
      %v1697 = vpop.f32.mrf.mxu0
      %v1698 = vpop.f32.mrf.mxu0
      %v1699 = vadd.f32 0.0, %v1698
      %v1700 = vpop.f32.mrf.mxu0
      %1701 = vmatprep.mubr.bf16.mxu0 0
      %1702 = vmatmul.mubr.bf16.gmra.mxu0 %v1578
      %v1703 = vpop.f32.mrf.mxu0
      %v1704 = vadd.f32 0.0, %v1703
      %v1705 = vpop.f32.mrf.mxu0
      %v1706 = vpop.f32.mrf.mxu0
      %v1707 = vadd.f32 0.0, %v1706
      %v1708 = vpop.f32.mrf.mxu0
      %1709 = vmatprep.mubr.bf16.mxu0 0
      %1710 = vmatmul.mubr.bf16.gmra.mxu0 %v1581
      %v1711 = vpop.f32.mrf.mxu0
      %v1712 = vadd.f32 0.0, %v1711
      %v1713 = vpop.f32.mrf.mxu0
      %v1714 = vpop.f32.mrf.mxu0
      %v1715 = vadd.f32 0.0, %v1714
      %v1716 = vpop.f32.mrf.mxu0
      %1717 = vmatprep.mubr.bf16.mxu0 0
      %1718 = vmatmul.mubr.bf16.gmra.mxu0 %v1584
      %v1719 = vpop.f32.mrf.mxu0
      %v1720 = vadd.f32 0.0, %v1719
      %v1721 = vpop.f32.mrf.mxu0
      %v1722 = vpop.f32.mrf.mxu0
      %v1723 = vadd.f32 0.0, %v1722
      %v1724 = vpop.f32.mrf.mxu0
      %1725 = vmatprep.mubr.bf16.mxu0 0
      %1726 = vmatmul.mubr.bf16.gmra.mxu0 %v1587
      %v1727 = vpop.f32.mrf.mxu0
      %v1728 = vadd.f32 0.0, %v1727
      %v1729 = vpop.f32.mrf.mxu0
      %v1730 = vpop.f32.mrf.mxu0
      %v1731 = vadd.f32 0.0, %v1730
      %v1732 = vpop.f32.mrf.mxu0
      %1733 = vmatprep.mubr.bf16.mxu0 0
      %1734 = vmatmul.mubr.bf16.gmra.mxu0 %v1590
      %v1735 = vpop.f32.mrf.mxu0
      %v1736 = vadd.f32 0.0, %v1735
      %v1737 = vpop.f32.mrf.mxu0
      %v1738 = vpop.f32.mrf.mxu0
      %v1739 = vadd.f32 0.0, %v1738
      %v1740 = vpop.f32.mrf.mxu0
      %1741 = vmatprep.mubr.bf16.mxu0 0
      %1742 = vmatmul.mubr.bf16.gmra.mxu0 %v1593
      %v1743 = vpop.f32.mrf.mxu0
      %v1744 = vadd.f32 0.0, %v1743
      %v1745 = vpop.f32.mrf.mxu0
      %v1746 = vpop.f32.mrf.mxu0
      %v1747 = vadd.f32 0.0, %v1746
      %v1748 = vpop.f32.mrf.mxu0
      %1749 = vmatprep.mubr.bf16.mxu0 0
      %1750 = vmatmul.mubr.bf16.gmra.mxu0 %v1596
      %v1751 = vpop.f32.mrf.mxu0
      %v1752 = vadd.f32 0.0, %v1751
      %v1753 = vpop.f32.mrf.mxu0
      %v1754 = vpop.f32.mrf.mxu0
      %v1755 = vadd.f32 0.0, %v1754
      %v1756 = vpop.f32.mrf.mxu0
      %1757 = vmatprep.mubr.bf16.mxu0 0
      %1758 = vmatmul.mubr.bf16.gmra.mxu0 %v1599
      %v1759 = vpop.f32.mrf.mxu0
      %v1760 = vadd.f32 0.0, %v1759
      %v1761 = vpop.f32.mrf.mxu0
      %v1762 = vpop.f32.mrf.mxu0
      %v1763 = vadd.f32 0.0, %v1762
      %v1764 = vpop.f32.mrf.mxu0
      %1765 = vmatprep.mubr.bf16.mxu0 0
      %1766 = vmatmul.mubr.bf16.gmra.mxu0 %v1602
      %v1767 = vpop.f32.mrf.mxu0
      %v1768 = vadd.f32 0.0, %v1767
      %v1769 = vpop.f32.mrf.mxu0
      %v1770 = vpop.f32.mrf.mxu0
      %v1771 = vadd.f32 0.0, %v1770
      %v1772 = vpop.f32.mrf.mxu0
      %1773 = vmatprep.mubr.bf16.mxu0 0
      %1774 = vmatmul.mubr.bf16.gmra.mxu0 %v1605
      %v1775 = vpop.f32.mrf.mxu0
      %v1776 = vadd.f32 0.0, %v1775
      %v1777 = vpop.f32.mrf.mxu0
      %v1778 = vpop.f32.mrf.mxu0
      %v1779 = vadd.f32 0.0, %v1778
      %v1780 = vpop.f32.mrf.mxu0
      %1781 = vmatprep.mubr.bf16.mxu0 0
      %1782 = vmatmul.mubr.bf16.gmra.mxu0 %v1608
      %v1783 = vpop.f32.mrf.mxu0
      %v1784 = vadd.f32 0.0, %v1783
      %v1785 = vpop.f32.mrf.mxu0
      %v1786 = vpop.f32.mrf.mxu0
      %v1787 = vadd.f32 0.0, %v1786
      %v1788 = vpop.f32.mrf.mxu0
      %1789 = vdwg.mxu0
      %v1790 = vadd.f32 %v1445, %v1648
      %v1791 = vadd.f32 %v1446, %v1651
      %v1792 = vadd.f32 %v1447, %v1656
      %v1793 = vadd.f32 %v1448, %v1659
      %v1794 = vadd.f32 %v1449, %v1664
      %v1795 = vadd.f32 %v1450, %v1667
      %v1796 = vadd.f32 %v1451, %v1672
      %v1797 = vadd.f32 %v1452, %v1675
      %v1798 = vadd.f32 %v1453, %v1680
      %v1799 = vadd.f32 %v1454, %v1683
      %v1800 = vadd.f32 %v1455, %v1688
      %v1801 = vadd.f32 %v1456, %v1691
      %v1802 = vadd.f32 %v1457, %v1696
      %v1803 = vadd.f32 %v1458, %v1699
      %v1804 = vadd.f32 %v1459, %v1704
      %v1805 = vadd.f32 %v1460, %v1707
      %v1806 = vadd.f32 %v1461, %v1712
      %v1807 = vadd.f32 %v1462, %v1715
      %v1808 = vadd.f32 %v1463, %v1720
      %v1809 = vadd.f32 %v1464, %v1723
      %v1810 = vadd.f32 %v1465, %v1728
      %v1811 = vadd.f32 %v1466, %v1731
      %v1812 = vadd.f32 %v1467, %v1736
      %v1813 = vadd.f32 %v1468, %v1739
      %v1814 = vadd.f32 %v1469, %v1744
      %v1815 = vadd.f32 %v1470, %v1747
      %v1816 = vadd.f32 %v1471, %v1752
      %v1817 = vadd.f32 %v1472, %v1755
      %v1818 = vadd.f32 %v1473, %v1760
      %v1819 = vadd.f32 %v1474, %v1763
      %v1820 = vadd.f32 %v1475, %v1768
      %v1821 = vadd.f32 %v1476, %v1771
      %v1822 = vadd.f32 %v1477, %v1776
      %v1823 = vadd.f32 %v1478, %v1779
      %v1824 = vadd.f32 %v1479, %v1784
      %v1825 = vadd.f32 %v1480, %v1787
      %v1826 = vld [vmem:[#allocation2 + $0x13] sm:$0xff]
      %v1827 = vld [vmem:[#allocation2 + $0x1b] sm:$0xff]
      %v1828 = vld [vmem:[#allocation2 + $0x23] sm:$0xff]
      %v1829 = vld [vmem:[#allocation2 + $0x2b] sm:$0xff]
      %v1830 = vld [vmem:[#allocation2 + $0x33] sm:$0xff]
      %v1831 = vld [vmem:[#allocation2 + $0x3b] sm:$0xff]
      %v1832 = vld [vmem:[#allocation2 + $0x43] sm:$0xff]
      %v1833 = vld [vmem:[#allocation2 + $0x4b] sm:$0xff]
      %v1834 = vld [vmem:[#allocation2 + $0x53] sm:$0xff]
      %v1835 = vld [vmem:[#allocation2 + $0x5b] sm:$0xff]
      %v1836 = vld [vmem:[#allocation2 + $0x63] sm:$0xff]
      %v1837 = vld [vmem:[#allocation2 + $0x6b] sm:$0xff]
      %v1838 = vld [vmem:[#allocation2 + $0x73] sm:$0xff]
      %v1839 = vld [vmem:[#allocation2 + $0x7b] sm:$0xff]
      %v1840 = vld [vmem:[#allocation2 + $0x83] sm:$0xff]
      %v1841 = vld [vmem:[#allocation2 + $0x8b] sm:$0xff]
      %v1842 = vld [vmem:[#allocation2 + $0x93] sm:$0xff]
      %v1843 = vld [vmem:[#allocation2 + $0x9b] sm:$0xff]
      %v1844 = vld [vmem:[#allocation2 + $0xa3] sm:$0xff]
      %v1845 = vld [vmem:[#allocation2 + $0xab] sm:$0xff]
      %v1846 = vld [vmem:[#allocation2 + $0xb3] sm:$0xff]
      %v1847 = vld [vmem:[#allocation2 + $0xbb] sm:$0xff]
      %v1848 = vld [vmem:[#allocation2 + $0xc3] sm:$0xff]
      %v1849 = vld [vmem:[#allocation2 + $0xcb] sm:$0xff]
      %v1850 = vld [vmem:[#allocation2 + $0xd3] sm:$0xff]
      %v1851 = vld [vmem:[#allocation2 + $0xdb] sm:$0xff]
      %v1852 = vld [vmem:[#allocation2 + $0xe3] sm:$0xff]
      %v1853 = vld [vmem:[#allocation2 + $0xeb] sm:$0xff]
      %v1854 = vld [vmem:[#allocation2 + $0xf3] sm:$0xff]
      %v1855 = vld [vmem:[#allocation2 + $0xfb] sm:$0xff]
      %v1856 = vld [vmem:[#allocation2 + $0x103] sm:$0xff]
      %v1857 = vld [vmem:[#allocation2 + $0x10b] sm:$0xff]
      %v1858 = vld [vmem:[#allocation2 + $0x113] sm:$0xff]
      %v1859 = vld [vmem:[#allocation2 + $0x11b] sm:$0xff]
      %v1860 = vld [vmem:[#allocation2 + $0x123] sm:$0xff]
      %v1861 = vld [vmem:[#allocation2 + $0x12b] sm:$0xff]
      %v1862 = vpack.c.bf16 %v1827, %v1826
      %v1863 = vpack.c.bf16 %v1829, %v1828
      %v1864 = vpack.c.bf16 %v1831, %v1830
      %v1865 = vpack.c.bf16 %v1833, %v1832
      %v1866 = vpack.c.bf16 %v1835, %v1834
      %v1867 = vpack.c.bf16 %v1837, %v1836
      %v1868 = vpack.c.bf16 %v1839, %v1838
      %v1869 = vpack.c.bf16 %v1841, %v1840
      %v1870 = vpack.c.bf16 %v1843, %v1842
      %v1871 = vpack.c.bf16 %v1845, %v1844
      %v1872 = vpack.c.bf16 %v1847, %v1846
      %v1873 = vpack.c.bf16 %v1849, %v1848
      %v1874 = vpack.c.bf16 %v1851, %v1850
      %v1875 = vpack.c.bf16 %v1853, %v1852
      %v1876 = vpack.c.bf16 %v1855, %v1854
      %v1877 = vpack.c.bf16 %v1857, %v1856
      %v1878 = vpack.c.bf16 %v1859, %v1858
      %v1879 = vpack.c.bf16 %v1861, %v1860
      %s1880 = scalar_lea.vmem %s2, 80
      %v1881 = vld [vmem:[%s1880] sm:$0xf]
      %v1882 = vld [vmem:[%s1880 + $0x4] sm:$0xf]
      %v1883 = vld [vmem:[%s1880 + $0x8] sm:$0xf]
      %v1884 = vld [vmem:[%s1880 + $0xc] sm:$0xf]
      %v1885 = vld [vmem:[%s1880 + $0x10] sm:$0x3]
      %v1891 = vunpack.c.l.b16 %v1881
      %v1892 = vunpack.c.l.b16 %v1882
      %v1893 = vunpack.c.l.b16 %v1883
      %v1894 = vunpack.c.l.b16 %v1884
      %v1895 = vunpack.c.l.b16 %v1885
      %v1896 = vpack.c.b16 %v1892, %v1891
      %v1897 = vpack.c.b16 %v1894, %v1893
      %v1898 = vpack.c.b16 %v1895, %v1895
      %v1902 = vsel %vm219, %v1862, 0
      %v1905 = vsel %vm219, %v1863, 0
      %v1908 = vsel %vm219, %v1864, 0
      %v1911 = vsel %vm219, %v1865, 0
      %v1914 = vsel %vm219, %v1866, 0
      %v1917 = vsel %vm219, %v1867, 0
      %v1920 = vsel %vm219, %v1868, 0
      %v1923 = vsel %vm219, %v1869, 0
      %v1926 = vsel %vm219, %v1870, 0
      %v1929 = vsel %vm219, %v1871, 0
      %v1932 = vsel %vm219, %v1872, 0
      %v1935 = vsel %vm219, %v1873, 0
      %v1938 = vsel %vm219, %v1874, 0
      %v1941 = vsel %vm219, %v1875, 0
      %v1944 = vsel %vm219, %v1876, 0
      %v1947 = vsel %vm219, %v1877, 0
      %v1950 = vsel %vm219, %v1878, 0
      %v1953 = vsel %vm219, %v1879, 0
      %v1956 = vsel %vm706, %v1898, 0
      %1958 = vmatprep.subr.bf16.mxu0 0
      %1959 = vmatpush1.bf16.msra.mxu0 0
      %1960 = vmatprep.subr.bf16.mxu0 0
      %1961 = vmatpush1.bf16.msra.mxu0 0
      %1962 = vmatprep.subr.bf16.mxu0 0
      %1963 = vmatpush1.bf16.msra.mxu0 0
      %1964 = vmatprep.subr.bf16.mxu0 0
      %1965 = vmatpush1.bf16.msra.mxu0 0
      %1966 = vmatprep.subr.bf16.mxu0 0
      %1967 = vmatpush1.bf16.msra.mxu0 0
      %1968 = vmatprep.subr.bf16.mxu0 0
      %1969 = vmatpush1.bf16.msra.mxu0 %v1956
      %1970 = vmatprep.subr.bf16.mxu0 0
      %1971 = vmatpush1.bf16.msra.mxu0 %v1897
      %1972 = vmatprep.subr.bf16.mxu0 0
      %1973 = vmatpush1.bf16.msra.mxu0 %v1896
      %1974 = vmatprep.subr.bf16.mxu0 0
      %1975 = vmatpush2.bf16.msra.mxu0 0
      %1976 = vmatprep.subr.bf16.mxu0 0
      %1977 = vmatpush2.bf16.msra.mxu0 0
      %1978 = vmatprep.subr.bf16.mxu0 0
      %1979 = vmatpush2.bf16.msra.mxu0 0
      %1980 = vmatprep.subr.bf16.mxu0 0
      %1981 = vmatpush2.bf16.msra.mxu0 0
      %1982 = vmatprep.subr.bf16.mxu0 0
      %1983 = vmatpush2.bf16.msra.mxu0 0
      %1984 = vmatprep.subr.bf16.mxu0 0
      %1985 = vmatpush2.bf16.msra.mxu0 0
      %1986 = vmatprep.subr.bf16.mxu0 0
      %1987 = vmatpush2.bf16.msra.mxu0 0
      %1988 = vmatprep.subr.bf16.mxu0 0
      %1989 = vmatpush2.bf16.msra.mxu0 0
      %1990 = vmatprep.mubr.bf16.mxu0 0
      %1991 = vmatmul.mubr.bf16.gmra.mxu0 %v1902
      %v1992 = vpop.f32.mrf.mxu0
      %v1993 = vadd.f32 0.0, %v1992
      %v1994 = vpop.f32.mrf.mxu0
      %v1995 = vpop.f32.mrf.mxu0
      %v1996 = vadd.f32 0.0, %v1995
      %v1997 = vpop.f32.mrf.mxu0
      %1998 = vmatprep.mubr.bf16.mxu0 0
      %1999 = vmatmul.mubr.bf16.gmra.mxu0 %v1905
      %v2000 = vpop.f32.mrf.mxu0
      %v2001 = vadd.f32 0.0, %v2000
      %v2002 = vpop.f32.mrf.mxu0
      %v2003 = vpop.f32.mrf.mxu0
      %v2004 = vadd.f32 0.0, %v2003
      %v2005 = vpop.f32.mrf.mxu0
      %2006 = vmatprep.mubr.bf16.mxu0 0
      %2007 = vmatmul.mubr.bf16.gmra.mxu0 %v1908
      %v2008 = vpop.f32.mrf.mxu0
      %v2009 = vadd.f32 0.0, %v2008
      %v2010 = vpop.f32.mrf.mxu0
      %v2011 = vpop.f32.mrf.mxu0
      %v2012 = vadd.f32 0.0, %v2011
      %v2013 = vpop.f32.mrf.mxu0
      %2014 = vmatprep.mubr.bf16.mxu0 0
      %2015 = vmatmul.mubr.bf16.gmra.mxu0 %v1911
      %v2016 = vpop.f32.mrf.mxu0
      %v2017 = vadd.f32 0.0, %v2016
      %v2018 = vpop.f32.mrf.mxu0
      %v2019 = vpop.f32.mrf.mxu0
      %v2020 = vadd.f32 0.0, %v2019
      %v2021 = vpop.f32.mrf.mxu0
      %2022 = vmatprep.mubr.bf16.mxu0 0
      %2023 = vmatmul.mubr.bf16.gmra.mxu0 %v1914
      %v2024 = vpop.f32.mrf.mxu0
      %v2025 = vadd.f32 0.0, %v2024
      %v2026 = vpop.f32.mrf.mxu0
      %v2027 = vpop.f32.mrf.mxu0
      %v2028 = vadd.f32 0.0, %v2027
      %v2029 = vpop.f32.mrf.mxu0
      %2030 = vmatprep.mubr.bf16.mxu0 0
      %2031 = vmatmul.mubr.bf16.gmra.mxu0 %v1917
      %v2032 = vpop.f32.mrf.mxu0
      %v2033 = vadd.f32 0.0, %v2032
      %v2034 = vpop.f32.mrf.mxu0
      %v2035 = vpop.f32.mrf.mxu0
      %v2036 = vadd.f32 0.0, %v2035
      %v2037 = vpop.f32.mrf.mxu0
      %2038 = vmatprep.mubr.bf16.mxu0 0
      %2039 = vmatmul.mubr.bf16.gmra.mxu0 %v1920
      %v2040 = vpop.f32.mrf.mxu0
      %v2041 = vadd.f32 0.0, %v2040
      %v2042 = vpop.f32.mrf.mxu0
      %v2043 = vpop.f32.mrf.mxu0
      %v2044 = vadd.f32 0.0, %v2043
      %v2045 = vpop.f32.mrf.mxu0
      %2046 = vmatprep.mubr.bf16.mxu0 0
      %2047 = vmatmul.mubr.bf16.gmra.mxu0 %v1923
      %v2048 = vpop.f32.mrf.mxu0
      %v2049 = vadd.f32 0.0, %v2048
      %v2050 = vpop.f32.mrf.mxu0
      %v2051 = vpop.f32.mrf.mxu0
      %v2052 = vadd.f32 0.0, %v2051
      %v2053 = vpop.f32.mrf.mxu0
      %2054 = vmatprep.mubr.bf16.mxu0 0
      %2055 = vmatmul.mubr.bf16.gmra.mxu0 %v1926
      %v2056 = vpop.f32.mrf.mxu0
      %v2057 = vadd.f32 0.0, %v2056
      %v2058 = vpop.f32.mrf.mxu0
      %v2059 = vpop.f32.mrf.mxu0
      %v2060 = vadd.f32 0.0, %v2059
      %v2061 = vpop.f32.mrf.mxu0
      %2062 = vmatprep.mubr.bf16.mxu0 0
      %2063 = vmatmul.mubr.bf16.gmra.mxu0 %v1929
      %v2064 = vpop.f32.mrf.mxu0
      %v2065 = vadd.f32 0.0, %v2064
      %v2066 = vpop.f32.mrf.mxu0
      %v2067 = vpop.f32.mrf.mxu0
      %v2068 = vadd.f32 0.0, %v2067
      %v2069 = vpop.f32.mrf.mxu0
      %2070 = vmatprep.mubr.bf16.mxu0 0
      %2071 = vmatmul.mubr.bf16.gmra.mxu0 %v1932
      %v2072 = vpop.f32.mrf.mxu0
      %v2073 = vadd.f32 0.0, %v2072
      %v2074 = vpop.f32.mrf.mxu0
      %v2075 = vpop.f32.mrf.mxu0
      %v2076 = vadd.f32 0.0, %v2075
      %v2077 = vpop.f32.mrf.mxu0
      %2078 = vmatprep.mubr.bf16.mxu0 0
      %2079 = vmatmul.mubr.bf16.gmra.mxu0 %v1935
      %v2080 = vpop.f32.mrf.mxu0
      %v2081 = vadd.f32 0.0, %v2080
      %v2082 = vpop.f32.mrf.mxu0
      %v2083 = vpop.f32.mrf.mxu0
      %v2084 = vadd.f32 0.0, %v2083
      %v2085 = vpop.f32.mrf.mxu0
      %2086 = vmatprep.mubr.bf16.mxu0 0
      %2087 = vmatmul.mubr.bf16.gmra.mxu0 %v1938
      %v2088 = vpop.f32.mrf.mxu0
      %v2089 = vadd.f32 0.0, %v2088
      %v2090 = vpop.f32.mrf.mxu0
      %v2091 = vpop.f32.mrf.mxu0
      %v2092 = vadd.f32 0.0, %v2091
      %v2093 = vpop.f32.mrf.mxu0
      %2094 = vmatprep.mubr.bf16.mxu0 0
      %2095 = vmatmul.mubr.bf16.gmra.mxu0 %v1941
      %v2096 = vpop.f32.mrf.mxu0
      %v2097 = vadd.f32 0.0, %v2096
      %v2098 = vpop.f32.mrf.mxu0
      %v2099 = vpop.f32.mrf.mxu0
      %v2100 = vadd.f32 0.0, %v2099
      %v2101 = vpop.f32.mrf.mxu0
      %2102 = vmatprep.mubr.bf16.mxu0 0
      %2103 = vmatmul.mubr.bf16.gmra.mxu0 %v1944
      %v2104 = vpop.f32.mrf.mxu0
      %v2105 = vadd.f32 0.0, %v2104
      %v2106 = vpop.f32.mrf.mxu0
      %v2107 = vpop.f32.mrf.mxu0
      %v2108 = vadd.f32 0.0, %v2107
      %v2109 = vpop.f32.mrf.mxu0
      %2110 = vmatprep.mubr.bf16.mxu0 0
      %2111 = vmatmul.mubr.bf16.gmra.mxu0 %v1947
      %v2112 = vpop.f32.mrf.mxu0
      %v2113 = vadd.f32 0.0, %v2112
      %v2114 = vpop.f32.mrf.mxu0
      %v2115 = vpop.f32.mrf.mxu0
      %v2116 = vadd.f32 0.0, %v2115
      %v2117 = vpop.f32.mrf.mxu0
      %2118 = vmatprep.mubr.bf16.mxu0 0
      %2119 = vmatmul.mubr.bf16.gmra.mxu0 %v1950
      %v2120 = vpop.f32.mrf.mxu0
      %v2121 = vadd.f32 0.0, %v2120
      %v2122 = vpop.f32.mrf.mxu0
      %v2123 = vpop.f32.mrf.mxu0
      %v2124 = vadd.f32 0.0, %v2123
      %v2125 = vpop.f32.mrf.mxu0
      %2126 = vmatprep.mubr.bf16.mxu0 0
      %2127 = vmatmul.mubr.bf16.gmra.mxu0 %v1953
      %v2128 = vpop.f32.mrf.mxu0
      %v2129 = vadd.f32 0.0, %v2128
      %v2130 = vpop.f32.mrf.mxu0
      %v2131 = vpop.f32.mrf.mxu0
      %v2132 = vadd.f32 0.0, %v2131
      %v2133 = vpop.f32.mrf.mxu0
      %2134 = vdwg.mxu0
      %v2135 = vadd.f32 %v1790, %v1993
      %v2136 = vadd.f32 %v1791, %v1996
      %v2137 = vadd.f32 %v1792, %v2001
      %v2138 = vadd.f32 %v1793, %v2004
      %v2139 = vadd.f32 %v1794, %v2009
      %v2140 = vadd.f32 %v1795, %v2012
      %v2141 = vadd.f32 %v1796, %v2017
      %v2142 = vadd.f32 %v1797, %v2020
      %v2143 = vadd.f32 %v1798, %v2025
      %v2144 = vadd.f32 %v1799, %v2028
      %v2145 = vadd.f32 %v1800, %v2033
      %v2146 = vadd.f32 %v1801, %v2036
      %v2147 = vadd.f32 %v1802, %v2041
      %v2148 = vadd.f32 %v1803, %v2044
      %v2149 = vadd.f32 %v1804, %v2049
      %v2150 = vadd.f32 %v1805, %v2052
      %v2151 = vadd.f32 %v1806, %v2057
      %v2152 = vadd.f32 %v1807, %v2060
      %v2153 = vadd.f32 %v1808, %v2065
      %v2154 = vadd.f32 %v1809, %v2068
      %v2155 = vadd.f32 %v1810, %v2073
      %v2156 = vadd.f32 %v1811, %v2076
      %v2157 = vadd.f32 %v1812, %v2081
      %v2158 = vadd.f32 %v1813, %v2084
      %v2159 = vadd.f32 %v1814, %v2089
      %v2160 = vadd.f32 %v1815, %v2092
      %v2161 = vadd.f32 %v1816, %v2097
      %v2162 = vadd.f32 %v1817, %v2100
      %v2163 = vadd.f32 %v1818, %v2105
      %v2164 = vadd.f32 %v1819, %v2108
      %v2165 = vadd.f32 %v1820, %v2113
      %v2166 = vadd.f32 %v1821, %v2116
      %v2167 = vadd.f32 %v1822, %v2121
      %v2168 = vadd.f32 %v1823, %v2124
      %v2169 = vadd.f32 %v1824, %v2129
      %v2170 = vadd.f32 %v1825, %v2132
      %v2171 = vld [vmem:[#allocation2 + $0x14] sm:$0xff]
      %v2172 = vld [vmem:[#allocation2 + $0x1c] sm:$0xff]
      %v2173 = vld [vmem:[#allocation2 + $0x24] sm:$0xff]
      %v2174 = vld [vmem:[#allocation2 + $0x2c] sm:$0xff]
      %v2175 = vld [vmem:[#allocation2 + $0x34] sm:$0xff]
      %v2176 = vld [vmem:[#allocation2 + $0x3c] sm:$0xff]
      %v2177 = vld [vmem:[#allocation2 + $0x44] sm:$0xff]
      %v2178 = vld [vmem:[#allocation2 + $0x4c] sm:$0xff]
      %v2179 = vld [vmem:[#allocation2 + $0x54] sm:$0xff]
      %v2180 = vld [vmem:[#allocation2 + $0x5c] sm:$0xff]
      %v2181 = vld [vmem:[#allocation2 + $0x64] sm:$0xff]
      %v2182 = vld [vmem:[#allocation2 + $0x6c] sm:$0xff]
      %v2183 = vld [vmem:[#allocation2 + $0x74] sm:$0xff]
      %v2184 = vld [vmem:[#allocation2 + $0x7c] sm:$0xff]
      %v2185 = vld [vmem:[#allocation2 + $0x84] sm:$0xff]
      %v2186 = vld [vmem:[#allocation2 + $0x8c] sm:$0xff]
      %v2187 = vld [vmem:[#allocation2 + $0x94] sm:$0xff]
      %v2188 = vld [vmem:[#allocation2 + $0x9c] sm:$0xff]
      %v2189 = vld [vmem:[#allocation2 + $0xa4] sm:$0xff]
      %v2190 = vld [vmem:[#allocation2 + $0xac] sm:$0xff]
      %v2191 = vld [vmem:[#allocation2 + $0xb4] sm:$0xff]
      %v2192 = vld [vmem:[#allocation2 + $0xbc] sm:$0xff]
      %v2193 = vld [vmem:[#allocation2 + $0xc4] sm:$0xff]
      %v2194 = vld [vmem:[#allocation2 + $0xcc] sm:$0xff]
      %v2195 = vld [vmem:[#allocation2 + $0xd4] sm:$0xff]
      %v2196 = vld [vmem:[#allocation2 + $0xdc] sm:$0xff]
      %v2197 = vld [vmem:[#allocation2 + $0xe4] sm:$0xff]
      %v2198 = vld [vmem:[#allocation2 + $0xec] sm:$0xff]
      %v2199 = vld [vmem:[#allocation2 + $0xf4] sm:$0xff]
      %v2200 = vld [vmem:[#allocation2 + $0xfc] sm:$0xff]
      %v2201 = vld [vmem:[#allocation2 + $0x104] sm:$0xff]
      %v2202 = vld [vmem:[#allocation2 + $0x10c] sm:$0xff]
      %v2203 = vld [vmem:[#allocation2 + $0x114] sm:$0xff]
      %v2204 = vld [vmem:[#allocation2 + $0x11c] sm:$0xff]
      %v2205 = vld [vmem:[#allocation2 + $0x124] sm:$0xff]
      %v2206 = vld [vmem:[#allocation2 + $0x12c] sm:$0xff]
      %v2207 = vpack.c.bf16 %v2172, %v2171
      %v2208 = vpack.c.bf16 %v2174, %v2173
      %v2209 = vpack.c.bf16 %v2176, %v2175
      %v2210 = vpack.c.bf16 %v2178, %v2177
      %v2211 = vpack.c.bf16 %v2180, %v2179
      %v2212 = vpack.c.bf16 %v2182, %v2181
      %v2213 = vpack.c.bf16 %v2184, %v2183
      %v2214 = vpack.c.bf16 %v2186, %v2185
      %v2215 = vpack.c.bf16 %v2188, %v2187
      %v2216 = vpack.c.bf16 %v2190, %v2189
      %v2217 = vpack.c.bf16 %v2192, %v2191
      %v2218 = vpack.c.bf16 %v2194, %v2193
      %v2219 = vpack.c.bf16 %v2196, %v2195
      %v2220 = vpack.c.bf16 %v2198, %v2197
      %v2221 = vpack.c.bf16 %v2200, %v2199
      %v2222 = vpack.c.bf16 %v2202, %v2201
      %v2223 = vpack.c.bf16 %v2204, %v2203
      %v2224 = vpack.c.bf16 %v2206, %v2205
      %s2225 = scalar_lea.vmem %s2, 100
      %v2226 = vld [vmem:[%s2225] sm:$0xf]
      %v2227 = vld [vmem:[%s2225 + $0x4] sm:$0xf]
      %v2228 = vld [vmem:[%s2225 + $0x8] sm:$0xf]
      %v2229 = vld [vmem:[%s2225 + $0xc] sm:$0xf]
      %v2230 = vld [vmem:[%s2225 + $0x10] sm:$0x3]
      %v2236 = vunpack.c.l.b16 %v2226
      %v2237 = vunpack.c.l.b16 %v2227
      %v2238 = vunpack.c.l.b16 %v2228
      %v2239 = vunpack.c.l.b16 %v2229
      %v2240 = vunpack.c.l.b16 %v2230
      %v2241 = vpack.c.b16 %v2237, %v2236
      %v2242 = vpack.c.b16 %v2239, %v2238
      %v2243 = vpack.c.b16 %v2240, %v2240
      %v2247 = vsel %vm219, %v2207, 0
      %v2250 = vsel %vm219, %v2208, 0
      %v2253 = vsel %vm219, %v2209, 0
      %v2256 = vsel %vm219, %v2210, 0
      %v2259 = vsel %vm219, %v2211, 0
      %v2262 = vsel %vm219, %v2212, 0
      %v2265 = vsel %vm219, %v2213, 0
      %v2268 = vsel %vm219, %v2214, 0
      %v2271 = vsel %vm219, %v2215, 0
      %v2274 = vsel %vm219, %v2216, 0
      %v2277 = vsel %vm219, %v2217, 0
      %v2280 = vsel %vm219, %v2218, 0
      %v2283 = vsel %vm219, %v2219, 0
      %v2286 = vsel %vm219, %v2220, 0
      %v2289 = vsel %vm219, %v2221, 0
      %v2292 = vsel %vm219, %v2222, 0
      %v2295 = vsel %vm219, %v2223, 0
      %v2298 = vsel %vm219, %v2224, 0
      %v2301 = vsel %vm706, %v2243, 0
      %2303 = vmatprep.subr.bf16.mxu0 0
      %2304 = vmatpush1.bf16.msra.mxu0 0
      %2305 = vmatprep.subr.bf16.mxu0 0
      %2306 = vmatpush1.bf16.msra.mxu0 0
      %2307 = vmatprep.subr.bf16.mxu0 0
      %2308 = vmatpush1.bf16.msra.mxu0 0
      %2309 = vmatprep.subr.bf16.mxu0 0
      %2310 = vmatpush1.bf16.msra.mxu0 0
      %2311 = vmatprep.subr.bf16.mxu0 0
      %2312 = vmatpush1.bf16.msra.mxu0 0
      %2313 = vmatprep.subr.bf16.mxu0 0
      %2314 = vmatpush1.bf16.msra.mxu0 %v2301
      %2315 = vmatprep.subr.bf16.mxu0 0
      %2316 = vmatpush1.bf16.msra.mxu0 %v2242
      %2317 = vmatprep.subr.bf16.mxu0 0
      %2318 = vmatpush1.bf16.msra.mxu0 %v2241
      %2319 = vmatprep.subr.bf16.mxu0 0
      %2320 = vmatpush2.bf16.msra.mxu0 0
      %2321 = vmatprep.subr.bf16.mxu0 0
      %2322 = vmatpush2.bf16.msra.mxu0 0
      %2323 = vmatprep.subr.bf16.mxu0 0
      %2324 = vmatpush2.bf16.msra.mxu0 0
      %2325 = vmatprep.subr.bf16.mxu0 0
      %2326 = vmatpush2.bf16.msra.mxu0 0
      %2327 = vmatprep.subr.bf16.mxu0 0
      %2328 = vmatpush2.bf16.msra.mxu0 0
      %2329 = vmatprep.subr.bf16.mxu0 0
      %2330 = vmatpush2.bf16.msra.mxu0 0
      %2331 = vmatprep.subr.bf16.mxu0 0
      %2332 = vmatpush2.bf16.msra.mxu0 0
      %2333 = vmatprep.subr.bf16.mxu0 0
      %2334 = vmatpush2.bf16.msra.mxu0 0
      %2335 = vmatprep.mubr.bf16.mxu0 0
      %2336 = vmatmul.mubr.bf16.gmra.mxu0 %v2247
      %v2337 = vpop.f32.mrf.mxu0
      %v2338 = vadd.f32 0.0, %v2337
      %v2339 = vpop.f32.mrf.mxu0
      %v2340 = vpop.f32.mrf.mxu0
      %v2341 = vadd.f32 0.0, %v2340
      %v2342 = vpop.f32.mrf.mxu0
      %2343 = vmatprep.mubr.bf16.mxu0 0
      %2344 = vmatmul.mubr.bf16.gmra.mxu0 %v2250
      %v2345 = vpop.f32.mrf.mxu0
      %v2346 = vadd.f32 0.0, %v2345
      %v2347 = vpop.f32.mrf.mxu0
      %v2348 = vpop.f32.mrf.mxu0
      %v2349 = vadd.f32 0.0, %v2348
      %v2350 = vpop.f32.mrf.mxu0
      %2351 = vmatprep.mubr.bf16.mxu0 0
      %2352 = vmatmul.mubr.bf16.gmra.mxu0 %v2253
      %v2353 = vpop.f32.mrf.mxu0
      %v2354 = vadd.f32 0.0, %v2353
      %v2355 = vpop.f32.mrf.mxu0
      %v2356 = vpop.f32.mrf.mxu0
      %v2357 = vadd.f32 0.0, %v2356
      %v2358 = vpop.f32.mrf.mxu0
      %2359 = vmatprep.mubr.bf16.mxu0 0
      %2360 = vmatmul.mubr.bf16.gmra.mxu0 %v2256
      %v2361 = vpop.f32.mrf.mxu0
      %v2362 = vadd.f32 0.0, %v2361
      %v2363 = vpop.f32.mrf.mxu0
      %v2364 = vpop.f32.mrf.mxu0
      %v2365 = vadd.f32 0.0, %v2364
      %v2366 = vpop.f32.mrf.mxu0
      %2367 = vmatprep.mubr.bf16.mxu0 0
      %2368 = vmatmul.mubr.bf16.gmra.mxu0 %v2259
      %v2369 = vpop.f32.mrf.mxu0
      %v2370 = vadd.f32 0.0, %v2369
      %v2371 = vpop.f32.mrf.mxu0
      %v2372 = vpop.f32.mrf.mxu0
      %v2373 = vadd.f32 0.0, %v2372
      %v2374 = vpop.f32.mrf.mxu0
      %2375 = vmatprep.mubr.bf16.mxu0 0
      %2376 = vmatmul.mubr.bf16.gmra.mxu0 %v2262
      %v2377 = vpop.f32.mrf.mxu0
      %v2378 = vadd.f32 0.0, %v2377
      %v2379 = vpop.f32.mrf.mxu0
      %v2380 = vpop.f32.mrf.mxu0
      %v2381 = vadd.f32 0.0, %v2380
      %v2382 = vpop.f32.mrf.mxu0
      %2383 = vmatprep.mubr.bf16.mxu0 0
      %2384 = vmatmul.mubr.bf16.gmra.mxu0 %v2265
      %v2385 = vpop.f32.mrf.mxu0
      %v2386 = vadd.f32 0.0, %v2385
      %v2387 = vpop.f32.mrf.mxu0
      %v2388 = vpop.f32.mrf.mxu0
      %v2389 = vadd.f32 0.0, %v2388
      %v2390 = vpop.f32.mrf.mxu0
      %2391 = vmatprep.mubr.bf16.mxu0 0
      %2392 = vmatmul.mubr.bf16.gmra.mxu0 %v2268
      %v2393 = vpop.f32.mrf.mxu0
      %v2394 = vadd.f32 0.0, %v2393
      %v2395 = vpop.f32.mrf.mxu0
      %v2396 = vpop.f32.mrf.mxu0
      %v2397 = vadd.f32 0.0, %v2396
      %v2398 = vpop.f32.mrf.mxu0
      %2399 = vmatprep.mubr.bf16.mxu0 0
      %2400 = vmatmul.mubr.bf16.gmra.mxu0 %v2271
      %v2401 = vpop.f32.mrf.mxu0
      %v2402 = vadd.f32 0.0, %v2401
      %v2403 = vpop.f32.mrf.mxu0
      %v2404 = vpop.f32.mrf.mxu0
      %v2405 = vadd.f32 0.0, %v2404
      %v2406 = vpop.f32.mrf.mxu0
      %2407 = vmatprep.mubr.bf16.mxu0 0
      %2408 = vmatmul.mubr.bf16.gmra.mxu0 %v2274
      %v2409 = vpop.f32.mrf.mxu0
      %v2410 = vadd.f32 0.0, %v2409
      %v2411 = vpop.f32.mrf.mxu0
      %v2412 = vpop.f32.mrf.mxu0
      %v2413 = vadd.f32 0.0, %v2412
      %v2414 = vpop.f32.mrf.mxu0
      %2415 = vmatprep.mubr.bf16.mxu0 0
      %2416 = vmatmul.mubr.bf16.gmra.mxu0 %v2277
      %v2417 = vpop.f32.mrf.mxu0
      %v2418 = vadd.f32 0.0, %v2417
      %v2419 = vpop.f32.mrf.mxu0
      %v2420 = vpop.f32.mrf.mxu0
      %v2421 = vadd.f32 0.0, %v2420
      %v2422 = vpop.f32.mrf.mxu0
      %2423 = vmatprep.mubr.bf16.mxu0 0
      %2424 = vmatmul.mubr.bf16.gmra.mxu0 %v2280
      %v2425 = vpop.f32.mrf.mxu0
      %v2426 = vadd.f32 0.0, %v2425
      %v2427 = vpop.f32.mrf.mxu0
      %v2428 = vpop.f32.mrf.mxu0
      %v2429 = vadd.f32 0.0, %v2428
      %v2430 = vpop.f32.mrf.mxu0
      %2431 = vmatprep.mubr.bf16.mxu0 0
      %2432 = vmatmul.mubr.bf16.gmra.mxu0 %v2283
      %v2433 = vpop.f32.mrf.mxu0
      %v2434 = vadd.f32 0.0, %v2433
      %v2435 = vpop.f32.mrf.mxu0
      %v2436 = vpop.f32.mrf.mxu0
      %v2437 = vadd.f32 0.0, %v2436
      %v2438 = vpop.f32.mrf.mxu0
      %2439 = vmatprep.mubr.bf16.mxu0 0
      %2440 = vmatmul.mubr.bf16.gmra.mxu0 %v2286
      %v2441 = vpop.f32.mrf.mxu0
      %v2442 = vadd.f32 0.0, %v2441
      %v2443 = vpop.f32.mrf.mxu0
      %v2444 = vpop.f32.mrf.mxu0
      %v2445 = vadd.f32 0.0, %v2444
      %v2446 = vpop.f32.mrf.mxu0
      %2447 = vmatprep.mubr.bf16.mxu0 0
      %2448 = vmatmul.mubr.bf16.gmra.mxu0 %v2289
      %v2449 = vpop.f32.mrf.mxu0
      %v2450 = vadd.f32 0.0, %v2449
      %v2451 = vpop.f32.mrf.mxu0
      %v2452 = vpop.f32.mrf.mxu0
      %v2453 = vadd.f32 0.0, %v2452
      %v2454 = vpop.f32.mrf.mxu0
      %2455 = vmatprep.mubr.bf16.mxu0 0
      %2456 = vmatmul.mubr.bf16.gmra.mxu0 %v2292
      %v2457 = vpop.f32.mrf.mxu0
      %v2458 = vadd.f32 0.0, %v2457
      %v2459 = vpop.f32.mrf.mxu0
      %v2460 = vpop.f32.mrf.mxu0
      %v2461 = vadd.f32 0.0, %v2460
      %v2462 = vpop.f32.mrf.mxu0
      %2463 = vmatprep.mubr.bf16.mxu0 0
      %2464 = vmatmul.mubr.bf16.gmra.mxu0 %v2295
      %v2465 = vpop.f32.mrf.mxu0
      %v2466 = vadd.f32 0.0, %v2465
      %v2467 = vpop.f32.mrf.mxu0
      %v2468 = vpop.f32.mrf.mxu0
      %v2469 = vadd.f32 0.0, %v2468
      %v2470 = vpop.f32.mrf.mxu0
      %2471 = vmatprep.mubr.bf16.mxu0 0
      %2472 = vmatmul.mubr.bf16.gmra.mxu0 %v2298
      %v2473 = vpop.f32.mrf.mxu0
      %v2474 = vadd.f32 0.0, %v2473
      %v2475 = vpop.f32.mrf.mxu0
      %v2476 = vpop.f32.mrf.mxu0
      %v2477 = vadd.f32 0.0, %v2476
      %v2478 = vpop.f32.mrf.mxu0
      %2479 = vdwg.mxu0
      %v2480 = vadd.f32 %v2135, %v2338
      %v2481 = vadd.f32 %v2136, %v2341
      %v2482 = vadd.f32 %v2137, %v2346
      %v2483 = vadd.f32 %v2138, %v2349
      %v2484 = vadd.f32 %v2139, %v2354
      %v2485 = vadd.f32 %v2140, %v2357
      %v2486 = vadd.f32 %v2141, %v2362
      %v2487 = vadd.f32 %v2142, %v2365
      %v2488 = vadd.f32 %v2143, %v2370
      %v2489 = vadd.f32 %v2144, %v2373
      %v2490 = vadd.f32 %v2145, %v2378
      %v2491 = vadd.f32 %v2146, %v2381
      %v2492 = vadd.f32 %v2147, %v2386
      %v2493 = vadd.f32 %v2148, %v2389
      %v2494 = vadd.f32 %v2149, %v2394
      %v2495 = vadd.f32 %v2150, %v2397
      %v2496 = vadd.f32 %v2151, %v2402
      %v2497 = vadd.f32 %v2152, %v2405
      %v2498 = vadd.f32 %v2153, %v2410
      %v2499 = vadd.f32 %v2154, %v2413
      %v2500 = vadd.f32 %v2155, %v2418
      %v2501 = vadd.f32 %v2156, %v2421
      %v2502 = vadd.f32 %v2157, %v2426
      %v2503 = vadd.f32 %v2158, %v2429
      %v2504 = vadd.f32 %v2159, %v2434
      %v2505 = vadd.f32 %v2160, %v2437
      %v2506 = vadd.f32 %v2161, %v2442
      %v2507 = vadd.f32 %v2162, %v2445
      %v2508 = vadd.f32 %v2163, %v2450
      %v2509 = vadd.f32 %v2164, %v2453
      %v2510 = vadd.f32 %v2165, %v2458
      %v2511 = vadd.f32 %v2166, %v2461
      %v2512 = vadd.f32 %v2167, %v2466
      %v2513 = vadd.f32 %v2168, %v2469
      %v2514 = vadd.f32 %v2169, %v2474
      %v2515 = vadd.f32 %v2170, %v2477
      %v2516 = vld [vmem:[#allocation2 + $0x24] sm:$0xff]
      %v2517 = vld [vmem:[#allocation2 + $0x2c] sm:$0xff]
      %v2518 = vld [vmem:[#allocation2 + $0x34] sm:$0xff]
      %v2519 = vld [vmem:[#allocation2 + $0x3c] sm:$0xff]
      %v2520 = vld [vmem:[#allocation2 + $0x44] sm:$0xff]
      %v2521 = vld [vmem:[#allocation2 + $0x4c] sm:$0xff]
      %v2522 = vld [vmem:[#allocation2 + $0x54] sm:$0xff]
      %v2523 = vld [vmem:[#allocation2 + $0x5c] sm:$0xff]
      %v2524 = vld [vmem:[#allocation2 + $0x64] sm:$0xff]
      %v2525 = vld [vmem:[#allocation2 + $0x6c] sm:$0xff]
      %v2526 = vld [vmem:[#allocation2 + $0x74] sm:$0xff]
      %v2527 = vld [vmem:[#allocation2 + $0x7c] sm:$0xff]
      %v2528 = vld [vmem:[#allocation2 + $0x84] sm:$0xff]
      %v2529 = vld [vmem:[#allocation2 + $0x8c] sm:$0xff]
      %v2530 = vld [vmem:[#allocation2 + $0x94] sm:$0xff]
      %v2531 = vld [vmem:[#allocation2 + $0x9c] sm:$0xff]
      %v2532 = vld [vmem:[#allocation2 + $0xa4] sm:$0xff]
      %v2533 = vld [vmem:[#allocation2 + $0xac] sm:$0xff]
      %v2534 = vld [vmem:[#allocation2 + $0xb4] sm:$0xff]
      %v2535 = vld [vmem:[#allocation2 + $0xbc] sm:$0xff]
      %v2536 = vld [vmem:[#allocation2 + $0xc4] sm:$0xff]
      %v2537 = vld [vmem:[#allocation2 + $0xcc] sm:$0xff]
      %v2538 = vld [vmem:[#allocation2 + $0xd4] sm:$0xff]
      %v2539 = vld [vmem:[#allocation2 + $0xdc] sm:$0xff]
      %v2540 = vld [vmem:[#allocation2 + $0xe4] sm:$0xff]
      %v2541 = vld [vmem:[#allocation2 + $0xec] sm:$0xff]
      %v2542 = vld [vmem:[#allocation2 + $0xf4] sm:$0xff]
      %v2543 = vld [vmem:[#allocation2 + $0xfc] sm:$0xff]
      %v2544 = vld [vmem:[#allocation2 + $0x104] sm:$0xff]
      %v2545 = vld [vmem:[#allocation2 + $0x10c] sm:$0xff]
      %v2546 = vld [vmem:[#allocation2 + $0x114] sm:$0xff]
      %v2547 = vld [vmem:[#allocation2 + $0x11c] sm:$0xff]
      %v2548 = vld [vmem:[#allocation2 + $0x124] sm:$0xff]
      %v2549 = vld [vmem:[#allocation2 + $0x12c] sm:$0xff]
      %v2550 = vld [vmem:[#allocation2 + $0x134] sm:$0xff]
      %v2551 = vld [vmem:[#allocation2 + $0x13c] sm:$0xff]
      %v2552 = vpack.c.bf16 %v2517, %v2516
      %v2553 = vpack.c.bf16 %v2519, %v2518
      %v2554 = vpack.c.bf16 %v2521, %v2520
      %v2555 = vpack.c.bf16 %v2523, %v2522
      %v2556 = vpack.c.bf16 %v2525, %v2524
      %v2557 = vpack.c.bf16 %v2527, %v2526
      %v2558 = vpack.c.bf16 %v2529, %v2528
      %v2559 = vpack.c.bf16 %v2531, %v2530
      %v2560 = vpack.c.bf16 %v2533, %v2532
      %v2561 = vpack.c.bf16 %v2535, %v2534
      %v2562 = vpack.c.bf16 %v2537, %v2536
      %v2563 = vpack.c.bf16 %v2539, %v2538
      %v2564 = vpack.c.bf16 %v2541, %v2540
      %v2565 = vpack.c.bf16 %v2543, %v2542
      %v2566 = vpack.c.bf16 %v2545, %v2544
      %v2567 = vpack.c.bf16 %v2547, %v2546
      %v2568 = vpack.c.bf16 %v2549, %v2548
      %v2569 = vpack.c.bf16 %v2551, %v2550
      %s2570 = scalar_lea.vmem %s2, 120
      %v2571 = vld [vmem:[%s2570] sm:$0xf]
      %v2572 = vld [vmem:[%s2570 + $0x4] sm:$0xf]
      %v2573 = vld [vmem:[%s2570 + $0x8] sm:$0xf]
      %v2574 = vld [vmem:[%s2570 + $0xc] sm:$0xf]
      %v2575 = vld [vmem:[%s2570 + $0x10] sm:$0x3]
      %v2581 = vunpack.c.l.b16 %v2571
      %v2582 = vunpack.c.l.b16 %v2572
      %v2583 = vunpack.c.l.b16 %v2573
      %v2584 = vunpack.c.l.b16 %v2574
      %v2585 = vunpack.c.l.b16 %v2575
      %v2586 = vpack.c.b16 %v2582, %v2581
      %v2587 = vpack.c.b16 %v2584, %v2583
      %v2588 = vpack.c.b16 %v2585, %v2585
      %v2592 = vsel %vm219, %v2552, 0
      %v2595 = vsel %vm219, %v2553, 0
      %v2598 = vsel %vm219, %v2554, 0
      %v2601 = vsel %vm219, %v2555, 0
      %v2604 = vsel %vm219, %v2556, 0
      %v2607 = vsel %vm219, %v2557, 0
      %v2610 = vsel %vm219, %v2558, 0
      %v2613 = vsel %vm219, %v2559, 0
      %v2616 = vsel %vm219, %v2560, 0
      %v2619 = vsel %vm219, %v2561, 0
      %v2622 = vsel %vm219, %v2562, 0
      %v2625 = vsel %vm219, %v2563, 0
      %v2628 = vsel %vm219, %v2564, 0
      %v2631 = vsel %vm219, %v2565, 0
      %v2634 = vsel %vm219, %v2566, 0
      %v2637 = vsel %vm219, %v2567, 0
      %v2640 = vsel %vm219, %v2568, 0
      %v2643 = vsel %vm219, %v2569, 0
      %v2646 = vsel %vm706, %v2588, 0
      %2648 = vmatprep.subr.bf16.mxu0 0
      %2649 = vmatpush1.bf16.msra.mxu0 0
      %2650 = vmatprep.subr.bf16.mxu0 0
      %2651 = vmatpush1.bf16.msra.mxu0 0
      %2652 = vmatprep.subr.bf16.mxu0 0
      %2653 = vmatpush1.bf16.msra.mxu0 0
      %2654 = vmatprep.subr.bf16.mxu0 0
      %2655 = vmatpush1.bf16.msra.mxu0 0
      %2656 = vmatprep.subr.bf16.mxu0 0
      %2657 = vmatpush1.bf16.msra.mxu0 0
      %2658 = vmatprep.subr.bf16.mxu0 0
      %2659 = vmatpush1.bf16.msra.mxu0 %v2646
      %2660 = vmatprep.subr.bf16.mxu0 0
      %2661 = vmatpush1.bf16.msra.mxu0 %v2587
      %2662 = vmatprep.subr.bf16.mxu0 0
      %2663 = vmatpush1.bf16.msra.mxu0 %v2586
      %2664 = vmatprep.subr.bf16.mxu0 0
      %2665 = vmatpush2.bf16.msra.mxu0 0
      %2666 = vmatprep.subr.bf16.mxu0 0
      %2667 = vmatpush2.bf16.msra.mxu0 0
      %2668 = vmatprep.subr.bf16.mxu0 0
      %2669 = vmatpush2.bf16.msra.mxu0 0
      %2670 = vmatprep.subr.bf16.mxu0 0
      %2671 = vmatpush2.bf16.msra.mxu0 0
      %2672 = vmatprep.subr.bf16.mxu0 0
      %2673 = vmatpush2.bf16.msra.mxu0 0
      %2674 = vmatprep.subr.bf16.mxu0 0
      %2675 = vmatpush2.bf16.msra.mxu0 0
      %2676 = vmatprep.subr.bf16.mxu0 0
      %2677 = vmatpush2.bf16.msra.mxu0 0
      %2678 = vmatprep.subr.bf16.mxu0 0
      %2679 = vmatpush2.bf16.msra.mxu0 0
      %2680 = vmatprep.mubr.bf16.mxu0 0
      %2681 = vmatmul.mubr.bf16.gmra.mxu0 %v2592
      %v2682 = vpop.f32.mrf.mxu0
      %v2683 = vadd.f32 0.0, %v2682
      %v2684 = vpop.f32.mrf.mxu0
      %v2685 = vpop.f32.mrf.mxu0
      %v2686 = vadd.f32 0.0, %v2685
      %v2687 = vpop.f32.mrf.mxu0
      %2688 = vmatprep.mubr.bf16.mxu0 0
      %2689 = vmatmul.mubr.bf16.gmra.mxu0 %v2595
      %v2690 = vpop.f32.mrf.mxu0
      %v2691 = vadd.f32 0.0, %v2690
      %v2692 = vpop.f32.mrf.mxu0
      %v2693 = vpop.f32.mrf.mxu0
      %v2694 = vadd.f32 0.0, %v2693
      %v2695 = vpop.f32.mrf.mxu0
      %2696 = vmatprep.mubr.bf16.mxu0 0
      %2697 = vmatmul.mubr.bf16.gmra.mxu0 %v2598
      %v2698 = vpop.f32.mrf.mxu0
      %v2699 = vadd.f32 0.0, %v2698
      %v2700 = vpop.f32.mrf.mxu0
      %v2701 = vpop.f32.mrf.mxu0
      %v2702 = vadd.f32 0.0, %v2701
      %v2703 = vpop.f32.mrf.mxu0
      %2704 = vmatprep.mubr.bf16.mxu0 0
      %2705 = vmatmul.mubr.bf16.gmra.mxu0 %v2601
      %v2706 = vpop.f32.mrf.mxu0
      %v2707 = vadd.f32 0.0, %v2706
      %v2708 = vpop.f32.mrf.mxu0
      %v2709 = vpop.f32.mrf.mxu0
      %v2710 = vadd.f32 0.0, %v2709
      %v2711 = vpop.f32.mrf.mxu0
      %2712 = vmatprep.mubr.bf16.mxu0 0
      %2713 = vmatmul.mubr.bf16.gmra.mxu0 %v2604
      %v2714 = vpop.f32.mrf.mxu0
      %v2715 = vadd.f32 0.0, %v2714
      %v2716 = vpop.f32.mrf.mxu0
      %v2717 = vpop.f32.mrf.mxu0
      %v2718 = vadd.f32 0.0, %v2717
      %v2719 = vpop.f32.mrf.mxu0
      %2720 = vmatprep.mubr.bf16.mxu0 0
      %2721 = vmatmul.mubr.bf16.gmra.mxu0 %v2607
      %v2722 = vpop.f32.mrf.mxu0
      %v2723 = vadd.f32 0.0, %v2722
      %v2724 = vpop.f32.mrf.mxu0
      %v2725 = vpop.f32.mrf.mxu0
      %v2726 = vadd.f32 0.0, %v2725
      %v2727 = vpop.f32.mrf.mxu0
      %2728 = vmatprep.mubr.bf16.mxu0 0
      %2729 = vmatmul.mubr.bf16.gmra.mxu0 %v2610
      %v2730 = vpop.f32.mrf.mxu0
      %v2731 = vadd.f32 0.0, %v2730
      %v2732 = vpop.f32.mrf.mxu0
      %v2733 = vpop.f32.mrf.mxu0
      %v2734 = vadd.f32 0.0, %v2733
      %v2735 = vpop.f32.mrf.mxu0
      %2736 = vmatprep.mubr.bf16.mxu0 0
      %2737 = vmatmul.mubr.bf16.gmra.mxu0 %v2613
      %v2738 = vpop.f32.mrf.mxu0
      %v2739 = vadd.f32 0.0, %v2738
      %v2740 = vpop.f32.mrf.mxu0
      %v2741 = vpop.f32.mrf.mxu0
      %v2742 = vadd.f32 0.0, %v2741
      %v2743 = vpop.f32.mrf.mxu0
      %2744 = vmatprep.mubr.bf16.mxu0 0
      %2745 = vmatmul.mubr.bf16.gmra.mxu0 %v2616
      %v2746 = vpop.f32.mrf.mxu0
      %v2747 = vadd.f32 0.0, %v2746
      %v2748 = vpop.f32.mrf.mxu0
      %v2749 = vpop.f32.mrf.mxu0
      %v2750 = vadd.f32 0.0, %v2749
      %v2751 = vpop.f32.mrf.mxu0
      %2752 = vmatprep.mubr.bf16.mxu0 0
      %2753 = vmatmul.mubr.bf16.gmra.mxu0 %v2619
      %v2754 = vpop.f32.mrf.mxu0
      %v2755 = vadd.f32 0.0, %v2754
      %v2756 = vpop.f32.mrf.mxu0
      %v2757 = vpop.f32.mrf.mxu0
      %v2758 = vadd.f32 0.0, %v2757
      %v2759 = vpop.f32.mrf.mxu0
      %2760 = vmatprep.mubr.bf16.mxu0 0
      %2761 = vmatmul.mubr.bf16.gmra.mxu0 %v2622
      %v2762 = vpop.f32.mrf.mxu0
      %v2763 = vadd.f32 0.0, %v2762
      %v2764 = vpop.f32.mrf.mxu0
      %v2765 = vpop.f32.mrf.mxu0
      %v2766 = vadd.f32 0.0, %v2765
      %v2767 = vpop.f32.mrf.mxu0
      %2768 = vmatprep.mubr.bf16.mxu0 0
      %2769 = vmatmul.mubr.bf16.gmra.mxu0 %v2625
      %v2770 = vpop.f32.mrf.mxu0
      %v2771 = vadd.f32 0.0, %v2770
      %v2772 = vpop.f32.mrf.mxu0
      %v2773 = vpop.f32.mrf.mxu0
      %v2774 = vadd.f32 0.0, %v2773
      %v2775 = vpop.f32.mrf.mxu0
      %2776 = vmatprep.mubr.bf16.mxu0 0
      %2777 = vmatmul.mubr.bf16.gmra.mxu0 %v2628
      %v2778 = vpop.f32.mrf.mxu0
      %v2779 = vadd.f32 0.0, %v2778
      %v2780 = vpop.f32.mrf.mxu0
      %v2781 = vpop.f32.mrf.mxu0
      %v2782 = vadd.f32 0.0, %v2781
      %v2783 = vpop.f32.mrf.mxu0
      %2784 = vmatprep.mubr.bf16.mxu0 0
      %2785 = vmatmul.mubr.bf16.gmra.mxu0 %v2631
      %v2786 = vpop.f32.mrf.mxu0
      %v2787 = vadd.f32 0.0, %v2786
      %v2788 = vpop.f32.mrf.mxu0
      %v2789 = vpop.f32.mrf.mxu0
      %v2790 = vadd.f32 0.0, %v2789
      %v2791 = vpop.f32.mrf.mxu0
      %2792 = vmatprep.mubr.bf16.mxu0 0
      %2793 = vmatmul.mubr.bf16.gmra.mxu0 %v2634
      %v2794 = vpop.f32.mrf.mxu0
      %v2795 = vadd.f32 0.0, %v2794
      %v2796 = vpop.f32.mrf.mxu0
      %v2797 = vpop.f32.mrf.mxu0
      %v2798 = vadd.f32 0.0, %v2797
      %v2799 = vpop.f32.mrf.mxu0
      %2800 = vmatprep.mubr.bf16.mxu0 0
      %2801 = vmatmul.mubr.bf16.gmra.mxu0 %v2637
      %v2802 = vpop.f32.mrf.mxu0
      %v2803 = vadd.f32 0.0, %v2802
      %v2804 = vpop.f32.mrf.mxu0
      %v2805 = vpop.f32.mrf.mxu0
      %v2806 = vadd.f32 0.0, %v2805
      %v2807 = vpop.f32.mrf.mxu0
      %2808 = vmatprep.mubr.bf16.mxu0 0
      %2809 = vmatmul.mubr.bf16.gmra.mxu0 %v2640
      %v2810 = vpop.f32.mrf.mxu0
      %v2811 = vadd.f32 0.0, %v2810
      %v2812 = vpop.f32.mrf.mxu0
      %v2813 = vpop.f32.mrf.mxu0
      %v2814 = vadd.f32 0.0, %v2813
      %v2815 = vpop.f32.mrf.mxu0
      %2816 = vmatprep.mubr.bf16.mxu0 0
      %2817 = vmatmul.mubr.bf16.gmra.mxu0 %v2643
      %v2818 = vpop.f32.mrf.mxu0
      %v2819 = vadd.f32 0.0, %v2818
      %v2820 = vpop.f32.mrf.mxu0
      %v2821 = vpop.f32.mrf.mxu0
      %v2822 = vadd.f32 0.0, %v2821
      %v2823 = vpop.f32.mrf.mxu0
      %2824 = vdwg.mxu0
      %v2825 = vadd.f32 %v2480, %v2683
      %v2826 = vadd.f32 %v2481, %v2686
      %v2827 = vadd.f32 %v2482, %v2691
      %v2828 = vadd.f32 %v2483, %v2694
      %v2829 = vadd.f32 %v2484, %v2699
      %v2830 = vadd.f32 %v2485, %v2702
      %v2831 = vadd.f32 %v2486, %v2707
      %v2832 = vadd.f32 %v2487, %v2710
      %v2833 = vadd.f32 %v2488, %v2715
      %v2834 = vadd.f32 %v2489, %v2718
      %v2835 = vadd.f32 %v2490, %v2723
      %v2836 = vadd.f32 %v2491, %v2726
      %v2837 = vadd.f32 %v2492, %v2731
      %v2838 = vadd.f32 %v2493, %v2734
      %v2839 = vadd.f32 %v2494, %v2739
      %v2840 = vadd.f32 %v2495, %v2742
      %v2841 = vadd.f32 %v2496, %v2747
      %v2842 = vadd.f32 %v2497, %v2750
      %v2843 = vadd.f32 %v2498, %v2755
      %v2844 = vadd.f32 %v2499, %v2758
      %v2845 = vadd.f32 %v2500, %v2763
      %v2846 = vadd.f32 %v2501, %v2766
      %v2847 = vadd.f32 %v2502, %v2771
      %v2848 = vadd.f32 %v2503, %v2774
      %v2849 = vadd.f32 %v2504, %v2779
      %v2850 = vadd.f32 %v2505, %v2782
      %v2851 = vadd.f32 %v2506, %v2787
      %v2852 = vadd.f32 %v2507, %v2790
      %v2853 = vadd.f32 %v2508, %v2795
      %v2854 = vadd.f32 %v2509, %v2798
      %v2855 = vadd.f32 %v2510, %v2803
      %v2856 = vadd.f32 %v2511, %v2806
      %v2857 = vadd.f32 %v2512, %v2811
      %v2858 = vadd.f32 %v2513, %v2814
      %v2859 = vadd.f32 %v2514, %v2819
      %v2860 = vadd.f32 %v2515, %v2822
      %v2861 = vld [vmem:[#allocation2 + $0x25] sm:$0xff]
      %v2862 = vld [vmem:[#allocation2 + $0x2d] sm:$0xff]
      %v2863 = vld [vmem:[#allocation2 + $0x35] sm:$0xff]
      %v2864 = vld [vmem:[#allocation2 + $0x3d] sm:$0xff]
      %v2865 = vld [vmem:[#allocation2 + $0x45] sm:$0xff]
      %v2866 = vld [vmem:[#allocation2 + $0x4d] sm:$0xff]
      %v2867 = vld [vmem:[#allocation2 + $0x55] sm:$0xff]
      %v2868 = vld [vmem:[#allocation2 + $0x5d] sm:$0xff]
      %v2869 = vld [vmem:[#allocation2 + $0x65] sm:$0xff]
      %v2870 = vld [vmem:[#allocation2 + $0x6d] sm:$0xff]
      %v2871 = vld [vmem:[#allocation2 + $0x75] sm:$0xff]
      %v2872 = vld [vmem:[#allocation2 + $0x7d] sm:$0xff]
      %v2873 = vld [vmem:[#allocation2 + $0x85] sm:$0xff]
      %v2874 = vld [vmem:[#allocation2 + $0x8d] sm:$0xff]
      %v2875 = vld [vmem:[#allocation2 + $0x95] sm:$0xff]
      %v2876 = vld [vmem:[#allocation2 + $0x9d] sm:$0xff]
      %v2877 = vld [vmem:[#allocation2 + $0xa5] sm:$0xff]
      %v2878 = vld [vmem:[#allocation2 + $0xad] sm:$0xff]
      %v2879 = vld [vmem:[#allocation2 + $0xb5] sm:$0xff]
      %v2880 = vld [vmem:[#allocation2 + $0xbd] sm:$0xff]
      %v2881 = vld [vmem:[#allocation2 + $0xc5] sm:$0xff]
      %v2882 = vld [vmem:[#allocation2 + $0xcd] sm:$0xff]
      %v2883 = vld [vmem:[#allocation2 + $0xd5] sm:$0xff]
      %v2884 = vld [vmem:[#allocation2 + $0xdd] sm:$0xff]
      %v2885 = vld [vmem:[#allocation2 + $0xe5] sm:$0xff]
      %v2886 = vld [vmem:[#allocation2 + $0xed] sm:$0xff]
      %v2887 = vld [vmem:[#allocation2 + $0xf5] sm:$0xff]
      %v2888 = vld [vmem:[#allocation2 + $0xfd] sm:$0xff]
      %v2889 = vld [vmem:[#allocation2 + $0x105] sm:$0xff]
      %v2890 = vld [vmem:[#allocation2 + $0x10d] sm:$0xff]
      %v2891 = vld [vmem:[#allocation2 + $0x115] sm:$0xff]
      %v2892 = vld [vmem:[#allocation2 + $0x11d] sm:$0xff]
      %v2893 = vld [vmem:[#allocation2 + $0x125] sm:$0xff]
      %v2894 = vld [vmem:[#allocation2 + $0x12d] sm:$0xff]
      %v2895 = vld [vmem:[#allocation2 + $0x135] sm:$0xff]
      %v2896 = vld [vmem:[#allocation2 + $0x13d] sm:$0xff]
      %v2897 = vpack.c.bf16 %v2862, %v2861
      %v2898 = vpack.c.bf16 %v2864, %v2863
      %v2899 = vpack.c.bf16 %v2866, %v2865
      %v2900 = vpack.c.bf16 %v2868, %v2867
      %v2901 = vpack.c.bf16 %v2870, %v2869
      %v2902 = vpack.c.bf16 %v2872, %v2871
      %v2903 = vpack.c.bf16 %v2874, %v2873
      %v2904 = vpack.c.bf16 %v2876, %v2875
      %v2905 = vpack.c.bf16 %v2878, %v2877
      %v2906 = vpack.c.bf16 %v2880, %v2879
      %v2907 = vpack.c.bf16 %v2882, %v2881
      %v2908 = vpack.c.bf16 %v2884, %v2883
      %v2909 = vpack.c.bf16 %v2886, %v2885
      %v2910 = vpack.c.bf16 %v2888, %v2887
      %v2911 = vpack.c.bf16 %v2890, %v2889
      %v2912 = vpack.c.bf16 %v2892, %v2891
      %v2913 = vpack.c.bf16 %v2894, %v2893
      %v2914 = vpack.c.bf16 %v2896, %v2895
      %s2915 = scalar_lea.vmem %s2, 140
      %v2916 = vld [vmem:[%s2915] sm:$0xf]
      %v2917 = vld [vmem:[%s2915 + $0x4] sm:$0xf]
      %v2918 = vld [vmem:[%s2915 + $0x8] sm:$0xf]
      %v2919 = vld [vmem:[%s2915 + $0xc] sm:$0xf]
      %v2920 = vld [vmem:[%s2915 + $0x10] sm:$0x3]
      %v2926 = vunpack.c.l.b16 %v2916
      %v2927 = vunpack.c.l.b16 %v2917
      %v2928 = vunpack.c.l.b16 %v2918
      %v2929 = vunpack.c.l.b16 %v2919
      %v2930 = vunpack.c.l.b16 %v2920
      %v2931 = vpack.c.b16 %v2927, %v2926
      %v2932 = vpack.c.b16 %v2929, %v2928
      %v2933 = vpack.c.b16 %v2930, %v2930
      %v2937 = vsel %vm219, %v2897, 0
      %v2940 = vsel %vm219, %v2898, 0
      %v2943 = vsel %vm219, %v2899, 0
      %v2946 = vsel %vm219, %v2900, 0
      %v2949 = vsel %vm219, %v2901, 0
      %v2952 = vsel %vm219, %v2902, 0
      %v2955 = vsel %vm219, %v2903, 0
      %v2958 = vsel %vm219, %v2904, 0
      %v2961 = vsel %vm219, %v2905, 0
      %v2964 = vsel %vm219, %v2906, 0
      %v2967 = vsel %vm219, %v2907, 0
      %v2970 = vsel %vm219, %v2908, 0
      %v2973 = vsel %vm219, %v2909, 0
      %v2976 = vsel %vm219, %v2910, 0
      %v2979 = vsel %vm219, %v2911, 0
      %v2982 = vsel %vm219, %v2912, 0
      %v2985 = vsel %vm219, %v2913, 0
      %v2988 = vsel %vm219, %v2914, 0
      %v2991 = vsel %vm706, %v2933, 0
      %2993 = vmatprep.subr.bf16.mxu0 0
      %2994 = vmatpush1.bf16.msra.mxu0 0
      %2995 = vmatprep.subr.bf16.mxu0 0
      %2996 = vmatpush1.bf16.msra.mxu0 0
      %2997 = vmatprep.subr.bf16.mxu0 0
      %2998 = vmatpush1.bf16.msra.mxu0 0
      %2999 = vmatprep.subr.bf16.mxu0 0
      %3000 = vmatpush1.bf16.msra.mxu0 0
      %3001 = vmatprep.subr.bf16.mxu0 0
      %3002 = vmatpush1.bf16.msra.mxu0 0
      %3003 = vmatprep.subr.bf16.mxu0 0
      %3004 = vmatpush1.bf16.msra.mxu0 %v2991
      %3005 = vmatprep.subr.bf16.mxu0 0
      %3006 = vmatpush1.bf16.msra.mxu0 %v2932
      %3007 = vmatprep.subr.bf16.mxu0 0
      %3008 = vmatpush1.bf16.msra.mxu0 %v2931
      %3009 = vmatprep.subr.bf16.mxu0 0
      %3010 = vmatpush2.bf16.msra.mxu0 0
      %3011 = vmatprep.subr.bf16.mxu0 0
      %3012 = vmatpush2.bf16.msra.mxu0 0
      %3013 = vmatprep.subr.bf16.mxu0 0
      %3014 = vmatpush2.bf16.msra.mxu0 0
      %3015 = vmatprep.subr.bf16.mxu0 0
      %3016 = vmatpush2.bf16.msra.mxu0 0
      %3017 = vmatprep.subr.bf16.mxu0 0
      %3018 = vmatpush2.bf16.msra.mxu0 0
      %3019 = vmatprep.subr.bf16.mxu0 0
      %3020 = vmatpush2.bf16.msra.mxu0 0
      %3021 = vmatprep.subr.bf16.mxu0 0
      %3022 = vmatpush2.bf16.msra.mxu0 0
      %3023 = vmatprep.subr.bf16.mxu0 0
      %3024 = vmatpush2.bf16.msra.mxu0 0
      %3025 = vmatprep.mubr.bf16.mxu0 0
      %3026 = vmatmul.mubr.bf16.gmra.mxu0 %v2937
      %v3027 = vpop.f32.mrf.mxu0
      %v3028 = vadd.f32 0.0, %v3027
      %v3029 = vpop.f32.mrf.mxu0
      %v3030 = vpop.f32.mrf.mxu0
      %v3031 = vadd.f32 0.0, %v3030
      %v3032 = vpop.f32.mrf.mxu0
      %3033 = vmatprep.mubr.bf16.mxu0 0
      %3034 = vmatmul.mubr.bf16.gmra.mxu0 %v2940
      %v3035 = vpop.f32.mrf.mxu0
      %v3036 = vadd.f32 0.0, %v3035
      %v3037 = vpop.f32.mrf.mxu0
      %v3038 = vpop.f32.mrf.mxu0
      %v3039 = vadd.f32 0.0, %v3038
      %v3040 = vpop.f32.mrf.mxu0
      %3041 = vmatprep.mubr.bf16.mxu0 0
      %3042 = vmatmul.mubr.bf16.gmra.mxu0 %v2943
      %v3043 = vpop.f32.mrf.mxu0
      %v3044 = vadd.f32 0.0, %v3043
      %v3045 = vpop.f32.mrf.mxu0
      %v3046 = vpop.f32.mrf.mxu0
      %v3047 = vadd.f32 0.0, %v3046
      %v3048 = vpop.f32.mrf.mxu0
      %3049 = vmatprep.mubr.bf16.mxu0 0
      %3050 = vmatmul.mubr.bf16.gmra.mxu0 %v2946
      %v3051 = vpop.f32.mrf.mxu0
      %v3052 = vadd.f32 0.0, %v3051
      %v3053 = vpop.f32.mrf.mxu0
      %v3054 = vpop.f32.mrf.mxu0
      %v3055 = vadd.f32 0.0, %v3054
      %v3056 = vpop.f32.mrf.mxu0
      %3057 = vmatprep.mubr.bf16.mxu0 0
      %3058 = vmatmul.mubr.bf16.gmra.mxu0 %v2949
      %v3059 = vpop.f32.mrf.mxu0
      %v3060 = vadd.f32 0.0, %v3059
      %v3061 = vpop.f32.mrf.mxu0
      %v3062 = vpop.f32.mrf.mxu0
      %v3063 = vadd.f32 0.0, %v3062
      %v3064 = vpop.f32.mrf.mxu0
      %3065 = vmatprep.mubr.bf16.mxu0 0
      %3066 = vmatmul.mubr.bf16.gmra.mxu0 %v2952
      %v3067 = vpop.f32.mrf.mxu0
      %v3068 = vadd.f32 0.0, %v3067
      %v3069 = vpop.f32.mrf.mxu0
      %v3070 = vpop.f32.mrf.mxu0
      %v3071 = vadd.f32 0.0, %v3070
      %v3072 = vpop.f32.mrf.mxu0
      %3073 = vmatprep.mubr.bf16.mxu0 0
      %3074 = vmatmul.mubr.bf16.gmra.mxu0 %v2955
      %v3075 = vpop.f32.mrf.mxu0
      %v3076 = vadd.f32 0.0, %v3075
      %v3077 = vpop.f32.mrf.mxu0
      %v3078 = vpop.f32.mrf.mxu0
      %v3079 = vadd.f32 0.0, %v3078
      %v3080 = vpop.f32.mrf.mxu0
      %3081 = vmatprep.mubr.bf16.mxu0 0
      %3082 = vmatmul.mubr.bf16.gmra.mxu0 %v2958
      %v3083 = vpop.f32.mrf.mxu0
      %v3084 = vadd.f32 0.0, %v3083
      %v3085 = vpop.f32.mrf.mxu0
      %v3086 = vpop.f32.mrf.mxu0
      %v3087 = vadd.f32 0.0, %v3086
      %v3088 = vpop.f32.mrf.mxu0
      %3089 = vmatprep.mubr.bf16.mxu0 0
      %3090 = vmatmul.mubr.bf16.gmra.mxu0 %v2961
      %v3091 = vpop.f32.mrf.mxu0
      %v3092 = vadd.f32 0.0, %v3091
      %v3093 = vpop.f32.mrf.mxu0
      %v3094 = vpop.f32.mrf.mxu0
      %v3095 = vadd.f32 0.0, %v3094
      %v3096 = vpop.f32.mrf.mxu0
      %3097 = vmatprep.mubr.bf16.mxu0 0
      %3098 = vmatmul.mubr.bf16.gmra.mxu0 %v2964
      %v3099 = vpop.f32.mrf.mxu0
      %v3100 = vadd.f32 0.0, %v3099
      %v3101 = vpop.f32.mrf.mxu0
      %v3102 = vpop.f32.mrf.mxu0
      %v3103 = vadd.f32 0.0, %v3102
      %v3104 = vpop.f32.mrf.mxu0
      %3105 = vmatprep.mubr.bf16.mxu0 0
      %3106 = vmatmul.mubr.bf16.gmra.mxu0 %v2967
      %v3107 = vpop.f32.mrf.mxu0
      %v3108 = vadd.f32 0.0, %v3107
      %v3109 = vpop.f32.mrf.mxu0
      %v3110 = vpop.f32.mrf.mxu0
      %v3111 = vadd.f32 0.0, %v3110
      %v3112 = vpop.f32.mrf.mxu0
      %3113 = vmatprep.mubr.bf16.mxu0 0
      %3114 = vmatmul.mubr.bf16.gmra.mxu0 %v2970
      %v3115 = vpop.f32.mrf.mxu0
      %v3116 = vadd.f32 0.0, %v3115
      %v3117 = vpop.f32.mrf.mxu0
      %v3118 = vpop.f32.mrf.mxu0
      %v3119 = vadd.f32 0.0, %v3118
      %v3120 = vpop.f32.mrf.mxu0
      %3121 = vmatprep.mubr.bf16.mxu0 0
      %3122 = vmatmul.mubr.bf16.gmra.mxu0 %v2973
      %v3123 = vpop.f32.mrf.mxu0
      %v3124 = vadd.f32 0.0, %v3123
      %v3125 = vpop.f32.mrf.mxu0
      %v3126 = vpop.f32.mrf.mxu0
      %v3127 = vadd.f32 0.0, %v3126
      %v3128 = vpop.f32.mrf.mxu0
      %3129 = vmatprep.mubr.bf16.mxu0 0
      %3130 = vmatmul.mubr.bf16.gmra.mxu0 %v2976
      %v3131 = vpop.f32.mrf.mxu0
      %v3132 = vadd.f32 0.0, %v3131
      %v3133 = vpop.f32.mrf.mxu0
      %v3134 = vpop.f32.mrf.mxu0
      %v3135 = vadd.f32 0.0, %v3134
      %v3136 = vpop.f32.mrf.mxu0
      %3137 = vmatprep.mubr.bf16.mxu0 0
      %3138 = vmatmul.mubr.bf16.gmra.mxu0 %v2979
      %v3139 = vpop.f32.mrf.mxu0
      %v3140 = vadd.f32 0.0, %v3139
      %v3141 = vpop.f32.mrf.mxu0
      %v3142 = vpop.f32.mrf.mxu0
      %v3143 = vadd.f32 0.0, %v3142
      %v3144 = vpop.f32.mrf.mxu0
      %3145 = vmatprep.mubr.bf16.mxu0 0
      %3146 = vmatmul.mubr.bf16.gmra.mxu0 %v2982
      %v3147 = vpop.f32.mrf.mxu0
      %v3148 = vadd.f32 0.0, %v3147
      %v3149 = vpop.f32.mrf.mxu0
      %v3150 = vpop.f32.mrf.mxu0
      %v3151 = vadd.f32 0.0, %v3150
      %v3152 = vpop.f32.mrf.mxu0
      %3153 = vmatprep.mubr.bf16.mxu0 0
      %3154 = vmatmul.mubr.bf16.gmra.mxu0 %v2985
      %v3155 = vpop.f32.mrf.mxu0
      %v3156 = vadd.f32 0.0, %v3155
      %v3157 = vpop.f32.mrf.mxu0
      %v3158 = vpop.f32.mrf.mxu0
      %v3159 = vadd.f32 0.0, %v3158
      %v3160 = vpop.f32.mrf.mxu0
      %3161 = vmatprep.mubr.bf16.mxu0 0
      %3162 = vmatmul.mubr.bf16.gmra.mxu0 %v2988
      %v3163 = vpop.f32.mrf.mxu0
      %v3164 = vadd.f32 0.0, %v3163
      %v3165 = vpop.f32.mrf.mxu0
      %v3166 = vpop.f32.mrf.mxu0
      %v3167 = vadd.f32 0.0, %v3166
      %v3168 = vpop.f32.mrf.mxu0
      %3169 = vdwg.mxu0
      %v3170 = vadd.f32 %v2825, %v3028
      %v3171 = vadd.f32 %v2826, %v3031
      %v3172 = vadd.f32 %v2827, %v3036
      %v3173 = vadd.f32 %v2828, %v3039
      %v3174 = vadd.f32 %v2829, %v3044
      %v3175 = vadd.f32 %v2830, %v3047
      %v3176 = vadd.f32 %v2831, %v3052
      %v3177 = vadd.f32 %v2832, %v3055
      %v3178 = vadd.f32 %v2833, %v3060
      %v3179 = vadd.f32 %v2834, %v3063
      %v3180 = vadd.f32 %v2835, %v3068
      %v3181 = vadd.f32 %v2836, %v3071
      %v3182 = vadd.f32 %v2837, %v3076
      %v3183 = vadd.f32 %v2838, %v3079
      %v3184 = vadd.f32 %v2839, %v3084
      %v3185 = vadd.f32 %v2840, %v3087
      %v3186 = vadd.f32 %v2841, %v3092
      %v3187 = vadd.f32 %v2842, %v3095
      %v3188 = vadd.f32 %v2843, %v3100
      %v3189 = vadd.f32 %v2844, %v3103
      %v3190 = vadd.f32 %v2845, %v3108
      %v3191 = vadd.f32 %v2846, %v3111
      %v3192 = vadd.f32 %v2847, %v3116
      %v3193 = vadd.f32 %v2848, %v3119
      %v3194 = vadd.f32 %v2849, %v3124
      %v3195 = vadd.f32 %v2850, %v3127
      %v3196 = vadd.f32 %v2851, %v3132
      %v3197 = vadd.f32 %v2852, %v3135
      %v3198 = vadd.f32 %v2853, %v3140
      %v3199 = vadd.f32 %v2854, %v3143
      %v3200 = vadd.f32 %v2855, %v3148
      %v3201 = vadd.f32 %v2856, %v3151
      %v3202 = vadd.f32 %v2857, %v3156
      %v3203 = vadd.f32 %v2858, %v3159
      %v3204 = vadd.f32 %v2859, %v3164
      %v3205 = vadd.f32 %v2860, %v3167
      %v3206 = vld [vmem:[#allocation2 + $0x26] sm:$0xff]
      %v3207 = vld [vmem:[#allocation2 + $0x2e] sm:$0xff]
      %v3208 = vld [vmem:[#allocation2 + $0x36] sm:$0xff]
      %v3209 = vld [vmem:[#allocation2 + $0x3e] sm:$0xff]
      %v3210 = vld [vmem:[#allocation2 + $0x46] sm:$0xff]
      %v3211 = vld [vmem:[#allocation2 + $0x4e] sm:$0xff]
      %v3212 = vld [vmem:[#allocation2 + $0x56] sm:$0xff]
      %v3213 = vld [vmem:[#allocation2 + $0x5e] sm:$0xff]
      %v3214 = vld [vmem:[#allocation2 + $0x66] sm:$0xff]
      %v3215 = vld [vmem:[#allocation2 + $0x6e] sm:$0xff]
      %v3216 = vld [vmem:[#allocation2 + $0x76] sm:$0xff]
      %v3217 = vld [vmem:[#allocation2 + $0x7e] sm:$0xff]
      %v3218 = vld [vmem:[#allocation2 + $0x86] sm:$0xff]
      %v3219 = vld [vmem:[#allocation2 + $0x8e] sm:$0xff]
      %v3220 = vld [vmem:[#allocation2 + $0x96] sm:$0xff]
      %v3221 = vld [vmem:[#allocation2 + $0x9e] sm:$0xff]
      %v3222 = vld [vmem:[#allocation2 + $0xa6] sm:$0xff]
      %v3223 = vld [vmem:[#allocation2 + $0xae] sm:$0xff]
      %v3224 = vld [vmem:[#allocation2 + $0xb6] sm:$0xff]
      %v3225 = vld [vmem:[#allocation2 + $0xbe] sm:$0xff]
      %v3226 = vld [vmem:[#allocation2 + $0xc6] sm:$0xff]
      %v3227 = vld [vmem:[#allocation2 + $0xce] sm:$0xff]
      %v3228 = vld [vmem:[#allocation2 + $0xd6] sm:$0xff]
      %v3229 = vld [vmem:[#allocation2 + $0xde] sm:$0xff]
      %v3230 = vld [vmem:[#allocation2 + $0xe6] sm:$0xff]
      %v3231 = vld [vmem:[#allocation2 + $0xee] sm:$0xff]
      %v3232 = vld [vmem:[#allocation2 + $0xf6] sm:$0xff]
      %v3233 = vld [vmem:[#allocation2 + $0xfe] sm:$0xff]
      %v3234 = vld [vmem:[#allocation2 + $0x106] sm:$0xff]
      %v3235 = vld [vmem:[#allocation2 + $0x10e] sm:$0xff]
      %v3236 = vld [vmem:[#allocation2 + $0x116] sm:$0xff]
      %v3237 = vld [vmem:[#allocation2 + $0x11e] sm:$0xff]
      %v3238 = vld [vmem:[#allocation2 + $0x126] sm:$0xff]
      %v3239 = vld [vmem:[#allocation2 + $0x12e] sm:$0xff]
      %v3240 = vld [vmem:[#allocation2 + $0x136] sm:$0xff]
      %v3241 = vld [vmem:[#allocation2 + $0x13e] sm:$0xff]
      %v3242 = vpack.c.bf16 %v3207, %v3206
      %v3243 = vpack.c.bf16 %v3209, %v3208
      %v3244 = vpack.c.bf16 %v3211, %v3210
      %v3245 = vpack.c.bf16 %v3213, %v3212
      %v3246 = vpack.c.bf16 %v3215, %v3214
      %v3247 = vpack.c.bf16 %v3217, %v3216
      %v3248 = vpack.c.bf16 %v3219, %v3218
      %v3249 = vpack.c.bf16 %v3221, %v3220
      %v3250 = vpack.c.bf16 %v3223, %v3222
      %v3251 = vpack.c.bf16 %v3225, %v3224
      %v3252 = vpack.c.bf16 %v3227, %v3226
      %v3253 = vpack.c.bf16 %v3229, %v3228
      %v3254 = vpack.c.bf16 %v3231, %v3230
      %v3255 = vpack.c.bf16 %v3233, %v3232
      %v3256 = vpack.c.bf16 %v3235, %v3234
      %v3257 = vpack.c.bf16 %v3237, %v3236
      %v3258 = vpack.c.bf16 %v3239, %v3238
      %v3259 = vpack.c.bf16 %v3241, %v3240
      %s3260 = scalar_lea.vmem %s2, 160
      %v3261 = vld [vmem:[%s3260] sm:$0xf]
      %v3262 = vld [vmem:[%s3260 + $0x4] sm:$0xf]
      %v3263 = vld [vmem:[%s3260 + $0x8] sm:$0xf]
      %v3264 = vld [vmem:[%s3260 + $0xc] sm:$0xf]
      %v3265 = vld [vmem:[%s3260 + $0x10] sm:$0x3]
      %v3271 = vunpack.c.l.b16 %v3261
      %v3272 = vunpack.c.l.b16 %v3262
      %v3273 = vunpack.c.l.b16 %v3263
      %v3274 = vunpack.c.l.b16 %v3264
      %v3275 = vunpack.c.l.b16 %v3265
      %v3276 = vpack.c.b16 %v3272, %v3271
      %v3277 = vpack.c.b16 %v3274, %v3273
      %v3278 = vpack.c.b16 %v3275, %v3275
      %v3282 = vsel %vm219, %v3242, 0
      %v3285 = vsel %vm219, %v3243, 0
      %v3288 = vsel %vm219, %v3244, 0
      %v3291 = vsel %vm219, %v3245, 0
      %v3294 = vsel %vm219, %v3246, 0
      %v3297 = vsel %vm219, %v3247, 0
      %v3300 = vsel %vm219, %v3248, 0
      %v3303 = vsel %vm219, %v3249, 0
      %v3306 = vsel %vm219, %v3250, 0
      %v3309 = vsel %vm219, %v3251, 0
      %v3312 = vsel %vm219, %v3252, 0
      %v3315 = vsel %vm219, %v3253, 0
      %v3318 = vsel %vm219, %v3254, 0
      %v3321 = vsel %vm219, %v3255, 0
      %v3324 = vsel %vm219, %v3256, 0
      %v3327 = vsel %vm219, %v3257, 0
      %v3330 = vsel %vm219, %v3258, 0
      %v3333 = vsel %vm219, %v3259, 0
      %v3336 = vsel %vm706, %v3278, 0
      %3338 = vmatprep.subr.bf16.mxu0 0
      %3339 = vmatpush1.bf16.msra.mxu0 0
      %3340 = vmatprep.subr.bf16.mxu0 0
      %3341 = vmatpush1.bf16.msra.mxu0 0
      %3342 = vmatprep.subr.bf16.mxu0 0
      %3343 = vmatpush1.bf16.msra.mxu0 0
      %3344 = vmatprep.subr.bf16.mxu0 0
      %3345 = vmatpush1.bf16.msra.mxu0 0
      %3346 = vmatprep.subr.bf16.mxu0 0
      %3347 = vmatpush1.bf16.msra.mxu0 0
      %3348 = vmatprep.subr.bf16.mxu0 0
      %3349 = vmatpush1.bf16.msra.mxu0 %v3336
      %3350 = vmatprep.subr.bf16.mxu0 0
      %3351 = vmatpush1.bf16.msra.mxu0 %v3277
      %3352 = vmatprep.subr.bf16.mxu0 0
      %3353 = vmatpush1.bf16.msra.mxu0 %v3276
      %3354 = vmatprep.subr.bf16.mxu0 0
      %3355 = vmatpush2.bf16.msra.mxu0 0
      %3356 = vmatprep.subr.bf16.mxu0 0
      %3357 = vmatpush2.bf16.msra.mxu0 0
      %3358 = vmatprep.subr.bf16.mxu0 0
      %3359 = vmatpush2.bf16.msra.mxu0 0
      %3360 = vmatprep.subr.bf16.mxu0 0
      %3361 = vmatpush2.bf16.msra.mxu0 0
      %3362 = vmatprep.subr.bf16.mxu0 0
      %3363 = vmatpush2.bf16.msra.mxu0 0
      %3364 = vmatprep.subr.bf16.mxu0 0
      %3365 = vmatpush2.bf16.msra.mxu0 0
      %3366 = vmatprep.subr.bf16.mxu0 0
      %3367 = vmatpush2.bf16.msra.mxu0 0
      %3368 = vmatprep.subr.bf16.mxu0 0
      %3369 = vmatpush2.bf16.msra.mxu0 0
      %3370 = vmatprep.mubr.bf16.mxu0 0
      %3371 = vmatmul.mubr.bf16.gmra.mxu0 %v3282
      %v3372 = vpop.f32.mrf.mxu0
      %v3373 = vadd.f32 0.0, %v3372
      %v3374 = vpop.f32.mrf.mxu0
      %v3375 = vpop.f32.mrf.mxu0
      %v3376 = vadd.f32 0.0, %v3375
      %v3377 = vpop.f32.mrf.mxu0
      %3378 = vmatprep.mubr.bf16.mxu0 0
      %3379 = vmatmul.mubr.bf16.gmra.mxu0 %v3285
      %v3380 = vpop.f32.mrf.mxu0
      %v3381 = vadd.f32 0.0, %v3380
      %v3382 = vpop.f32.mrf.mxu0
      %v3383 = vpop.f32.mrf.mxu0
      %v3384 = vadd.f32 0.0, %v3383
      %v3385 = vpop.f32.mrf.mxu0
      %3386 = vmatprep.mubr.bf16.mxu0 0
      %3387 = vmatmul.mubr.bf16.gmra.mxu0 %v3288
      %v3388 = vpop.f32.mrf.mxu0
      %v3389 = vadd.f32 0.0, %v3388
      %v3390 = vpop.f32.mrf.mxu0
      %v3391 = vpop.f32.mrf.mxu0
      %v3392 = vadd.f32 0.0, %v3391
      %v3393 = vpop.f32.mrf.mxu0
      %3394 = vmatprep.mubr.bf16.mxu0 0
      %3395 = vmatmul.mubr.bf16.gmra.mxu0 %v3291
      %v3396 = vpop.f32.mrf.mxu0
      %v3397 = vadd.f32 0.0, %v3396
      %v3398 = vpop.f32.mrf.mxu0
      %v3399 = vpop.f32.mrf.mxu0
      %v3400 = vadd.f32 0.0, %v3399
      %v3401 = vpop.f32.mrf.mxu0
      %3402 = vmatprep.mubr.bf16.mxu0 0
      %3403 = vmatmul.mubr.bf16.gmra.mxu0 %v3294
      %v3404 = vpop.f32.mrf.mxu0
      %v3405 = vadd.f32 0.0, %v3404
      %v3406 = vpop.f32.mrf.mxu0
      %v3407 = vpop.f32.mrf.mxu0
      %v3408 = vadd.f32 0.0, %v3407
      %v3409 = vpop.f32.mrf.mxu0
      %3410 = vmatprep.mubr.bf16.mxu0 0
      %3411 = vmatmul.mubr.bf16.gmra.mxu0 %v3297
      %v3412 = vpop.f32.mrf.mxu0
      %v3413 = vadd.f32 0.0, %v3412
      %v3414 = vpop.f32.mrf.mxu0
      %v3415 = vpop.f32.mrf.mxu0
      %v3416 = vadd.f32 0.0, %v3415
      %v3417 = vpop.f32.mrf.mxu0
      %3418 = vmatprep.mubr.bf16.mxu0 0
      %3419 = vmatmul.mubr.bf16.gmra.mxu0 %v3300
      %v3420 = vpop.f32.mrf.mxu0
      %v3421 = vadd.f32 0.0, %v3420
      %v3422 = vpop.f32.mrf.mxu0
      %v3423 = vpop.f32.mrf.mxu0
      %v3424 = vadd.f32 0.0, %v3423
      %v3425 = vpop.f32.mrf.mxu0
      %3426 = vmatprep.mubr.bf16.mxu0 0
      %3427 = vmatmul.mubr.bf16.gmra.mxu0 %v3303
      %v3428 = vpop.f32.mrf.mxu0
      %v3429 = vadd.f32 0.0, %v3428
      %v3430 = vpop.f32.mrf.mxu0
      %v3431 = vpop.f32.mrf.mxu0
      %v3432 = vadd.f32 0.0, %v3431
      %v3433 = vpop.f32.mrf.mxu0
      %3434 = vmatprep.mubr.bf16.mxu0 0
      %3435 = vmatmul.mubr.bf16.gmra.mxu0 %v3306
      %v3436 = vpop.f32.mrf.mxu0
      %v3437 = vadd.f32 0.0, %v3436
      %v3438 = vpop.f32.mrf.mxu0
      %v3439 = vpop.f32.mrf.mxu0
      %v3440 = vadd.f32 0.0, %v3439
      %v3441 = vpop.f32.mrf.mxu0
      %3442 = vmatprep.mubr.bf16.mxu0 0
      %3443 = vmatmul.mubr.bf16.gmra.mxu0 %v3309
      %v3444 = vpop.f32.mrf.mxu0
      %v3445 = vadd.f32 0.0, %v3444
      %v3446 = vpop.f32.mrf.mxu0
      %v3447 = vpop.f32.mrf.mxu0
      %v3448 = vadd.f32 0.0, %v3447
      %v3449 = vpop.f32.mrf.mxu0
      %3450 = vmatprep.mubr.bf16.mxu0 0
      %3451 = vmatmul.mubr.bf16.gmra.mxu0 %v3312
      %v3452 = vpop.f32.mrf.mxu0
      %v3453 = vadd.f32 0.0, %v3452
      %v3454 = vpop.f32.mrf.mxu0
      %v3455 = vpop.f32.mrf.mxu0
      %v3456 = vadd.f32 0.0, %v3455
      %v3457 = vpop.f32.mrf.mxu0
      %3458 = vmatprep.mubr.bf16.mxu0 0
      %3459 = vmatmul.mubr.bf16.gmra.mxu0 %v3315
      %v3460 = vpop.f32.mrf.mxu0
      %v3461 = vadd.f32 0.0, %v3460
      %v3462 = vpop.f32.mrf.mxu0
      %v3463 = vpop.f32.mrf.mxu0
      %v3464 = vadd.f32 0.0, %v3463
      %v3465 = vpop.f32.mrf.mxu0
      %3466 = vmatprep.mubr.bf16.mxu0 0
      %3467 = vmatmul.mubr.bf16.gmra.mxu0 %v3318
      %v3468 = vpop.f32.mrf.mxu0
      %v3469 = vadd.f32 0.0, %v3468
      %v3470 = vpop.f32.mrf.mxu0
      %v3471 = vpop.f32.mrf.mxu0
      %v3472 = vadd.f32 0.0, %v3471
      %v3473 = vpop.f32.mrf.mxu0
      %3474 = vmatprep.mubr.bf16.mxu0 0
      %3475 = vmatmul.mubr.bf16.gmra.mxu0 %v3321
      %v3476 = vpop.f32.mrf.mxu0
      %v3477 = vadd.f32 0.0, %v3476
      %v3478 = vpop.f32.mrf.mxu0
      %v3479 = vpop.f32.mrf.mxu0
      %v3480 = vadd.f32 0.0, %v3479
      %v3481 = vpop.f32.mrf.mxu0
      %3482 = vmatprep.mubr.bf16.mxu0 0
      %3483 = vmatmul.mubr.bf16.gmra.mxu0 %v3324
      %v3484 = vpop.f32.mrf.mxu0
      %v3485 = vadd.f32 0.0, %v3484
      %v3486 = vpop.f32.mrf.mxu0
      %v3487 = vpop.f32.mrf.mxu0
      %v3488 = vadd.f32 0.0, %v3487
      %v3489 = vpop.f32.mrf.mxu0
      %3490 = vmatprep.mubr.bf16.mxu0 0
      %3491 = vmatmul.mubr.bf16.gmra.mxu0 %v3327
      %v3492 = vpop.f32.mrf.mxu0
      %v3493 = vadd.f32 0.0, %v3492
      %v3494 = vpop.f32.mrf.mxu0
      %v3495 = vpop.f32.mrf.mxu0
      %v3496 = vadd.f32 0.0, %v3495
      %v3497 = vpop.f32.mrf.mxu0
      %3498 = vmatprep.mubr.bf16.mxu0 0
      %3499 = vmatmul.mubr.bf16.gmra.mxu0 %v3330
      %v3500 = vpop.f32.mrf.mxu0
      %v3501 = vadd.f32 0.0, %v3500
      %v3502 = vpop.f32.mrf.mxu0
      %v3503 = vpop.f32.mrf.mxu0
      %v3504 = vadd.f32 0.0, %v3503
      %v3505 = vpop.f32.mrf.mxu0
      %3506 = vmatprep.mubr.bf16.mxu0 0
      %3507 = vmatmul.mubr.bf16.gmra.mxu0 %v3333
      %v3508 = vpop.f32.mrf.mxu0
      %v3509 = vadd.f32 0.0, %v3508
      %v3510 = vpop.f32.mrf.mxu0
      %v3511 = vpop.f32.mrf.mxu0
      %v3512 = vadd.f32 0.0, %v3511
      %v3513 = vpop.f32.mrf.mxu0
      %3514 = vdwg.mxu0
      %v3515 = vadd.f32 %v3170, %v3373
      %v3516 = vadd.f32 %v3171, %v3376
      %v3517 = vadd.f32 %v3172, %v3381
      %v3518 = vadd.f32 %v3173, %v3384
      %v3519 = vadd.f32 %v3174, %v3389
      %v3520 = vadd.f32 %v3175, %v3392
      %v3521 = vadd.f32 %v3176, %v3397
      %v3522 = vadd.f32 %v3177, %v3400
      %v3523 = vadd.f32 %v3178, %v3405
      %v3524 = vadd.f32 %v3179, %v3408
      %v3525 = vadd.f32 %v3180, %v3413
      %v3526 = vadd.f32 %v3181, %v3416
      %v3527 = vadd.f32 %v3182, %v3421
      %v3528 = vadd.f32 %v3183, %v3424
      %v3529 = vadd.f32 %v3184, %v3429
      %v3530 = vadd.f32 %v3185, %v3432
      %v3531 = vadd.f32 %v3186, %v3437
      %v3532 = vadd.f32 %v3187, %v3440
      %v3533 = vadd.f32 %v3188, %v3445
      %v3534 = vadd.f32 %v3189, %v3448
      %v3535 = vadd.f32 %v3190, %v3453
      %v3536 = vadd.f32 %v3191, %v3456
      %v3537 = vadd.f32 %v3192, %v3461
      %v3538 = vadd.f32 %v3193, %v3464
      %v3539 = vadd.f32 %v3194, %v3469
      %v3540 = vadd.f32 %v3195, %v3472
      %v3541 = vadd.f32 %v3196, %v3477
      %v3542 = vadd.f32 %v3197, %v3480
      %v3543 = vadd.f32 %v3198, %v3485
      %v3544 = vadd.f32 %v3199, %v3488
      %v3545 = vadd.f32 %v3200, %v3493
      %v3546 = vadd.f32 %v3201, %v3496
      %v3547 = vadd.f32 %v3202, %v3501
      %v3548 = vadd.f32 %v3203, %v3504
      %v3549 = vadd.f32 %v3204, %v3509
      %v3550 = vadd.f32 %v3205, %v3512
      %v3551 = vld [vmem:[%s3] sm:$0x1]
      %v3553 = vlaneseq
      %v3554 = vshrl.u32 %v3553, 7
      %v3555 = vsub.s32 0, %v3554
      %v3556 = vrot.slane %v3551, %v3555
      %v3558 = vadd.f32 %v3515, %v3556
      %v3559 = vadd.f32 %v3516, %v3556
      %v3560 = vadd.f32 %v3517, %v3556
      %v3561 = vadd.f32 %v3518, %v3556
      %v3562 = vadd.f32 %v3519, %v3556
      %v3563 = vadd.f32 %v3520, %v3556
      %v3564 = vadd.f32 %v3521, %v3556
      %v3565 = vadd.f32 %v3522, %v3556
      %v3566 = vadd.f32 %v3523, %v3556
      %v3567 = vadd.f32 %v3524, %v3556
      %v3568 = vadd.f32 %v3525, %v3556
      %v3569 = vadd.f32 %v3526, %v3556
      %v3570 = vadd.f32 %v3527, %v3556
      %v3571 = vadd.f32 %v3528, %v3556
      %v3572 = vadd.f32 %v3529, %v3556
      %v3573 = vadd.f32 %v3530, %v3556
      %v3574 = vadd.f32 %v3531, %v3556
      %v3575 = vadd.f32 %v3532, %v3556
      %v3576 = vadd.f32 %v3533, %v3556
      %v3577 = vadd.f32 %v3534, %v3556
      %v3578 = vadd.f32 %v3535, %v3556
      %v3579 = vadd.f32 %v3536, %v3556
      %v3580 = vadd.f32 %v3537, %v3556
      %v3581 = vadd.f32 %v3538, %v3556
      %v3582 = vadd.f32 %v3539, %v3556
      %v3583 = vadd.f32 %v3540, %v3556
      %v3584 = vadd.f32 %v3541, %v3556
      %v3585 = vadd.f32 %v3542, %v3556
      %v3586 = vadd.f32 %v3543, %v3556
      %v3587 = vadd.f32 %v3544, %v3556
      %v3588 = vadd.f32 %v3545, %v3556
      %v3589 = vadd.f32 %v3546, %v3556
      %v3590 = vadd.f32 %v3547, %v3556
      %v3591 = vadd.f32 %v3548, %v3556
      %v3592 = vadd.f32 %v3549, %v3556
      %v3593 = vadd.f32 %v3550, %v3556
      %v3594 = vsub.f32 0.0, %v3558
      %v3595 = vsub.f32 0.0, %v3559
      %v3596 = vsub.f32 0.0, %v3560
      %v3597 = vsub.f32 0.0, %v3561
      %v3598 = vsub.f32 0.0, %v3562
      %v3599 = vsub.f32 0.0, %v3563
      %v3600 = vsub.f32 0.0, %v3564
      %v3601 = vsub.f32 0.0, %v3565
      %v3602 = vsub.f32 0.0, %v3566
      %v3603 = vsub.f32 0.0, %v3567
      %v3604 = vsub.f32 0.0, %v3568
      %v3605 = vsub.f32 0.0, %v3569
      %v3606 = vsub.f32 0.0, %v3570
      %v3607 = vsub.f32 0.0, %v3571
      %v3608 = vsub.f32 0.0, %v3572
      %v3609 = vsub.f32 0.0, %v3573
      %v3610 = vsub.f32 0.0, %v3574
      %v3611 = vsub.f32 0.0, %v3575
      %v3612 = vsub.f32 0.0, %v3576
      %v3613 = vsub.f32 0.0, %v3577
      %v3614 = vsub.f32 0.0, %v3578
      %v3615 = vsub.f32 0.0, %v3579
      %v3616 = vsub.f32 0.0, %v3580
      %v3617 = vsub.f32 0.0, %v3581
      %v3618 = vsub.f32 0.0, %v3582
      %v3619 = vsub.f32 0.0, %v3583
      %v3620 = vsub.f32 0.0, %v3584
      %v3621 = vsub.f32 0.0, %v3585
      %v3622 = vsub.f32 0.0, %v3586
      %v3623 = vsub.f32 0.0, %v3587
      %v3624 = vsub.f32 0.0, %v3588
      %v3625 = vsub.f32 0.0, %v3589
      %v3626 = vsub.f32 0.0, %v3590
      %v3627 = vsub.f32 0.0, %v3591
      %v3628 = vsub.f32 0.0, %v3592
      %v3629 = vsub.f32 0.0, %v3593
      %v3630 = vmul.f32 %v3594, 1.442695
      %v3631 = vpow.pop %v3630
      %v3632 = vmul.f32 %v3595, 1.442695
      %v3633 = vpow.pop %v3632
      %v3634 = vmul.f32 %v3596, 1.442695
      %v3635 = vpow.pop %v3634
      %v3636 = vmul.f32 %v3597, 1.442695
      %v3637 = vpow.pop %v3636
      %v3638 = vmul.f32 %v3598, 1.442695
      %v3639 = vpow.pop %v3638
      %v3640 = vmul.f32 %v3599, 1.442695
      %v3641 = vpow.pop %v3640
      %v3642 = vmul.f32 %v3600, 1.442695
      %v3643 = vpow.pop %v3642
      %v3644 = vmul.f32 %v3601, 1.442695
      %v3645 = vpow.pop %v3644
      %v3646 = vmul.f32 %v3602, 1.442695
      %v3647 = vpow.pop %v3646
      %v3648 = vmul.f32 %v3603, 1.442695
      %v3649 = vpow.pop %v3648
      %v3650 = vmul.f32 %v3604, 1.442695
      %v3651 = vpow.pop %v3650
      %v3652 = vmul.f32 %v3605, 1.442695
      %v3653 = vpow.pop %v3652
      %v3654 = vmul.f32 %v3606, 1.442695
      %v3655 = vpow.pop %v3654
      %v3656 = vmul.f32 %v3607, 1.442695
      %v3657 = vpow.pop %v3656
      %v3658 = vmul.f32 %v3608, 1.442695
      %v3659 = vpow.pop %v3658
      %v3660 = vmul.f32 %v3609, 1.442695
      %v3661 = vpow.pop %v3660
      %v3662 = vmul.f32 %v3610, 1.442695
      %v3663 = vpow.pop %v3662
      %v3664 = vmul.f32 %v3611, 1.442695
      %v3665 = vpow.pop %v3664
      %v3666 = vmul.f32 %v3612, 1.442695
      %v3667 = vpow.pop %v3666
      %v3668 = vmul.f32 %v3613, 1.442695
      %v3669 = vpow.pop %v3668
      %v3670 = vmul.f32 %v3614, 1.442695
      %v3671 = vpow.pop %v3670
      %v3672 = vmul.f32 %v3615, 1.442695
      %v3673 = vpow.pop %v3672
      %v3674 = vmul.f32 %v3616, 1.442695
      %v3675 = vpow.pop %v3674
      %v3676 = vmul.f32 %v3617, 1.442695
      %v3677 = vpow.pop %v3676
      %v3678 = vmul.f32 %v3618, 1.442695
      %v3679 = vpow.pop %v3678
      %v3680 = vmul.f32 %v3619, 1.442695
      %v3681 = vpow.pop %v3680
      %v3682 = vmul.f32 %v3620, 1.442695
      %v3683 = vpow.pop %v3682
      %v3684 = vmul.f32 %v3621, 1.442695
      %v3685 = vpow.pop %v3684
      %v3686 = vmul.f32 %v3622, 1.442695
      %v3687 = vpow.pop %v3686
      %v3688 = vmul.f32 %v3623, 1.442695
      %v3689 = vpow.pop %v3688
      %v3690 = vmul.f32 %v3624, 1.442695
      %v3691 = vpow.pop %v3690
      %v3692 = vmul.f32 %v3625, 1.442695
      %v3693 = vpow.pop %v3692
      %v3694 = vmul.f32 %v3626, 1.442695
      %v3695 = vpow.pop %v3694
      %v3696 = vmul.f32 %v3627, 1.442695
      %v3697 = vpow.pop %v3696
      %v3698 = vmul.f32 %v3628, 1.442695
      %v3699 = vpow.pop %v3698
      %v3700 = vmul.f32 %v3629, 1.442695
      %v3701 = vpow.pop %v3700
      %v3702 = vadd.f32 %v3631, 1.0
      %v3703 = vadd.f32 %v3633, 1.0
      %v3704 = vadd.f32 %v3635, 1.0
      %v3705 = vadd.f32 %v3637, 1.0
      %v3706 = vadd.f32 %v3639, 1.0
      %v3707 = vadd.f32 %v3641, 1.0
      %v3708 = vadd.f32 %v3643, 1.0
      %v3709 = vadd.f32 %v3645, 1.0
      %v3710 = vadd.f32 %v3647, 1.0
      %v3711 = vadd.f32 %v3649, 1.0
      %v3712 = vadd.f32 %v3651, 1.0
      %v3713 = vadd.f32 %v3653, 1.0
      %v3714 = vadd.f32 %v3655, 1.0
      %v3715 = vadd.f32 %v3657, 1.0
      %v3716 = vadd.f32 %v3659, 1.0
      %v3717 = vadd.f32 %v3661, 1.0
      %v3718 = vadd.f32 %v3663, 1.0
      %v3719 = vadd.f32 %v3665, 1.0
      %v3720 = vadd.f32 %v3667, 1.0
      %v3721 = vadd.f32 %v3669, 1.0
      %v3722 = vadd.f32 %v3671, 1.0
      %v3723 = vadd.f32 %v3673, 1.0
      %v3724 = vadd.f32 %v3675, 1.0
      %v3725 = vadd.f32 %v3677, 1.0
      %v3726 = vadd.f32 %v3679, 1.0
      %v3727 = vadd.f32 %v3681, 1.0
      %v3728 = vadd.f32 %v3683, 1.0
      %v3729 = vadd.f32 %v3685, 1.0
      %v3730 = vadd.f32 %v3687, 1.0
      %v3731 = vadd.f32 %v3689, 1.0
      %v3732 = vadd.f32 %v3691, 1.0
      %v3733 = vadd.f32 %v3693, 1.0
      %v3734 = vadd.f32 %v3695, 1.0
      %v3735 = vadd.f32 %v3697, 1.0
      %v3736 = vadd.f32 %v3699, 1.0
      %v3737 = vadd.f32 %v3701, 1.0
      %v3738 = vrcp.pop %v3702
      %v3739 = vrcp.pop %v3703
      %v3740 = vrcp.pop %v3704
      %v3741 = vrcp.pop %v3705
      %v3742 = vrcp.pop %v3706
      %v3743 = vrcp.pop %v3707
      %v3744 = vrcp.pop %v3708
      %v3745 = vrcp.pop %v3709
      %v3746 = vrcp.pop %v3710
      %v3747 = vrcp.pop %v3711
      %v3748 = vrcp.pop %v3712
      %v3749 = vrcp.pop %v3713
      %v3750 = vrcp.pop %v3714
      %v3751 = vrcp.pop %v3715
      %v3752 = vrcp.pop %v3716
      %v3753 = vrcp.pop %v3717
      %v3754 = vrcp.pop %v3718
      %v3755 = vrcp.pop %v3719
      %v3756 = vrcp.pop %v3720
      %v3757 = vrcp.pop %v3721
      %v3758 = vrcp.pop %v3722
      %v3759 = vrcp.pop %v3723
      %v3760 = vrcp.pop %v3724
      %v3761 = vrcp.pop %v3725
      %v3762 = vrcp.pop %v3726
      %v3763 = vrcp.pop %v3727
      %v3764 = vrcp.pop %v3728
      %v3765 = vrcp.pop %v3729
      %v3766 = vrcp.pop %v3730
      %v3767 = vrcp.pop %v3731
      %v3768 = vrcp.pop %v3732
      %v3769 = vrcp.pop %v3733
      %v3770 = vrcp.pop %v3734
      %v3771 = vrcp.pop %v3735
      %v3772 = vrcp.pop %v3736
      %v3773 = vrcp.pop %v3737
      %v3774 = vlaneseq
      %v3775 = vand.u32 %v3774, 127
      %vm3776 = vcmp.lt.s32.totalorder %v3775, 96
      %v3777 = vtanh.pop %v3558
      %v3778 = vtanh.pop %v3559
      %v3779 = vtanh.pop %v3560
      %v3780 = vtanh.pop %v3561
      %v3781 = vtanh.pop %v3562
      %v3782 = vtanh.pop %v3563
      %v3783 = vtanh.pop %v3564
      %v3784 = vtanh.pop %v3565
      %v3785 = vtanh.pop %v3566
      %v3786 = vtanh.pop %v3567
      %v3787 = vtanh.pop %v3568
      %v3788 = vtanh.pop %v3569
      %v3789 = vtanh.pop %v3570
      %v3790 = vtanh.pop %v3571
      %v3791 = vtanh.pop %v3572
      %v3792 = vtanh.pop %v3573
      %v3793 = vtanh.pop %v3574
      %v3794 = vtanh.pop %v3575
      %v3795 = vtanh.pop %v3576
      %v3796 = vtanh.pop %v3577
      %v3797 = vtanh.pop %v3578
      %v3798 = vtanh.pop %v3579
      %v3799 = vtanh.pop %v3580
      %v3800 = vtanh.pop %v3581
      %v3801 = vtanh.pop %v3582
      %v3802 = vtanh.pop %v3583
      %v3803 = vtanh.pop %v3584
      %v3804 = vtanh.pop %v3585
      %v3805 = vtanh.pop %v3586
      %v3806 = vtanh.pop %v3587
      %v3807 = vtanh.pop %v3588
      %v3808 = vtanh.pop %v3589
      %v3809 = vtanh.pop %v3590
      %v3810 = vtanh.pop %v3591
      %v3811 = vtanh.pop %v3592
      %v3812 = vtanh.pop %v3593
      %v3813 = vsel %vm3776, %v3738, %v3777
      %v3814 = vsel %vm3776, %v3739, %v3778
      %v3815 = vsel %vm3776, %v3740, %v3779
      %v3816 = vsel %vm3776, %v3741, %v3780
      %v3817 = vsel %vm3776, %v3742, %v3781
      %v3818 = vsel %vm3776, %v3743, %v3782
      %v3819 = vsel %vm3776, %v3744, %v3783
      %v3820 = vsel %vm3776, %v3745, %v3784
      %v3821 = vsel %vm3776, %v3746, %v3785
      %v3822 = vsel %vm3776, %v3747, %v3786
      %v3823 = vsel %vm3776, %v3748, %v3787
      %v3824 = vsel %vm3776, %v3749, %v3788
      %v3825 = vsel %vm3776, %v3750, %v3789
      %v3826 = vsel %vm3776, %v3751, %v3790
      %v3827 = vsel %vm3776, %v3752, %v3791
      %v3828 = vsel %vm3776, %v3753, %v3792
      %v3829 = vsel %vm3776, %v3754, %v3793
      %v3830 = vsel %vm3776, %v3755, %v3794
      %v3831 = vsel %vm3776, %v3756, %v3795
      %v3832 = vsel %vm3776, %v3757, %v3796
      %v3833 = vsel %vm3776, %v3758, %v3797
      %v3834 = vsel %vm3776, %v3759, %v3798
      %v3835 = vsel %vm3776, %v3760, %v3799
      %v3836 = vsel %vm3776, %v3761, %v3800
      %v3837 = vsel %vm3776, %v3762, %v3801
      %v3838 = vsel %vm3776, %v3763, %v3802
      %v3839 = vsel %vm3776, %v3764, %v3803
      %v3840 = vsel %vm3776, %v3765, %v3804
      %v3841 = vsel %vm3776, %v3766, %v3805
      %v3842 = vsel %vm3776, %v3767, %v3806
      %v3843 = vsel %vm3776, %v3768, %v3807
      %v3844 = vsel %vm3776, %v3769, %v3808
      %v3845 = vsel %vm3776, %v3770, %v3809
      %v3846 = vsel %vm3776, %v3771, %v3810
      %v3847 = vsel %vm3776, %v3772, %v3811
      %v3848 = vsel %vm3776, %v3773, %v3812
      %v3849 = vld [vmem:[%s212] sm:$0xff]
      %v3850 = vld [vmem:[%s212 + $0x8] sm:$0xff]
      %v3851 = vld [vmem:[%s212 + $0x10] sm:$0xff]
      %v3852 = vld [vmem:[%s212 + $0x18] sm:$0xff]
      %v3853 = vld [vmem:[%s212 + $0x20] sm:$0xff]
      %v3854 = vld [vmem:[%s212 + $0x28] sm:$0xff]
      %v3855 = vld [vmem:[%s212 + $0x30] sm:$0xff]
      %v3856 = vld [vmem:[%s212 + $0x38] sm:$0xff]
      %v3857 = vld [vmem:[%s212 + $0x40] sm:$0xff]
      %v3858 = vld [vmem:[%s212 + $0x48] sm:$0xff]
      %v3859 = vld [vmem:[%s212 + $0x50] sm:$0xff]
      %v3860 = vld [vmem:[%s212 + $0x58] sm:$0xff]
      %v3861 = vld [vmem:[%s212 + $0x60] sm:$0xff]
      %v3862 = vld [vmem:[%s212 + $0x68] sm:$0xff]
      %v3863 = vld [vmem:[%s212 + $0x70] sm:$0xff]
      %v3864 = vld [vmem:[%s212 + $0x78] sm:$0xff]
      %v3865 = vld [vmem:[%s212 + $0x80] sm:$0xff]
      %v3866 = vld [vmem:[%s212 + $0x88] sm:$0xff]
      %v3867 = vld [vmem:[%s212 + $0x90] sm:$0xff]
      %v3868 = vld [vmem:[%s212 + $0x98] sm:$0xff]
      %v3869 = vld [vmem:[%s212 + $0xa0] sm:$0xff]
      %v3870 = vld [vmem:[%s212 + $0xa8] sm:$0xff]
      %v3871 = vld [vmem:[%s212 + $0xb0] sm:$0xff]
      %v3872 = vld [vmem:[%s212 + $0xb8] sm:$0xff]
      %v3873 = vld [vmem:[%s212 + $0xc0] sm:$0xff]
      %v3874 = vld [vmem:[%s212 + $0xc8] sm:$0xff]
      %v3875 = vld [vmem:[%s212 + $0xd0] sm:$0xff]
      %v3876 = vld [vmem:[%s212 + $0xd8] sm:$0xff]
      %v3877 = vld [vmem:[%s212 + $0xe0] sm:$0xff]
      %v3878 = vld [vmem:[%s212 + $0xe8] sm:$0xff]
      %v3879 = vld [vmem:[%s212 + $0xf0] sm:$0xff]
      %v3880 = vld [vmem:[%s212 + $0xf8] sm:$0xff]
      %v3881 = vld [vmem:[%s212 + $0x100] sm:$0xff]
      %v3882 = vld [vmem:[%s212 + $0x108] sm:$0xff]
      %v3883 = vld [vmem:[%s212 + $0x110] sm:$0xff]
      %v3884 = vld [vmem:[%s212 + $0x118] sm:$0xff]
      %v3885 = vmul.f32 %v3813, %v3849
      %v3886 = vmul.f32 %v3814, %v3850
      %v3887 = vmul.f32 %v3815, %v3851
      %v3888 = vmul.f32 %v3816, %v3852
      %v3889 = vmul.f32 %v3817, %v3853
      %v3890 = vmul.f32 %v3818, %v3854
      %v3891 = vmul.f32 %v3819, %v3855
      %v3892 = vmul.f32 %v3820, %v3856
      %v3893 = vmul.f32 %v3821, %v3857
      %v3894 = vmul.f32 %v3822, %v3858
      %v3895 = vmul.f32 %v3823, %v3859
      %v3896 = vmul.f32 %v3824, %v3860
      %v3897 = vmul.f32 %v3825, %v3861
      %v3898 = vmul.f32 %v3826, %v3862
      %v3899 = vmul.f32 %v3827, %v3863
      %v3900 = vmul.f32 %v3828, %v3864
      %v3901 = vmul.f32 %v3829, %v3865
      %v3902 = vmul.f32 %v3830, %v3866
      %v3903 = vmul.f32 %v3831, %v3867
      %v3904 = vmul.f32 %v3832, %v3868
      %v3905 = vmul.f32 %v3833, %v3869
      %v3906 = vmul.f32 %v3834, %v3870
      %v3907 = vmul.f32 %v3835, %v3871
      %v3908 = vmul.f32 %v3836, %v3872
      %v3909 = vmul.f32 %v3837, %v3873
      %v3910 = vmul.f32 %v3838, %v3874
      %v3911 = vmul.f32 %v3839, %v3875
      %v3912 = vmul.f32 %v3840, %v3876
      %v3913 = vmul.f32 %v3841, %v3877
      %v3914 = vmul.f32 %v3842, %v3878
      %v3915 = vmul.f32 %v3843, %v3879
      %v3916 = vmul.f32 %v3844, %v3880
      %v3917 = vmul.f32 %v3845, %v3881
      %v3918 = vmul.f32 %v3846, %v3882
      %v3919 = vmul.f32 %v3847, %v3883
      %v3920 = vmul.f32 %v3848, %v3884
      %3957 = vrot.lane.b32.xlu0 %v3813, 32
      %v3958 = vpop.permute.xlu0 %3957
      %3959 = vrot.lane.b32.xlu0 %v3814, 32
      %v3960 = vpop.permute.xlu0 %3959
      %3961 = vrot.lane.b32.xlu0 %v3815, 32
      %v3962 = vpop.permute.xlu0 %3961
      %3963 = vrot.lane.b32.xlu0 %v3816, 32
      %v3964 = vpop.permute.xlu0 %3963
      %3965 = vrot.lane.b32.xlu0 %v3817, 32
      %v3966 = vpop.permute.xlu0 %3965
      %3967 = vrot.lane.b32.xlu0 %v3818, 32
      %v3968 = vpop.permute.xlu0 %3967
      %3969 = vrot.lane.b32.xlu0 %v3819, 32
      %v3970 = vpop.permute.xlu0 %3969
      %3971 = vrot.lane.b32.xlu0 %v3820, 32
      %v3972 = vpop.permute.xlu0 %3971
      %3973 = vrot.lane.b32.xlu0 %v3821, 32
      %v3974 = vpop.permute.xlu0 %3973
      %3975 = vrot.lane.b32.xlu0 %v3822, 32
      %v3976 = vpop.permute.xlu0 %3975
      %3977 = vrot.lane.b32.xlu0 %v3823, 32
      %v3978 = vpop.permute.xlu0 %3977
      %3979 = vrot.lane.b32.xlu0 %v3824, 32
      %v3980 = vpop.permute.xlu0 %3979
      %3981 = vrot.lane.b32.xlu0 %v3825, 32
      %v3982 = vpop.permute.xlu0 %3981
      %3983 = vrot.lane.b32.xlu0 %v3826, 32
      %v3984 = vpop.permute.xlu0 %3983
      %3985 = vrot.lane.b32.xlu0 %v3827, 32
      %v3986 = vpop.permute.xlu0 %3985
      %3987 = vrot.lane.b32.xlu0 %v3828, 32
      %v3988 = vpop.permute.xlu0 %3987
      %3989 = vrot.lane.b32.xlu0 %v3829, 32
      %v3990 = vpop.permute.xlu0 %3989
      %3991 = vrot.lane.b32.xlu0 %v3830, 32
      %v3992 = vpop.permute.xlu0 %3991
      %3993 = vrot.lane.b32.xlu0 %v3831, 32
      %v3994 = vpop.permute.xlu0 %3993
      %3995 = vrot.lane.b32.xlu0 %v3832, 32
      %v3996 = vpop.permute.xlu0 %3995
      %3997 = vrot.lane.b32.xlu0 %v3833, 32
      %v3998 = vpop.permute.xlu0 %3997
      %3999 = vrot.lane.b32.xlu0 %v3834, 32
      %v4000 = vpop.permute.xlu0 %3999
      %4001 = vrot.lane.b32.xlu0 %v3835, 32
      %v4002 = vpop.permute.xlu0 %4001
      %4003 = vrot.lane.b32.xlu0 %v3836, 32
      %v4004 = vpop.permute.xlu0 %4003
      %4005 = vrot.lane.b32.xlu0 %v3837, 32
      %v4006 = vpop.permute.xlu0 %4005
      %4007 = vrot.lane.b32.xlu0 %v3838, 32
      %v4008 = vpop.permute.xlu0 %4007
      %4009 = vrot.lane.b32.xlu0 %v3839, 32
      %v4010 = vpop.permute.xlu0 %4009
      %4011 = vrot.lane.b32.xlu0 %v3840, 32
      %v4012 = vpop.permute.xlu0 %4011
      %4013 = vrot.lane.b32.xlu0 %v3841, 32
      %v4014 = vpop.permute.xlu0 %4013
      %4015 = vrot.lane.b32.xlu0 %v3842, 32
      %v4016 = vpop.permute.xlu0 %4015
      %4017 = vrot.lane.b32.xlu0 %v3843, 32
      %v4018 = vpop.permute.xlu0 %4017
      %4019 = vrot.lane.b32.xlu0 %v3844, 32
      %v4020 = vpop.permute.xlu0 %4019
      %4021 = vrot.lane.b32.xlu0 %v3845, 32
      %v4022 = vpop.permute.xlu0 %4021
      %4023 = vrot.lane.b32.xlu0 %v3846, 32
      %v4024 = vpop.permute.xlu0 %4023
      %4025 = vrot.lane.b32.xlu0 %v3847, 32
      %v4026 = vpop.permute.xlu0 %4025
      %4027 = vrot.lane.b32.xlu0 %v3848, 32
      %v4028 = vpop.permute.xlu0 %4027
      %v4065 = vmul.f32 %v3813, %v3958
      %v4066 = vmul.f32 %v3814, %v3960
      %v4067 = vmul.f32 %v3815, %v3962
      %v4068 = vmul.f32 %v3816, %v3964
      %v4069 = vmul.f32 %v3817, %v3966
      %v4070 = vmul.f32 %v3818, %v3968
      %v4071 = vmul.f32 %v3819, %v3970
      %v4072 = vmul.f32 %v3820, %v3972
      %v4073 = vmul.f32 %v3821, %v3974
      %v4074 = vmul.f32 %v3822, %v3976
      %v4075 = vmul.f32 %v3823, %v3978
      %v4076 = vmul.f32 %v3824, %v3980
      %v4077 = vmul.f32 %v3825, %v3982
      %v4078 = vmul.f32 %v3826, %v3984
      %v4079 = vmul.f32 %v3827, %v3986
      %v4080 = vmul.f32 %v3828, %v3988
      %v4081 = vmul.f32 %v3829, %v3990
      %v4082 = vmul.f32 %v3830, %v3992
      %v4083 = vmul.f32 %v3831, %v3994
      %v4084 = vmul.f32 %v3832, %v3996
      %v4085 = vmul.f32 %v3833, %v3998
      %v4086 = vmul.f32 %v3834, %v4000
      %v4087 = vmul.f32 %v3835, %v4002
      %v4088 = vmul.f32 %v3836, %v4004
      %v4089 = vmul.f32 %v3837, %v4006
      %v4090 = vmul.f32 %v3838, %v4008
      %v4091 = vmul.f32 %v3839, %v4010
      %v4092 = vmul.f32 %v3840, %v4012
      %v4093 = vmul.f32 %v3841, %v4014
      %v4094 = vmul.f32 %v3842, %v4016
      %v4095 = vmul.f32 %v3843, %v4018
      %v4096 = vmul.f32 %v3844, %v4020
      %v4097 = vmul.f32 %v3845, %v4022
      %v4098 = vmul.f32 %v3846, %v4024
      %v4099 = vmul.f32 %v3847, %v4026
      %v4100 = vmul.f32 %v3848, %v4028
      %4137 = vrot.lane.b32.xlu0 %v4065, 32
      %v4138 = vpop.permute.xlu0 %4137
      %4139 = vrot.lane.b32.xlu0 %v4066, 32
      %v4140 = vpop.permute.xlu0 %4139
      %4141 = vrot.lane.b32.xlu0 %v4067, 32
      %v4142 = vpop.permute.xlu0 %4141
      %4143 = vrot.lane.b32.xlu0 %v4068, 32
      %v4144 = vpop.permute.xlu0 %4143
      %4145 = vrot.lane.b32.xlu0 %v4069, 32
      %v4146 = vpop.permute.xlu0 %4145
      %4147 = vrot.lane.b32.xlu0 %v4070, 32
      %v4148 = vpop.permute.xlu0 %4147
      %4149 = vrot.lane.b32.xlu0 %v4071, 32
      %v4150 = vpop.permute.xlu0 %4149
      %4151 = vrot.lane.b32.xlu0 %v4072, 32
      %v4152 = vpop.permute.xlu0 %4151
      %4153 = vrot.lane.b32.xlu0 %v4073, 32
      %v4154 = vpop.permute.xlu0 %4153
      %4155 = vrot.lane.b32.xlu0 %v4074, 32
      %v4156 = vpop.permute.xlu0 %4155
      %4157 = vrot.lane.b32.xlu0 %v4075, 32
      %v4158 = vpop.permute.xlu0 %4157
      %4159 = vrot.lane.b32.xlu0 %v4076, 32
      %v4160 = vpop.permute.xlu0 %4159
      %4161 = vrot.lane.b32.xlu0 %v4077, 32
      %v4162 = vpop.permute.xlu0 %4161
      %4163 = vrot.lane.b32.xlu0 %v4078, 32
      %v4164 = vpop.permute.xlu0 %4163
      %4165 = vrot.lane.b32.xlu0 %v4079, 32
      %v4166 = vpop.permute.xlu0 %4165
      %4167 = vrot.lane.b32.xlu0 %v4080, 32
      %v4168 = vpop.permute.xlu0 %4167
      %4169 = vrot.lane.b32.xlu0 %v4081, 32
      %v4170 = vpop.permute.xlu0 %4169
      %4171 = vrot.lane.b32.xlu0 %v4082, 32
      %v4172 = vpop.permute.xlu0 %4171
      %4173 = vrot.lane.b32.xlu0 %v4083, 32
      %v4174 = vpop.permute.xlu0 %4173
      %4175 = vrot.lane.b32.xlu0 %v4084, 32
      %v4176 = vpop.permute.xlu0 %4175
      %4177 = vrot.lane.b32.xlu0 %v4085, 32
      %v4178 = vpop.permute.xlu0 %4177
      %4179 = vrot.lane.b32.xlu0 %v4086, 32
      %v4180 = vpop.permute.xlu0 %4179
      %4181 = vrot.lane.b32.xlu0 %v4087, 32
      %v4182 = vpop.permute.xlu0 %4181
      %4183 = vrot.lane.b32.xlu0 %v4088, 32
      %v4184 = vpop.permute.xlu0 %4183
      %4185 = vrot.lane.b32.xlu0 %v4089, 32
      %v4186 = vpop.permute.xlu0 %4185
      %4187 = vrot.lane.b32.xlu0 %v4090, 32
      %v4188 = vpop.permute.xlu0 %4187
      %4189 = vrot.lane.b32.xlu0 %v4091, 32
      %v4190 = vpop.permute.xlu0 %4189
      %4191 = vrot.lane.b32.xlu0 %v4092, 32
      %v4192 = vpop.permute.xlu0 %4191
      %4193 = vrot.lane.b32.xlu0 %v4093, 32
      %v4194 = vpop.permute.xlu0 %4193
      %4195 = vrot.lane.b32.xlu0 %v4094, 32
      %v4196 = vpop.permute.xlu0 %4195
      %4197 = vrot.lane.b32.xlu0 %v4095, 32
      %v4198 = vpop.permute.xlu0 %4197
      %4199 = vrot.lane.b32.xlu0 %v4096, 32
      %v4200 = vpop.permute.xlu0 %4199
      %4201 = vrot.lane.b32.xlu0 %v4097, 32
      %v4202 = vpop.permute.xlu0 %4201
      %4203 = vrot.lane.b32.xlu0 %v4098, 32
      %v4204 = vpop.permute.xlu0 %4203
      %4205 = vrot.lane.b32.xlu0 %v4099, 32
      %v4206 = vpop.permute.xlu0 %4205
      %4207 = vrot.lane.b32.xlu0 %v4100, 32
      %v4208 = vpop.permute.xlu0 %4207
      %v4245 = vadd.f32 %v3885, %v4138
      %v4246 = vadd.f32 %v3886, %v4140
      %v4247 = vadd.f32 %v3887, %v4142
      %v4248 = vadd.f32 %v3888, %v4144
      %v4249 = vadd.f32 %v3889, %v4146
      %v4250 = vadd.f32 %v3890, %v4148
      %v4251 = vadd.f32 %v3891, %v4150
      %v4252 = vadd.f32 %v3892, %v4152
      %v4253 = vadd.f32 %v3893, %v4154
      %v4254 = vadd.f32 %v3894, %v4156
      %v4255 = vadd.f32 %v3895, %v4158
      %v4256 = vadd.f32 %v3896, %v4160
      %v4257 = vadd.f32 %v3897, %v4162
      %v4258 = vadd.f32 %v3898, %v4164
      %v4259 = vadd.f32 %v3899, %v4166
      %v4260 = vadd.f32 %v3900, %v4168
      %v4261 = vadd.f32 %v3901, %v4170
      %v4262 = vadd.f32 %v3902, %v4172
      %v4263 = vadd.f32 %v3903, %v4174
      %v4264 = vadd.f32 %v3904, %v4176
      %v4265 = vadd.f32 %v3905, %v4178
      %v4266 = vadd.f32 %v3906, %v4180
      %v4267 = vadd.f32 %v3907, %v4182
      %v4268 = vadd.f32 %v3908, %v4184
      %v4269 = vadd.f32 %v3909, %v4186
      %v4270 = vadd.f32 %v3910, %v4188
      %v4271 = vadd.f32 %v3911, %v4190
      %v4272 = vadd.f32 %v3912, %v4192
      %v4273 = vadd.f32 %v3913, %v4194
      %v4274 = vadd.f32 %v3914, %v4196
      %v4275 = vadd.f32 %v3915, %v4198
      %v4276 = vadd.f32 %v3916, %v4200
      %v4277 = vadd.f32 %v3917, %v4202
      %v4278 = vadd.f32 %v3918, %v4204
      %v4279 = vadd.f32 %v3919, %v4206
      %v4280 = vadd.f32 %v3920, %v4208
      %v4281 = vtanh.pop %v4245
      %v4282 = vtanh.pop %v4246
      %v4283 = vtanh.pop %v4247
      %v4284 = vtanh.pop %v4248
      %v4285 = vtanh.pop %v4249
      %v4286 = vtanh.pop %v4250
      %v4287 = vtanh.pop %v4251
      %v4288 = vtanh.pop %v4252
      %v4289 = vtanh.pop %v4253
      %v4290 = vtanh.pop %v4254
      %v4291 = vtanh.pop %v4255
      %v4292 = vtanh.pop %v4256
      %v4293 = vtanh.pop %v4257
      %v4294 = vtanh.pop %v4258
      %v4295 = vtanh.pop %v4259
      %v4296 = vtanh.pop %v4260
      %v4297 = vtanh.pop %v4261
      %v4298 = vtanh.pop %v4262
      %v4299 = vtanh.pop %v4263
      %v4300 = vtanh.pop %v4264
      %v4301 = vtanh.pop %v4265
      %v4302 = vtanh.pop %v4266
      %v4303 = vtanh.pop %v4267
      %v4304 = vtanh.pop %v4268
      %v4305 = vtanh.pop %v4269
      %v4306 = vtanh.pop %v4270
      %v4307 = vtanh.pop %v4271
      %v4308 = vtanh.pop %v4272
      %v4309 = vtanh.pop %v4273
      %v4310 = vtanh.pop %v4274
      %v4311 = vtanh.pop %v4275
      %v4312 = vtanh.pop %v4276
      %v4313 = vtanh.pop %v4277
      %v4314 = vtanh.pop %v4278
      %v4315 = vtanh.pop %v4279
      %v4316 = vtanh.pop %v4280
      %4353 = vrot.lane.b32.xlu0 %v4281, 32
      %v4354 = vpop.permute.xlu0 %4353
      %4355 = vrot.lane.b32.xlu0 %v4282, 32
      %v4356 = vpop.permute.xlu0 %4355
      %4357 = vrot.lane.b32.xlu0 %v4283, 32
      %v4358 = vpop.permute.xlu0 %4357
      %4359 = vrot.lane.b32.xlu0 %v4284, 32
      %v4360 = vpop.permute.xlu0 %4359
      %4361 = vrot.lane.b32.xlu0 %v4285, 32
      %v4362 = vpop.permute.xlu0 %4361
      %4363 = vrot.lane.b32.xlu0 %v4286, 32
      %v4364 = vpop.permute.xlu0 %4363
      %4365 = vrot.lane.b32.xlu0 %v4287, 32
      %v4366 = vpop.permute.xlu0 %4365
      %4367 = vrot.lane.b32.xlu0 %v4288, 32
      %v4368 = vpop.permute.xlu0 %4367
      %4369 = vrot.lane.b32.xlu0 %v4289, 32
      %v4370 = vpop.permute.xlu0 %4369
      %4371 = vrot.lane.b32.xlu0 %v4290, 32
      %v4372 = vpop.permute.xlu0 %4371
      %4373 = vrot.lane.b32.xlu0 %v4291, 32
      %v4374 = vpop.permute.xlu0 %4373
      %4375 = vrot.lane.b32.xlu0 %v4292, 32
      %v4376 = vpop.permute.xlu0 %4375
      %4377 = vrot.lane.b32.xlu0 %v4293, 32
      %v4378 = vpop.permute.xlu0 %4377
      %4379 = vrot.lane.b32.xlu0 %v4294, 32
      %v4380 = vpop.permute.xlu0 %4379
      %4381 = vrot.lane.b32.xlu0 %v4295, 32
      %v4382 = vpop.permute.xlu0 %4381
      %4383 = vrot.lane.b32.xlu0 %v4296, 32
      %v4384 = vpop.permute.xlu0 %4383
      %4385 = vrot.lane.b32.xlu0 %v4297, 32
      %v4386 = vpop.permute.xlu0 %4385
      %4387 = vrot.lane.b32.xlu0 %v4298, 32
      %v4388 = vpop.permute.xlu0 %4387
      %4389 = vrot.lane.b32.xlu0 %v4299, 32
      %v4390 = vpop.permute.xlu0 %4389
      %4391 = vrot.lane.b32.xlu0 %v4300, 32
      %v4392 = vpop.permute.xlu0 %4391
      %4393 = vrot.lane.b32.xlu0 %v4301, 32
      %v4394 = vpop.permute.xlu0 %4393
      %4395 = vrot.lane.b32.xlu0 %v4302, 32
      %v4396 = vpop.permute.xlu0 %4395
      %4397 = vrot.lane.b32.xlu0 %v4303, 32
      %v4398 = vpop.permute.xlu0 %4397
      %4399 = vrot.lane.b32.xlu0 %v4304, 32
      %v4400 = vpop.permute.xlu0 %4399
      %4401 = vrot.lane.b32.xlu0 %v4305, 32
      %v4402 = vpop.permute.xlu0 %4401
      %4403 = vrot.lane.b32.xlu0 %v4306, 32
      %v4404 = vpop.permute.xlu0 %4403
      %4405 = vrot.lane.b32.xlu0 %v4307, 32
      %v4406 = vpop.permute.xlu0 %4405
      %4407 = vrot.lane.b32.xlu0 %v4308, 32
      %v4408 = vpop.permute.xlu0 %4407
      %4409 = vrot.lane.b32.xlu0 %v4309, 32
      %v4410 = vpop.permute.xlu0 %4409
      %4411 = vrot.lane.b32.xlu0 %v4310, 32
      %v4412 = vpop.permute.xlu0 %4411
      %4413 = vrot.lane.b32.xlu0 %v4311, 32
      %v4414 = vpop.permute.xlu0 %4413
      %4415 = vrot.lane.b32.xlu0 %v4312, 32
      %v4416 = vpop.permute.xlu0 %4415
      %4417 = vrot.lane.b32.xlu0 %v4313, 32
      %v4418 = vpop.permute.xlu0 %4417
      %4419 = vrot.lane.b32.xlu0 %v4314, 32
      %v4420 = vpop.permute.xlu0 %4419
      %4421 = vrot.lane.b32.xlu0 %v4315, 32
      %v4422 = vpop.permute.xlu0 %4421
      %4423 = vrot.lane.b32.xlu0 %v4316, 32
      %v4424 = vpop.permute.xlu0 %4423
      %v4461 = vmul.f32 %v3813, %v4354
      %v4462 = vmul.f32 %v3814, %v4356
      %v4463 = vmul.f32 %v3815, %v4358
      %v4464 = vmul.f32 %v3816, %v4360
      %v4465 = vmul.f32 %v3817, %v4362
      %v4466 = vmul.f32 %v3818, %v4364
      %v4467 = vmul.f32 %v3819, %v4366
      %v4468 = vmul.f32 %v3820, %v4368
      %v4469 = vmul.f32 %v3821, %v4370
      %v4470 = vmul.f32 %v3822, %v4372
      %v4471 = vmul.f32 %v3823, %v4374
      %v4472 = vmul.f32 %v3824, %v4376
      %v4473 = vmul.f32 %v3825, %v4378
      %v4474 = vmul.f32 %v3826, %v4380
      %v4475 = vmul.f32 %v3827, %v4382
      %v4476 = vmul.f32 %v3828, %v4384
      %v4477 = vmul.f32 %v3829, %v4386
      %v4478 = vmul.f32 %v3830, %v4388
      %v4479 = vmul.f32 %v3831, %v4390
      %v4480 = vmul.f32 %v3832, %v4392
      %v4481 = vmul.f32 %v3833, %v4394
      %v4482 = vmul.f32 %v3834, %v4396
      %v4483 = vmul.f32 %v3835, %v4398
      %v4484 = vmul.f32 %v3836, %v4400
      %v4485 = vmul.f32 %v3837, %v4402
      %v4486 = vmul.f32 %v3838, %v4404
      %v4487 = vmul.f32 %v3839, %v4406
      %v4488 = vmul.f32 %v3840, %v4408
      %v4489 = vmul.f32 %v3841, %v4410
      %v4490 = vmul.f32 %v3842, %v4412
      %v4491 = vmul.f32 %v3843, %v4414
      %v4492 = vmul.f32 %v3844, %v4416
      %v4493 = vmul.f32 %v3845, %v4418
      %v4494 = vmul.f32 %v3846, %v4420
      %v4495 = vmul.f32 %v3847, %v4422
      %v4496 = vmul.f32 %v3848, %v4424
      %v4497 = vlaneseq
      %v4498 = vshrl.u32 %v4497, 7
      %v4499 = vadd.s32 %v4498, 8
      %v4500 = vadd.s32 %v4498, 16
      %v4501 = vadd.s32 %v4498, 24
      %v4502 = vadd.s32 %v4498, 32
      %v4503 = vadd.s32 %v4498, 40
      %v4504 = vadd.s32 %v4498, 48
      %v4505 = vadd.s32 %v4498, 56
      %v4506 = vadd.s32 %v4498, 64
      %v4507 = vadd.s32 %v4498, 72
      %v4508 = vadd.s32 %v4498, 80
      %v4509 = vadd.s32 %v4498, 88
      %v4510 = vadd.s32 %v4498, 96
      %v4511 = vadd.s32 %v4498, 104
      %v4512 = vadd.s32 %v4498, 112
      %v4513 = vadd.s32 %v4498, 120
      %v4514 = vadd.s32 %v4498, 128
      %v4515 = vadd.s32 %v4498, 136
      %v4516 = vadd.s32 %v4498, 144
      %v4517 = vadd.s32 %v4498, 152
      %v4518 = vadd.s32 %v4498, 160
      %v4519 = vadd.s32 %v4498, 168
      %v4520 = vadd.s32 %v4498, 176
      %v4521 = vadd.s32 %v4498, 184
      %v4522 = vadd.s32 %v4498, 192
      %v4523 = vadd.s32 %v4498, 200
      %v4524 = vadd.s32 %v4498, 208
      %v4525 = vadd.s32 %v4498, 216
      %v4526 = vadd.s32 %v4498, 224
      %v4527 = vadd.s32 %v4498, 232
      %v4528 = vadd.s32 %v4498, 240
      %v4529 = vadd.s32 %v4498, 248
      %v4530 = vadd.s32 %v4498, 256
      %v4531 = vadd.s32 %v4498, 264
      %v4532 = vadd.s32 %v4498, 272
      %v4533 = vadd.s32 %v4498, 280
      %vm4534 = vcmp.lt.s32.totalorder %v4498, 0
      %v4535 = vsub.s32 0, %v4498
      %v4536 = vsel %vm4534, %v4535, %v4498
      %v4537 = vmul.u32.u64.compose %v4536, 3817748708
      %v4538 = vextract.low.u32 %v4537
      %v4539 = vextract.high.u32 %v4537
      %v4540 = vshrl.u32 %v4539, 4
      %v4541 = vmul.u32 %v4540, 18
      %v4542 = vsub.s32 %v4536, %v4541
      %v4543 = vsub.s32 0, %v4542
      %v4544 = vsel %vm4534, %v4543, %v4542
      %vm4545 = vcmp.lt.s32.totalorder %v4499, 0
      %v4546 = vsub.s32 0, %v4499
      %v4547 = vsel %vm4545, %v4546, %v4499
      %v4548 = vmul.u32.u64.compose %v4547, 3817748708
      %v4549 = vextract.low.u32 %v4548
      %v4550 = vextract.high.u32 %v4548
      %v4551 = vshrl.u32 %v4550, 4
      %v4552 = vmul.u32 %v4551, 18
      %v4553 = vsub.s32 %v4547, %v4552
      %v4554 = vsub.s32 0, %v4553
      %v4555 = vsel %vm4545, %v4554, %v4553
      %vm4556 = vcmp.lt.s32.totalorder %v4500, 0
      %v4557 = vsub.s32 0, %v4500
      %v4558 = vsel %vm4556, %v4557, %v4500
      %v4559 = vmul.u32.u64.compose %v4558, 3817748708
      %v4560 = vextract.low.u32 %v4559
      %v4561 = vextract.high.u32 %v4559
      %v4562 = vshrl.u32 %v4561, 4
      %v4563 = vmul.u32 %v4562, 18
      %v4564 = vsub.s32 %v4558, %v4563
      %v4565 = vsub.s32 0, %v4564
      %v4566 = vsel %vm4556, %v4565, %v4564
      %vm4567 = vcmp.lt.s32.totalorder %v4501, 0
      %v4568 = vsub.s32 0, %v4501
      %v4569 = vsel %vm4567, %v4568, %v4501
      %v4570 = vmul.u32.u64.compose %v4569, 3817748708
      %v4571 = vextract.low.u32 %v4570
      %v4572 = vextract.high.u32 %v4570
      %v4573 = vshrl.u32 %v4572, 4
      %v4574 = vmul.u32 %v4573, 18
      %v4575 = vsub.s32 %v4569, %v4574
      %v4576 = vsub.s32 0, %v4575
      %v4577 = vsel %vm4567, %v4576, %v4575
      %vm4578 = vcmp.lt.s32.totalorder %v4502, 0
      %v4579 = vsub.s32 0, %v4502
      %v4580 = vsel %vm4578, %v4579, %v4502
      %v4581 = vmul.u32.u64.compose %v4580, 3817748708
      %v4582 = vextract.low.u32 %v4581
      %v4583 = vextract.high.u32 %v4581
      %v4584 = vshrl.u32 %v4583, 4
      %v4585 = vmul.u32 %v4584, 18
      %v4586 = vsub.s32 %v4580, %v4585
      %v4587 = vsub.s32 0, %v4586
      %v4588 = vsel %vm4578, %v4587, %v4586
      %vm4589 = vcmp.lt.s32.totalorder %v4503, 0
      %v4590 = vsub.s32 0, %v4503
      %v4591 = vsel %vm4589, %v4590, %v4503
      %v4592 = vmul.u32.u64.compose %v4591, 3817748708
      %v4593 = vextract.low.u32 %v4592
      %v4594 = vextract.high.u32 %v4592
      %v4595 = vshrl.u32 %v4594, 4
      %v4596 = vmul.u32 %v4595, 18
      %v4597 = vsub.s32 %v4591, %v4596
      %v4598 = vsub.s32 0, %v4597
      %v4599 = vsel %vm4589, %v4598, %v4597
      %vm4600 = vcmp.lt.s32.totalorder %v4504, 0
      %v4601 = vsub.s32 0, %v4504
      %v4602 = vsel %vm4600, %v4601, %v4504
      %v4603 = vmul.u32.u64.compose %v4602, 3817748708
      %v4604 = vextract.low.u32 %v4603
      %v4605 = vextract.high.u32 %v4603
      %v4606 = vshrl.u32 %v4605, 4
      %v4607 = vmul.u32 %v4606, 18
      %v4608 = vsub.s32 %v4602, %v4607
      %v4609 = vsub.s32 0, %v4608
      %v4610 = vsel %vm4600, %v4609, %v4608
      %vm4611 = vcmp.lt.s32.totalorder %v4505, 0
      %v4612 = vsub.s32 0, %v4505
      %v4613 = vsel %vm4611, %v4612, %v4505
      %v4614 = vmul.u32.u64.compose %v4613, 3817748708
      %v4615 = vextract.low.u32 %v4614
      %v4616 = vextract.high.u32 %v4614
      %v4617 = vshrl.u32 %v4616, 4
      %v4618 = vmul.u32 %v4617, 18
      %v4619 = vsub.s32 %v4613, %v4618
      %v4620 = vsub.s32 0, %v4619
      %v4621 = vsel %vm4611, %v4620, %v4619
      %vm4622 = vcmp.lt.s32.totalorder %v4506, 0
      %v4623 = vsub.s32 0, %v4506
      %v4624 = vsel %vm4622, %v4623, %v4506
      %v4625 = vmul.u32.u64.compose %v4624, 3817748708
      %v4626 = vextract.low.u32 %v4625
      %v4627 = vextract.high.u32 %v4625
      %v4628 = vshrl.u32 %v4627, 4
      %v4629 = vmul.u32 %v4628, 18
      %v4630 = vsub.s32 %v4624, %v4629
      %v4631 = vsub.s32 0, %v4630
      %v4632 = vsel %vm4622, %v4631, %v4630
      %vm4633 = vcmp.lt.s32.totalorder %v4507, 0
      %v4634 = vsub.s32 0, %v4507
      %v4635 = vsel %vm4633, %v4634, %v4507
      %v4636 = vmul.u32.u64.compose %v4635, 3817748708
      %v4637 = vextract.low.u32 %v4636
      %v4638 = vextract.high.u32 %v4636
      %v4639 = vshrl.u32 %v4638, 4
      %v4640 = vmul.u32 %v4639, 18
      %v4641 = vsub.s32 %v4635, %v4640
      %v4642 = vsub.s32 0, %v4641
      %v4643 = vsel %vm4633, %v4642, %v4641
      %vm4644 = vcmp.lt.s32.totalorder %v4508, 0
      %v4645 = vsub.s32 0, %v4508
      %v4646 = vsel %vm4644, %v4645, %v4508
      %v4647 = vmul.u32.u64.compose %v4646, 3817748708
      %v4648 = vextract.low.u32 %v4647
      %v4649 = vextract.high.u32 %v4647
      %v4650 = vshrl.u32 %v4649, 4
      %v4651 = vmul.u32 %v4650, 18
      %v4652 = vsub.s32 %v4646, %v4651
      %v4653 = vsub.s32 0, %v4652
      %v4654 = vsel %vm4644, %v4653, %v4652
      %vm4655 = vcmp.lt.s32.totalorder %v4509, 0
      %v4656 = vsub.s32 0, %v4509
      %v4657 = vsel %vm4655, %v4656, %v4509
      %v4658 = vmul.u32.u64.compose %v4657, 3817748708
      %v4659 = vextract.low.u32 %v4658
      %v4660 = vextract.high.u32 %v4658
      %v4661 = vshrl.u32 %v4660, 4
      %v4662 = vmul.u32 %v4661, 18
      %v4663 = vsub.s32 %v4657, %v4662
      %v4664 = vsub.s32 0, %v4663
      %v4665 = vsel %vm4655, %v4664, %v4663
      %vm4666 = vcmp.lt.s32.totalorder %v4510, 0
      %v4667 = vsub.s32 0, %v4510
      %v4668 = vsel %vm4666, %v4667, %v4510
      %v4669 = vmul.u32.u64.compose %v4668, 3817748708
      %v4670 = vextract.low.u32 %v4669
      %v4671 = vextract.high.u32 %v4669
      %v4672 = vshrl.u32 %v4671, 4
      %v4673 = vmul.u32 %v4672, 18
      %v4674 = vsub.s32 %v4668, %v4673
      %v4675 = vsub.s32 0, %v4674
      %v4676 = vsel %vm4666, %v4675, %v4674
      %vm4677 = vcmp.lt.s32.totalorder %v4511, 0
      %v4678 = vsub.s32 0, %v4511
      %v4679 = vsel %vm4677, %v4678, %v4511
      %v4680 = vmul.u32.u64.compose %v4679, 3817748708
      %v4681 = vextract.low.u32 %v4680
      %v4682 = vextract.high.u32 %v4680
      %v4683 = vshrl.u32 %v4682, 4
      %v4684 = vmul.u32 %v4683, 18
      %v4685 = vsub.s32 %v4679, %v4684
      %v4686 = vsub.s32 0, %v4685
      %v4687 = vsel %vm4677, %v4686, %v4685
      %vm4688 = vcmp.lt.s32.totalorder %v4512, 0
      %v4689 = vsub.s32 0, %v4512
      %v4690 = vsel %vm4688, %v4689, %v4512
      %v4691 = vmul.u32.u64.compose %v4690, 3817748708
      %v4692 = vextract.low.u32 %v4691
      %v4693 = vextract.high.u32 %v4691
      %v4694 = vshrl.u32 %v4693, 4
      %v4695 = vmul.u32 %v4694, 18
      %v4696 = vsub.s32 %v4690, %v4695
      %v4697 = vsub.s32 0, %v4696
      %v4698 = vsel %vm4688, %v4697, %v4696
      %vm4699 = vcmp.lt.s32.totalorder %v4513, 0
      %v4700 = vsub.s32 0, %v4513
      %v4701 = vsel %vm4699, %v4700, %v4513
      %v4702 = vmul.u32.u64.compose %v4701, 3817748708
      %v4703 = vextract.low.u32 %v4702
      %v4704 = vextract.high.u32 %v4702
      %v4705 = vshrl.u32 %v4704, 4
      %v4706 = vmul.u32 %v4705, 18
      %v4707 = vsub.s32 %v4701, %v4706
      %v4708 = vsub.s32 0, %v4707
      %v4709 = vsel %vm4699, %v4708, %v4707
      %vm4710 = vcmp.lt.s32.totalorder %v4514, 0
      %v4711 = vsub.s32 0, %v4514
      %v4712 = vsel %vm4710, %v4711, %v4514
      %v4713 = vmul.u32.u64.compose %v4712, 3817748708
      %v4714 = vextract.low.u32 %v4713
      %v4715 = vextract.high.u32 %v4713
      %v4716 = vshrl.u32 %v4715, 4
      %v4717 = vmul.u32 %v4716, 18
      %v4718 = vsub.s32 %v4712, %v4717
      %v4719 = vsub.s32 0, %v4718
      %v4720 = vsel %vm4710, %v4719, %v4718
      %vm4721 = vcmp.lt.s32.totalorder %v4515, 0
      %v4722 = vsub.s32 0, %v4515
      %v4723 = vsel %vm4721, %v4722, %v4515
      %v4724 = vmul.u32.u64.compose %v4723, 3817748708
      %v4725 = vextract.low.u32 %v4724
      %v4726 = vextract.high.u32 %v4724
      %v4727 = vshrl.u32 %v4726, 4
      %v4728 = vmul.u32 %v4727, 18
      %v4729 = vsub.s32 %v4723, %v4728
      %v4730 = vsub.s32 0, %v4729
      %v4731 = vsel %vm4721, %v4730, %v4729
      %vm4732 = vcmp.lt.s32.totalorder %v4516, 0
      %v4733 = vsub.s32 0, %v4516
      %v4734 = vsel %vm4732, %v4733, %v4516
      %v4735 = vmul.u32.u64.compose %v4734, 3817748708
      %v4736 = vextract.low.u32 %v4735
      %v4737 = vextract.high.u32 %v4735
      %v4738 = vshrl.u32 %v4737, 4
      %v4739 = vmul.u32 %v4738, 18
      %v4740 = vsub.s32 %v4734, %v4739
      %v4741 = vsub.s32 0, %v4740
      %v4742 = vsel %vm4732, %v4741, %v4740
      %vm4743 = vcmp.lt.s32.totalorder %v4517, 0
      %v4744 = vsub.s32 0, %v4517
      %v4745 = vsel %vm4743, %v4744, %v4517
      %v4746 = vmul.u32.u64.compose %v4745, 3817748708
      %v4747 = vextract.low.u32 %v4746
      %v4748 = vextract.high.u32 %v4746
      %v4749 = vshrl.u32 %v4748, 4
      %v4750 = vmul.u32 %v4749, 18
      %v4751 = vsub.s32 %v4745, %v4750
      %v4752 = vsub.s32 0, %v4751
      %v4753 = vsel %vm4743, %v4752, %v4751
      %vm4754 = vcmp.lt.s32.totalorder %v4518, 0
      %v4755 = vsub.s32 0, %v4518
      %v4756 = vsel %vm4754, %v4755, %v4518
      %v4757 = vmul.u32.u64.compose %v4756, 3817748708
      %v4758 = vextract.low.u32 %v4757
      %v4759 = vextract.high.u32 %v4757
      %v4760 = vshrl.u32 %v4759, 4
      %v4761 = vmul.u32 %v4760, 18
      %v4762 = vsub.s32 %v4756, %v4761
      %v4763 = vsub.s32 0, %v4762
      %v4764 = vsel %vm4754, %v4763, %v4762
      %vm4765 = vcmp.lt.s32.totalorder %v4519, 0
      %v4766 = vsub.s32 0, %v4519
      %v4767 = vsel %vm4765, %v4766, %v4519
      %v4768 = vmul.u32.u64.compose %v4767, 3817748708
      %v4769 = vextract.low.u32 %v4768
      %v4770 = vextract.high.u32 %v4768
      %v4771 = vshrl.u32 %v4770, 4
      %v4772 = vmul.u32 %v4771, 18
      %v4773 = vsub.s32 %v4767, %v4772
      %v4774 = vsub.s32 0, %v4773
      %v4775 = vsel %vm4765, %v4774, %v4773
      %vm4776 = vcmp.lt.s32.totalorder %v4520, 0
      %v4777 = vsub.s32 0, %v4520
      %v4778 = vsel %vm4776, %v4777, %v4520
      %v4779 = vmul.u32.u64.compose %v4778, 3817748708
      %v4780 = vextract.low.u32 %v4779
      %v4781 = vextract.high.u32 %v4779
      %v4782 = vshrl.u32 %v4781, 4
      %v4783 = vmul.u32 %v4782, 18
      %v4784 = vsub.s32 %v4778, %v4783
      %v4785 = vsub.s32 0, %v4784
      %v4786 = vsel %vm4776, %v4785, %v4784
      %vm4787 = vcmp.lt.s32.totalorder %v4521, 0
      %v4788 = vsub.s32 0, %v4521
      %v4789 = vsel %vm4787, %v4788, %v4521
      %v4790 = vmul.u32.u64.compose %v4789, 3817748708
      %v4791 = vextract.low.u32 %v4790
      %v4792 = vextract.high.u32 %v4790
      %v4793 = vshrl.u32 %v4792, 4
      %v4794 = vmul.u32 %v4793, 18
      %v4795 = vsub.s32 %v4789, %v4794
      %v4796 = vsub.s32 0, %v4795
      %v4797 = vsel %vm4787, %v4796, %v4795
      %vm4798 = vcmp.lt.s32.totalorder %v4522, 0
      %v4799 = vsub.s32 0, %v4522
      %v4800 = vsel %vm4798, %v4799, %v4522
      %v4801 = vmul.u32.u64.compose %v4800, 3817748708
      %v4802 = vextract.low.u32 %v4801
      %v4803 = vextract.high.u32 %v4801
      %v4804 = vshrl.u32 %v4803, 4
      %v4805 = vmul.u32 %v4804, 18
      %v4806 = vsub.s32 %v4800, %v4805
      %v4807 = vsub.s32 0, %v4806
      %v4808 = vsel %vm4798, %v4807, %v4806
      %vm4809 = vcmp.lt.s32.totalorder %v4523, 0
      %v4810 = vsub.s32 0, %v4523
      %v4811 = vsel %vm4809, %v4810, %v4523
      %v4812 = vmul.u32.u64.compose %v4811, 3817748708
      %v4813 = vextract.low.u32 %v4812
      %v4814 = vextract.high.u32 %v4812
      %v4815 = vshrl.u32 %v4814, 4
      %v4816 = vmul.u32 %v4815, 18
      %v4817 = vsub.s32 %v4811, %v4816
      %v4818 = vsub.s32 0, %v4817
      %v4819 = vsel %vm4809, %v4818, %v4817
      %vm4820 = vcmp.lt.s32.totalorder %v4524, 0
      %v4821 = vsub.s32 0, %v4524
      %v4822 = vsel %vm4820, %v4821, %v4524
      %v4823 = vmul.u32.u64.compose %v4822, 3817748708
      %v4824 = vextract.low.u32 %v4823
      %v4825 = vextract.high.u32 %v4823
      %v4826 = vshrl.u32 %v4825, 4
      %v4827 = vmul.u32 %v4826, 18
      %v4828 = vsub.s32 %v4822, %v4827
      %v4829 = vsub.s32 0, %v4828
      %v4830 = vsel %vm4820, %v4829, %v4828
      %vm4831 = vcmp.lt.s32.totalorder %v4525, 0
      %v4832 = vsub.s32 0, %v4525
      %v4833 = vsel %vm4831, %v4832, %v4525
      %v4834 = vmul.u32.u64.compose %v4833, 3817748708
      %v4835 = vextract.low.u32 %v4834
      %v4836 = vextract.high.u32 %v4834
      %v4837 = vshrl.u32 %v4836, 4
      %v4838 = vmul.u32 %v4837, 18
      %v4839 = vsub.s32 %v4833, %v4838
      %v4840 = vsub.s32 0, %v4839
      %v4841 = vsel %vm4831, %v4840, %v4839
      %vm4842 = vcmp.lt.s32.totalorder %v4526, 0
      %v4843 = vsub.s32 0, %v4526
      %v4844 = vsel %vm4842, %v4843, %v4526
      %v4845 = vmul.u32.u64.compose %v4844, 3817748708
      %v4846 = vextract.low.u32 %v4845
      %v4847 = vextract.high.u32 %v4845
      %v4848 = vshrl.u32 %v4847, 4
      %v4849 = vmul.u32 %v4848, 18
      %v4850 = vsub.s32 %v4844, %v4849
      %v4851 = vsub.s32 0, %v4850
      %v4852 = vsel %vm4842, %v4851, %v4850
      %vm4853 = vcmp.lt.s32.totalorder %v4527, 0
      %v4854 = vsub.s32 0, %v4527
      %v4855 = vsel %vm4853, %v4854, %v4527
      %v4856 = vmul.u32.u64.compose %v4855, 3817748708
      %v4857 = vextract.low.u32 %v4856
      %v4858 = vextract.high.u32 %v4856
      %v4859 = vshrl.u32 %v4858, 4
      %v4860 = vmul.u32 %v4859, 18
      %v4861 = vsub.s32 %v4855, %v4860
      %v4862 = vsub.s32 0, %v4861
      %v4863 = vsel %vm4853, %v4862, %v4861
      %vm4864 = vcmp.lt.s32.totalorder %v4528, 0
      %v4865 = vsub.s32 0, %v4528
      %v4866 = vsel %vm4864, %v4865, %v4528
      %v4867 = vmul.u32.u64.compose %v4866, 3817748708
      %v4868 = vextract.low.u32 %v4867
      %v4869 = vextract.high.u32 %v4867
      %v4870 = vshrl.u32 %v4869, 4
      %v4871 = vmul.u32 %v4870, 18
      %v4872 = vsub.s32 %v4866, %v4871
      %v4873 = vsub.s32 0, %v4872
      %v4874 = vsel %vm4864, %v4873, %v4872
      %vm4875 = vcmp.lt.s32.totalorder %v4529, 0
      %v4876 = vsub.s32 0, %v4529
      %v4877 = vsel %vm4875, %v4876, %v4529
      %v4878 = vmul.u32.u64.compose %v4877, 3817748708
      %v4879 = vextract.low.u32 %v4878
      %v4880 = vextract.high.u32 %v4878
      %v4881 = vshrl.u32 %v4880, 4
      %v4882 = vmul.u32 %v4881, 18
      %v4883 = vsub.s32 %v4877, %v4882
      %v4884 = vsub.s32 0, %v4883
      %v4885 = vsel %vm4875, %v4884, %v4883
      %vm4886 = vcmp.lt.s32.totalorder %v4530, 0
      %v4887 = vsub.s32 0, %v4530
      %v4888 = vsel %vm4886, %v4887, %v4530
      %v4889 = vmul.u32.u64.compose %v4888, 3817748708
      %v4890 = vextract.low.u32 %v4889
      %v4891 = vextract.high.u32 %v4889
      %v4892 = vshrl.u32 %v4891, 4
      %v4893 = vmul.u32 %v4892, 18
      %v4894 = vsub.s32 %v4888, %v4893
      %v4895 = vsub.s32 0, %v4894
      %v4896 = vsel %vm4886, %v4895, %v4894
      %vm4897 = vcmp.lt.s32.totalorder %v4531, 0
      %v4898 = vsub.s32 0, %v4531
      %v4899 = vsel %vm4897, %v4898, %v4531
      %v4900 = vmul.u32.u64.compose %v4899, 3817748708
      %v4901 = vextract.low.u32 %v4900
      %v4902 = vextract.high.u32 %v4900
      %v4903 = vshrl.u32 %v4902, 4
      %v4904 = vmul.u32 %v4903, 18
      %v4905 = vsub.s32 %v4899, %v4904
      %v4906 = vsub.s32 0, %v4905
      %v4907 = vsel %vm4897, %v4906, %v4905
      %vm4908 = vcmp.lt.s32.totalorder %v4532, 0
      %v4909 = vsub.s32 0, %v4532
      %v4910 = vsel %vm4908, %v4909, %v4532
      %v4911 = vmul.u32.u64.compose %v4910, 3817748708
      %v4912 = vextract.low.u32 %v4911
      %v4913 = vextract.high.u32 %v4911
      %v4914 = vshrl.u32 %v4913, 4
      %v4915 = vmul.u32 %v4914, 18
      %v4916 = vsub.s32 %v4910, %v4915
      %v4917 = vsub.s32 0, %v4916
      %v4918 = vsel %vm4908, %v4917, %v4916
      %vm4919 = vcmp.lt.s32.totalorder %v4533, 0
      %v4920 = vsub.s32 0, %v4533
      %v4921 = vsel %vm4919, %v4920, %v4533
      %v4922 = vmul.u32.u64.compose %v4921, 3817748708
      %v4923 = vextract.low.u32 %v4922
      %v4924 = vextract.high.u32 %v4922
      %v4925 = vshrl.u32 %v4924, 4
      %v4926 = vmul.u32 %v4925, 18
      %v4927 = vsub.s32 %v4921, %v4926
      %v4928 = vsub.s32 0, %v4927
      %v4929 = vsel %vm4919, %v4928, %v4927
      %vm4930 = vcmp.ne.s32.totalorder %v4544, 0
      %vm4931 = vcmp.ne.s32.totalorder %v4555, 0
      %vm4932 = vcmp.ne.s32.totalorder %v4566, 0
      %vm4933 = vcmp.ne.s32.totalorder %v4577, 0
      %vm4934 = vcmp.ne.s32.totalorder %v4588, 0
      %vm4935 = vcmp.ne.s32.totalorder %v4599, 0
      %vm4936 = vcmp.ne.s32.totalorder %v4610, 0
      %vm4937 = vcmp.ne.s32.totalorder %v4621, 0
      %vm4938 = vcmp.ne.s32.totalorder %v4632, 0
      %vm4939 = vcmp.ne.s32.totalorder %v4643, 0
      %vm4940 = vcmp.ne.s32.totalorder %v4654, 0
      %vm4941 = vcmp.ne.s32.totalorder %v4665, 0
      %vm4942 = vcmp.ne.s32.totalorder %v4676, 0
      %vm4943 = vcmp.ne.s32.totalorder %v4687, 0
      %vm4944 = vcmp.ne.s32.totalorder %v4698, 0
      %vm4945 = vcmp.ne.s32.totalorder %v4709, 0
      %vm4946 = vcmp.ne.s32.totalorder %v4720, 0
      %vm4947 = vcmp.ne.s32.totalorder %v4731, 0
      %vm4948 = vcmp.ne.s32.totalorder %v4742, 0
      %vm4949 = vcmp.ne.s32.totalorder %v4753, 0
      %vm4950 = vcmp.ne.s32.totalorder %v4764, 0
      %vm4951 = vcmp.ne.s32.totalorder %v4775, 0
      %vm4952 = vcmp.ne.s32.totalorder %v4786, 0
      %vm4953 = vcmp.ne.s32.totalorder %v4797, 0
      %vm4954 = vcmp.ne.s32.totalorder %v4808, 0
      %vm4955 = vcmp.ne.s32.totalorder %v4819, 0
      %vm4956 = vcmp.ne.s32.totalorder %v4830, 0
      %vm4957 = vcmp.ne.s32.totalorder %v4841, 0
      %vm4958 = vcmp.ne.s32.totalorder %v4852, 0
      %vm4959 = vcmp.ne.s32.totalorder %v4863, 0
      %vm4960 = vcmp.ne.s32.totalorder %v4874, 0
      %vm4961 = vcmp.ne.s32.totalorder %v4885, 0
      %vm4962 = vcmp.ne.s32.totalorder %v4896, 0
      %vm4963 = vcmp.ne.s32.totalorder %v4907, 0
      %vm4964 = vcmp.ne.s32.totalorder %v4918, 0
      %vm4965 = vcmp.ne.s32.totalorder %v4929, 0
      %vm4966 = vcmp.lt.s32.totalorder %v4544, 0
      %vm4967 = vcmp.lt.s32.totalorder %v4555, 0
      %vm4968 = vcmp.lt.s32.totalorder %v4566, 0
      %vm4969 = vcmp.lt.s32.totalorder %v4577, 0
      %vm4970 = vcmp.lt.s32.totalorder %v4588, 0
      %vm4971 = vcmp.lt.s32.totalorder %v4599, 0
      %vm4972 = vcmp.lt.s32.totalorder %v4610, 0
      %vm4973 = vcmp.lt.s32.totalorder %v4621, 0
      %vm4974 = vcmp.lt.s32.totalorder %v4632, 0
      %vm4975 = vcmp.lt.s32.totalorder %v4643, 0
      %vm4976 = vcmp.lt.s32.totalorder %v4654, 0
      %vm4977 = vcmp.lt.s32.totalorder %v4665, 0
      %vm4978 = vcmp.lt.s32.totalorder %v4676, 0
      %vm4979 = vcmp.lt.s32.totalorder %v4687, 0
      %vm4980 = vcmp.lt.s32.totalorder %v4698, 0
      %vm4981 = vcmp.lt.s32.totalorder %v4709, 0
      %vm4982 = vcmp.lt.s32.totalorder %v4720, 0
      %vm4983 = vcmp.lt.s32.totalorder %v4731, 0
      %vm4984 = vcmp.lt.s32.totalorder %v4742, 0
      %vm4985 = vcmp.lt.s32.totalorder %v4753, 0
      %vm4986 = vcmp.lt.s32.totalorder %v4764, 0
      %vm4987 = vcmp.lt.s32.totalorder %v4775, 0
      %vm4988 = vcmp.lt.s32.totalorder %v4786, 0
      %vm4989 = vcmp.lt.s32.totalorder %v4797, 0
      %vm4990 = vcmp.lt.s32.totalorder %v4808, 0
      %vm4991 = vcmp.lt.s32.totalorder %v4819, 0
      %vm4992 = vcmp.lt.s32.totalorder %v4830, 0
      %vm4993 = vcmp.lt.s32.totalorder %v4841, 0
      %vm4994 = vcmp.lt.s32.totalorder %v4852, 0
      %vm4995 = vcmp.lt.s32.totalorder %v4863, 0
      %vm4996 = vcmp.lt.s32.totalorder %v4874, 0
      %vm4997 = vcmp.lt.s32.totalorder %v4885, 0
      %vm4998 = vcmp.lt.s32.totalorder %v4896, 0
      %vm4999 = vcmp.lt.s32.totalorder %v4907, 0
      %vm5000 = vcmp.lt.s32.totalorder %v4918, 0
      %vm5001 = vcmp.lt.s32.totalorder %v4929, 0
      %vm5002 = vmand %vm4966, %vm4930
      %vm5003 = vmand %vm4967, %vm4931
      %vm5004 = vmand %vm4968, %vm4932
      %vm5005 = vmand %vm4969, %vm4933
      %vm5006 = vmand %vm4970, %vm4934
      %vm5007 = vmand %vm4971, %vm4935
      %vm5008 = vmand %vm4972, %vm4936
      %vm5009 = vmand %vm4973, %vm4937
      %vm5010 = vmand %vm4974, %vm4938
      %vm5011 = vmand %vm4975, %vm4939
      %vm5012 = vmand %vm4976, %vm4940
      %vm5013 = vmand %vm4977, %vm4941
      %vm5014 = vmand %vm4978, %vm4942
      %vm5015 = vmand %vm4979, %vm4943
      %vm5016 = vmand %vm4980, %vm4944
      %vm5017 = vmand %vm4981, %vm4945
      %vm5018 = vmand %vm4982, %vm4946
      %vm5019 = vmand %vm4983, %vm4947
      %vm5020 = vmand %vm4984, %vm4948
      %vm5021 = vmand %vm4985, %vm4949
      %vm5022 = vmand %vm4986, %vm4950
      %vm5023 = vmand %vm4987, %vm4951
      %vm5024 = vmand %vm4988, %vm4952
      %vm5025 = vmand %vm4989, %vm4953
      %vm5026 = vmand %vm4990, %vm4954
      %vm5027 = vmand %vm4991, %vm4955
      %vm5028 = vmand %vm4992, %vm4956
      %vm5029 = vmand %vm4993, %vm4957
      %vm5030 = vmand %vm4994, %vm4958
      %vm5031 = vmand %vm4995, %vm4959
      %vm5032 = vmand %vm4996, %vm4960
      %vm5033 = vmand %vm4997, %vm4961
      %vm5034 = vmand %vm4998, %vm4962
      %vm5035 = vmand %vm4999, %vm4963
      %vm5036 = vmand %vm5000, %vm4964
      %vm5037 = vmand %vm5001, %vm4965
      %v5038 = vadd.s32 %v4544, 18
      %v5039 = vadd.s32 %v4555, 18
      %v5040 = vadd.s32 %v4566, 18
      %v5041 = vadd.s32 %v4577, 18
      %v5042 = vadd.s32 %v4588, 18
      %v5043 = vadd.s32 %v4599, 18
      %v5044 = vadd.s32 %v4610, 18
      %v5045 = vadd.s32 %v4621, 18
      %v5046 = vadd.s32 %v4632, 18
      %v5047 = vadd.s32 %v4643, 18
      %v5048 = vadd.s32 %v4654, 18
      %v5049 = vadd.s32 %v4665, 18
      %v5050 = vadd.s32 %v4676, 18
      %v5051 = vadd.s32 %v4687, 18
      %v5052 = vadd.s32 %v4698, 18
      %v5053 = vadd.s32 %v4709, 18
      %v5054 = vadd.s32 %v4720, 18
      %v5055 = vadd.s32 %v4731, 18
      %v5056 = vadd.s32 %v4742, 18
      %v5057 = vadd.s32 %v4753, 18
      %v5058 = vadd.s32 %v4764, 18
      %v5059 = vadd.s32 %v4775, 18
      %v5060 = vadd.s32 %v4786, 18
      %v5061 = vadd.s32 %v4797, 18
      %v5062 = vadd.s32 %v4808, 18
      %v5063 = vadd.s32 %v4819, 18
      %v5064 = vadd.s32 %v4830, 18
      %v5065 = vadd.s32 %v4841, 18
      %v5066 = vadd.s32 %v4852, 18
      %v5067 = vadd.s32 %v4863, 18
      %v5068 = vadd.s32 %v4874, 18
      %v5069 = vadd.s32 %v4885, 18
      %v5070 = vadd.s32 %v4896, 18
      %v5071 = vadd.s32 %v4907, 18
      %v5072 = vadd.s32 %v4918, 18
      %v5073 = vadd.s32 %v4929, 18
      %v5074 = vsel %vm5002, %v5038, %v4544
      %v5075 = vsel %vm5003, %v5039, %v4555
      %v5076 = vsel %vm5004, %v5040, %v4566
      %v5077 = vsel %vm5005, %v5041, %v4577
      %v5078 = vsel %vm5006, %v5042, %v4588
      %v5079 = vsel %vm5007, %v5043, %v4599
      %v5080 = vsel %vm5008, %v5044, %v4610
      %v5081 = vsel %vm5009, %v5045, %v4621
      %v5082 = vsel %vm5010, %v5046, %v4632
      %v5083 = vsel %vm5011, %v5047, %v4643
      %v5084 = vsel %vm5012, %v5048, %v4654
      %v5085 = vsel %vm5013, %v5049, %v4665
      %v5086 = vsel %vm5014, %v5050, %v4676
      %v5087 = vsel %vm5015, %v5051, %v4687
      %v5088 = vsel %vm5016, %v5052, %v4698
      %v5089 = vsel %vm5017, %v5053, %v4709
      %v5090 = vsel %vm5018, %v5054, %v4720
      %v5091 = vsel %vm5019, %v5055, %v4731
      %v5092 = vsel %vm5020, %v5056, %v4742
      %v5093 = vsel %vm5021, %v5057, %v4753
      %v5094 = vsel %vm5022, %v5058, %v4764
      %v5095 = vsel %vm5023, %v5059, %v4775
      %v5096 = vsel %vm5024, %v5060, %v4786
      %v5097 = vsel %vm5025, %v5061, %v4797
      %v5098 = vsel %vm5026, %v5062, %v4808
      %v5099 = vsel %vm5027, %v5063, %v4819
      %v5100 = vsel %vm5028, %v5064, %v4830
      %v5101 = vsel %vm5029, %v5065, %v4841
      %v5102 = vsel %vm5030, %v5066, %v4852
      %v5103 = vsel %vm5031, %v5067, %v4863
      %v5104 = vsel %vm5032, %v5068, %v4874
      %v5105 = vsel %vm5033, %v5069, %v4885
      %v5106 = vsel %vm5034, %v5070, %v4896
      %v5107 = vsel %vm5035, %v5071, %v4907
      %v5108 = vsel %vm5036, %v5072, %v4918
      %v5109 = vsel %vm5037, %v5073, %v4929
      %vm5110 = vcmp.lt.s32.totalorder %v5074, 16
      %vm5111 = vcmp.lt.s32.totalorder %v5075, 16
      %vm5112 = vcmp.lt.s32.totalorder %v5076, 16
      %vm5113 = vcmp.lt.s32.totalorder %v5077, 16
      %vm5114 = vcmp.lt.s32.totalorder %v5078, 16
      %vm5115 = vcmp.lt.s32.totalorder %v5079, 16
      %vm5116 = vcmp.lt.s32.totalorder %v5080, 16
      %vm5117 = vcmp.lt.s32.totalorder %v5081, 16
      %vm5118 = vcmp.lt.s32.totalorder %v5082, 16
      %vm5119 = vcmp.lt.s32.totalorder %v5083, 16
      %vm5120 = vcmp.lt.s32.totalorder %v5084, 16
      %vm5121 = vcmp.lt.s32.totalorder %v5085, 16
      %vm5122 = vcmp.lt.s32.totalorder %v5086, 16
      %vm5123 = vcmp.lt.s32.totalorder %v5087, 16
      %vm5124 = vcmp.lt.s32.totalorder %v5088, 16
      %vm5125 = vcmp.lt.s32.totalorder %v5089, 16
      %vm5126 = vcmp.lt.s32.totalorder %v5090, 16
      %vm5127 = vcmp.lt.s32.totalorder %v5091, 16
      %vm5128 = vcmp.lt.s32.totalorder %v5092, 16
      %vm5129 = vcmp.lt.s32.totalorder %v5093, 16
      %vm5130 = vcmp.lt.s32.totalorder %v5094, 16
      %vm5131 = vcmp.lt.s32.totalorder %v5095, 16
      %vm5132 = vcmp.lt.s32.totalorder %v5096, 16
      %vm5133 = vcmp.lt.s32.totalorder %v5097, 16
      %vm5134 = vcmp.lt.s32.totalorder %v5098, 16
      %vm5135 = vcmp.lt.s32.totalorder %v5099, 16
      %vm5136 = vcmp.lt.s32.totalorder %v5100, 16
      %vm5137 = vcmp.lt.s32.totalorder %v5101, 16
      %vm5138 = vcmp.lt.s32.totalorder %v5102, 16
      %vm5139 = vcmp.lt.s32.totalorder %v5103, 16
      %vm5140 = vcmp.lt.s32.totalorder %v5104, 16
      %vm5141 = vcmp.lt.s32.totalorder %v5105, 16
      %vm5142 = vcmp.lt.s32.totalorder %v5106, 16
      %vm5143 = vcmp.lt.s32.totalorder %v5107, 16
      %vm5144 = vcmp.lt.s32.totalorder %v5108, 16
      %vm5145 = vcmp.lt.s32.totalorder %v5109, 16
      %v5146 = vsel %vm5110, %v4461, 0.0
      %v5147 = vsel %vm5111, %v4462, 0.0
      %v5148 = vsel %vm5112, %v4463, 0.0
      %v5149 = vsel %vm5113, %v4464, 0.0
      %v5150 = vsel %vm5114, %v4465, 0.0
      %v5151 = vsel %vm5115, %v4466, 0.0
      %v5152 = vsel %vm5116, %v4467, 0.0
      %v5153 = vsel %vm5117, %v4468, 0.0
      %v5154 = vsel %vm5118, %v4469, 0.0
      %v5155 = vsel %vm5119, %v4470, 0.0
      %v5156 = vsel %vm5120, %v4471, 0.0
      %v5157 = vsel %vm5121, %v4472, 0.0
      %v5158 = vsel %vm5122, %v4473, 0.0
      %v5159 = vsel %vm5123, %v4474, 0.0
      %v5160 = vsel %vm5124, %v4475, 0.0
      %v5161 = vsel %vm5125, %v4476, 0.0
      %v5162 = vsel %vm5126, %v4477, 0.0
      %v5163 = vsel %vm5127, %v4478, 0.0
      %v5164 = vsel %vm5128, %v4479, 0.0
      %v5165 = vsel %vm5129, %v4480, 0.0
      %v5166 = vsel %vm5130, %v4481, 0.0
      %v5167 = vsel %vm5131, %v4482, 0.0
      %v5168 = vsel %vm5132, %v4483, 0.0
      %v5169 = vsel %vm5133, %v4484, 0.0
      %v5170 = vsel %vm5134, %v4485, 0.0
      %v5171 = vsel %vm5135, %v4486, 0.0
      %v5172 = vsel %vm5136, %v4487, 0.0
      %v5173 = vsel %vm5137, %v4488, 0.0
      %v5174 = vsel %vm5138, %v4489, 0.0
      %v5175 = vsel %vm5139, %v4490, 0.0
      %v5176 = vsel %vm5140, %v4491, 0.0
      %v5177 = vsel %vm5141, %v4492, 0.0
      %v5178 = vsel %vm5142, %v4493, 0.0
      %v5179 = vsel %vm5143, %v4494, 0.0
      %v5180 = vsel %vm5144, %v4495, 0.0
      %v5181 = vsel %vm5145, %v4496, 0.0
      %v5182 = vsel %vm5110, %v4245, 0.0
      %v5183 = vsel %vm5111, %v4246, 0.0
      %v5184 = vsel %vm5112, %v4247, 0.0
      %v5185 = vsel %vm5113, %v4248, 0.0
      %v5186 = vsel %vm5114, %v4249, 0.0
      %v5187 = vsel %vm5115, %v4250, 0.0
      %v5188 = vsel %vm5116, %v4251, 0.0
      %v5189 = vsel %vm5117, %v4252, 0.0
      %v5190 = vsel %vm5118, %v4253, 0.0
      %v5191 = vsel %vm5119, %v4254, 0.0
      %v5192 = vsel %vm5120, %v4255, 0.0
      %v5193 = vsel %vm5121, %v4256, 0.0
      %v5194 = vsel %vm5122, %v4257, 0.0
      %v5195 = vsel %vm5123, %v4258, 0.0
      %v5196 = vsel %vm5124, %v4259, 0.0
      %v5197 = vsel %vm5125, %v4260, 0.0
      %v5198 = vsel %vm5126, %v4261, 0.0
      %v5199 = vsel %vm5127, %v4262, 0.0
      %v5200 = vsel %vm5128, %v4263, 0.0
      %v5201 = vsel %vm5129, %v4264, 0.0
      %v5202 = vsel %vm5130, %v4265, 0.0
      %v5203 = vsel %vm5131, %v4266, 0.0
      %v5204 = vsel %vm5132, %v4267, 0.0
      %v5205 = vsel %vm5133, %v4268, 0.0
      %v5206 = vsel %vm5134, %v4269, 0.0
      %v5207 = vsel %vm5135, %v4270, 0.0
      %v5208 = vsel %vm5136, %v4271, 0.0
      %v5209 = vsel %vm5137, %v4272, 0.0
      %v5210 = vsel %vm5138, %v4273, 0.0
      %v5211 = vsel %vm5139, %v4274, 0.0
      %v5212 = vsel %vm5140, %v4275, 0.0
      %v5213 = vsel %vm5141, %v4276, 0.0
      %v5214 = vsel %vm5142, %v4277, 0.0
      %v5215 = vsel %vm5143, %v4278, 0.0
      %v5216 = vsel %vm5144, %v4279, 0.0
      %v5217 = vsel %vm5145, %v4280, 0.0
      %5254 = vrot.lane.b32.xlu0 %v5146, 64
      %v5255 = vpop.permute.xlu0 %5254
      %5256 = vrot.lane.b32.xlu0 %v5147, 64
      %v5257 = vpop.permute.xlu0 %5256
      %5258 = vrot.lane.b32.xlu0 %v5148, 64
      %v5259 = vpop.permute.xlu0 %5258
      %5260 = vrot.lane.b32.xlu0 %v5149, 64
      %v5261 = vpop.permute.xlu0 %5260
      %5262 = vrot.lane.b32.xlu0 %v5150, 64
      %v5263 = vpop.permute.xlu0 %5262
      %5264 = vrot.lane.b32.xlu0 %v5151, 64
      %v5265 = vpop.permute.xlu0 %5264
      %5266 = vrot.lane.b32.xlu0 %v5152, 64
      %v5267 = vpop.permute.xlu0 %5266
      %5268 = vrot.lane.b32.xlu0 %v5153, 64
      %v5269 = vpop.permute.xlu0 %5268
      %5270 = vrot.lane.b32.xlu0 %v5154, 64
      %v5271 = vpop.permute.xlu0 %5270
      %5272 = vrot.lane.b32.xlu0 %v5155, 64
      %v5273 = vpop.permute.xlu0 %5272
      %5274 = vrot.lane.b32.xlu0 %v5156, 64
      %v5275 = vpop.permute.xlu0 %5274
      %5276 = vrot.lane.b32.xlu0 %v5157, 64
      %v5277 = vpop.permute.xlu0 %5276
      %5278 = vrot.lane.b32.xlu0 %v5158, 64
      %v5279 = vpop.permute.xlu0 %5278
      %5280 = vrot.lane.b32.xlu0 %v5159, 64
      %v5281 = vpop.permute.xlu0 %5280
      %5282 = vrot.lane.b32.xlu0 %v5160, 64
      %v5283 = vpop.permute.xlu0 %5282
      %5284 = vrot.lane.b32.xlu0 %v5161, 64
      %v5285 = vpop.permute.xlu0 %5284
      %5286 = vrot.lane.b32.xlu0 %v5162, 64
      %v5287 = vpop.permute.xlu0 %5286
      %5288 = vrot.lane.b32.xlu0 %v5163, 64
      %v5289 = vpop.permute.xlu0 %5288
      %5290 = vrot.lane.b32.xlu0 %v5164, 64
      %v5291 = vpop.permute.xlu0 %5290
      %5292 = vrot.lane.b32.xlu0 %v5165, 64
      %v5293 = vpop.permute.xlu0 %5292
      %5294 = vrot.lane.b32.xlu0 %v5166, 64
      %v5295 = vpop.permute.xlu0 %5294
      %5296 = vrot.lane.b32.xlu0 %v5167, 64
      %v5297 = vpop.permute.xlu0 %5296
      %5298 = vrot.lane.b32.xlu0 %v5168, 64
      %v5299 = vpop.permute.xlu0 %5298
      %5300 = vrot.lane.b32.xlu0 %v5169, 64
      %v5301 = vpop.permute.xlu0 %5300
      %5302 = vrot.lane.b32.xlu0 %v5170, 64
      %v5303 = vpop.permute.xlu0 %5302
      %5304 = vrot.lane.b32.xlu0 %v5171, 64
      %v5305 = vpop.permute.xlu0 %5304
      %5306 = vrot.lane.b32.xlu0 %v5172, 64
      %v5307 = vpop.permute.xlu0 %5306
      %5308 = vrot.lane.b32.xlu0 %v5173, 64
      %v5309 = vpop.permute.xlu0 %5308
      %5310 = vrot.lane.b32.xlu0 %v5174, 64
      %v5311 = vpop.permute.xlu0 %5310
      %5312 = vrot.lane.b32.xlu0 %v5175, 64
      %v5313 = vpop.permute.xlu0 %5312
      %5314 = vrot.lane.b32.xlu0 %v5176, 64
      %v5315 = vpop.permute.xlu0 %5314
      %5316 = vrot.lane.b32.xlu0 %v5177, 64
      %v5317 = vpop.permute.xlu0 %5316
      %5318 = vrot.lane.b32.xlu0 %v5178, 64
      %v5319 = vpop.permute.xlu0 %5318
      %5320 = vrot.lane.b32.xlu0 %v5179, 64
      %v5321 = vpop.permute.xlu0 %5320
      %5322 = vrot.lane.b32.xlu0 %v5180, 64
      %v5323 = vpop.permute.xlu0 %5322
      %5324 = vrot.lane.b32.xlu0 %v5181, 64
      %v5325 = vpop.permute.xlu0 %5324
      %vm5362 = vcmask 261120
      %5363 = vst.msk [vmem:[%s217] sm:$0xff] %vm5362, %v5255
      %5364 = vst.msk [vmem:[%s217 + $0x8] sm:$0xff] %vm5362, %v5257
      %5365 = vst.msk [vmem:[%s217 + $0x10] sm:$0xff] %vm5362, %v5259
      %5366 = vst.msk [vmem:[%s217 + $0x18] sm:$0xff] %vm5362, %v5261
      %5367 = vst.msk [vmem:[%s217 + $0x20] sm:$0xff] %vm5362, %v5263
      %5368 = vst.msk [vmem:[%s217 + $0x28] sm:$0xff] %vm5362, %v5265
      %5369 = vst.msk [vmem:[%s217 + $0x30] sm:$0xff] %vm5362, %v5267
      %5370 = vst.msk [vmem:[%s217 + $0x38] sm:$0xff] %vm5362, %v5269
      %5371 = vst.msk [vmem:[%s217 + $0x40] sm:$0xff] %vm5362, %v5271
      %5372 = vst.msk [vmem:[%s217 + $0x48] sm:$0xff] %vm5362, %v5273
      %5373 = vst.msk [vmem:[%s217 + $0x50] sm:$0xff] %vm5362, %v5275
      %5374 = vst.msk [vmem:[%s217 + $0x58] sm:$0xff] %vm5362, %v5277
      %5375 = vst.msk [vmem:[%s217 + $0x60] sm:$0xff] %vm5362, %v5279
      %5376 = vst.msk [vmem:[%s217 + $0x68] sm:$0xff] %vm5362, %v5281
      %5377 = vst.msk [vmem:[%s217 + $0x70] sm:$0xff] %vm5362, %v5283
      %5378 = vst.msk [vmem:[%s217 + $0x78] sm:$0xff] %vm5362, %v5285
      %5379 = vst.msk [vmem:[%s217 + $0x80] sm:$0xff] %vm5362, %v5287
      %5380 = vst.msk [vmem:[%s217 + $0x88] sm:$0xff] %vm5362, %v5289
      %5381 = vst.msk [vmem:[%s217 + $0x90] sm:$0xff] %vm5362, %v5291
      %5382 = vst.msk [vmem:[%s217 + $0x98] sm:$0xff] %vm5362, %v5293
      %5383 = vst.msk [vmem:[%s217 + $0xa0] sm:$0xff] %vm5362, %v5295
      %5384 = vst.msk [vmem:[%s217 + $0xa8] sm:$0xff] %vm5362, %v5297
      %5385 = vst.msk [vmem:[%s217 + $0xb0] sm:$0xff] %vm5362, %v5299
      %5386 = vst.msk [vmem:[%s217 + $0xb8] sm:$0xff] %vm5362, %v5301
      %5387 = vst.msk [vmem:[%s217 + $0xc0] sm:$0xff] %vm5362, %v5303
      %5388 = vst.msk [vmem:[%s217 + $0xc8] sm:$0xff] %vm5362, %v5305
      %5389 = vst.msk [vmem:[%s217 + $0xd0] sm:$0xff] %vm5362, %v5307
      %5390 = vst.msk [vmem:[%s217 + $0xd8] sm:$0xff] %vm5362, %v5309
      %5391 = vst.msk [vmem:[%s217 + $0xe0] sm:$0xff] %vm5362, %v5311
      %5392 = vst.msk [vmem:[%s217 + $0xe8] sm:$0xff] %vm5362, %v5313
      %5393 = vst.msk [vmem:[%s217 + $0xf0] sm:$0xff] %vm5362, %v5315
      %5394 = vst.msk [vmem:[%s217 + $0xf8] sm:$0xff] %vm5362, %v5317
      %5395 = vst.msk [vmem:[%s217 + $0x100] sm:$0xff] %vm5362, %v5319
      %5396 = vst.msk [vmem:[%s217 + $0x108] sm:$0xff] %vm5362, %v5321
      %5397 = vst.msk [vmem:[%s217 + $0x110] sm:$0xff] %vm5362, %v5323
      %5398 = vst.msk [vmem:[%s217 + $0x118] sm:$0xff] %vm5362, %v5325
      %vm5399 = vcmask 523520
      %5400 = vst.msk [vmem:[%s217] sm:$0xff] %vm5399, %v5182
      %5401 = vst.msk [vmem:[%s217 + $0x8] sm:$0xff] %vm5399, %v5183
      %5402 = vst.msk [vmem:[%s217 + $0x10] sm:$0xff] %vm5399, %v5184
      %5403 = vst.msk [vmem:[%s217 + $0x18] sm:$0xff] %vm5399, %v5185
      %5404 = vst.msk [vmem:[%s217 + $0x20] sm:$0xff] %vm5399, %v5186
      %5405 = vst.msk [vmem:[%s217 + $0x28] sm:$0xff] %vm5399, %v5187
      %5406 = vst.msk [vmem:[%s217 + $0x30] sm:$0xff] %vm5399, %v5188
      %5407 = vst.msk [vmem:[%s217 + $0x38] sm:$0xff] %vm5399, %v5189
      %5408 = vst.msk [vmem:[%s217 + $0x40] sm:$0xff] %vm5399, %v5190
      %5409 = vst.msk [vmem:[%s217 + $0x48] sm:$0xff] %vm5399, %v5191
      %5410 = vst.msk [vmem:[%s217 + $0x50] sm:$0xff] %vm5399, %v5192
      %5411 = vst.msk [vmem:[%s217 + $0x58] sm:$0xff] %vm5399, %v5193
      %5412 = vst.msk [vmem:[%s217 + $0x60] sm:$0xff] %vm5399, %v5194
      %5413 = vst.msk [vmem:[%s217 + $0x68] sm:$0xff] %vm5399, %v5195
      %5414 = vst.msk [vmem:[%s217 + $0x70] sm:$0xff] %vm5399, %v5196
      %5415 = vst.msk [vmem:[%s217 + $0x78] sm:$0xff] %vm5399, %v5197
      %5416 = vst.msk [vmem:[%s217 + $0x80] sm:$0xff] %vm5399, %v5198
      %5417 = vst.msk [vmem:[%s217 + $0x88] sm:$0xff] %vm5399, %v5199
      %5418 = vst.msk [vmem:[%s217 + $0x90] sm:$0xff] %vm5399, %v5200
      %5419 = vst.msk [vmem:[%s217 + $0x98] sm:$0xff] %vm5399, %v5201
      %5420 = vst.msk [vmem:[%s217 + $0xa0] sm:$0xff] %vm5399, %v5202
      %5421 = vst.msk [vmem:[%s217 + $0xa8] sm:$0xff] %vm5399, %v5203
      %5422 = vst.msk [vmem:[%s217 + $0xb0] sm:$0xff] %vm5399, %v5204
      %5423 = vst.msk [vmem:[%s217 + $0xb8] sm:$0xff] %vm5399, %v5205
      %5424 = vst.msk [vmem:[%s217 + $0xc0] sm:$0xff] %vm5399, %v5206
      %5425 = vst.msk [vmem:[%s217 + $0xc8] sm:$0xff] %vm5399, %v5207
      %5426 = vst.msk [vmem:[%s217 + $0xd0] sm:$0xff] %vm5399, %v5208
      %5427 = vst.msk [vmem:[%s217 + $0xd8] sm:$0xff] %vm5399, %v5209
      %5428 = vst.msk [vmem:[%s217 + $0xe0] sm:$0xff] %vm5399, %v5210
      %5429 = vst.msk [vmem:[%s217 + $0xe8] sm:$0xff] %vm5399, %v5211
      %5430 = vst.msk [vmem:[%s217 + $0xf0] sm:$0xff] %vm5399, %v5212
      %5431 = vst.msk [vmem:[%s217 + $0xf8] sm:$0xff] %vm5399, %v5213
      %5432 = vst.msk [vmem:[%s217 + $0x100] sm:$0xff] %vm5399, %v5214
      %5433 = vst.msk [vmem:[%s217 + $0x108] sm:$0xff] %vm5399, %v5215
      %5434 = vst.msk [vmem:[%s217 + $0x110] sm:$0xff] %vm5399, %v5216
      %5435 = vst.msk [vmem:[%s217 + $0x118] sm:$0xff] %vm5399, %v5217
      %p5436 = scmp.lt.s32.totalorder %s15, 1
      %s5437 = scalar_select %p5436, %s15, 1
      %s5438 = smul.addr %s5437, 36
      %s5439 = smul.addr %s5438, 8
      %s5440 = scalar_lea.vmem %s4, %s5439
      // Predicated region
      $region37: #{convlstm_cell_step.1} parent=35 // pred_check
        %p5441 = pneg %p127
      $region38: #{convlstm_cell_step.1} parent=35 // pred_check_branch
        %5443 = sbr.rel (%p5441) target = $region40
      $region39: #{convlstm_cell_step.1} parent=35 // pred_region
        _
      $region40: #{convlstm_cell_step.1} parent=35 // pred_fallthru
        _
    $region36: #{convlstm_cell_step.1} parent=5 // pred_fallthru
      _
    %p5444 = scmp.le.s32.totalorder 2, %s10
    // Predicated region
    $region41: #{convlstm_cell_step.1} parent=5 // pred_check
      %p5445 = pneg %p5444
    $region42: #{convlstm_cell_step.1} parent=5 // pred_check_branch
      %5447 = sbr.rel (%p5445) target = $region44
    $region43: #{convlstm_cell_step.1} parent=5 // pred_region
      %s5448 = ssub.s32 %s10, 2
      // Predicated region
      $region45: #{convlstm_cell_step.1} parent=43 // pred_check
        %p5449 = pneg %p133
      $region46: #{convlstm_cell_step.1} parent=43 // pred_check_branch
        %5451 = sbr.rel (%p5449) target = $region48
      $region47: #{convlstm_cell_step.1} parent=43 // pred_region
        %p5452 = scmp.lt.s32.totalorder %s16, 1
        %s5453 = scalar_select %p5452, %s16, 1
        %s5454 = smul.addr %s5453, 36
        %s5455 = smul.addr %s5454, 8
        %s5456 = scalar_lea.vmem %s4, %s5455
      $region48: #{convlstm_cell_step.1} parent=43 // pred_fallthru
        _
    $region44: #{convlstm_cell_step.1} parent=5 // pred_fallthru
      _
  $region6: #{convlstm_cell_step.1} parent=0 // loop_footer
    %s14 = sadd.s32 1, %s10
  $region7: #{convlstm_cell_step.1} parent=0 // loop_footer_branch
    %9 = sbr.rel target = $region3
  $region8: #{convlstm_cell_step.1} parent=0 // loop_exit
    _

</llo_original>
